<compile_context>
chip_gen: v6e
topology: v6e:2x2x1
jax: 0.10.0
libtpu: 0.0.40
codegen_flags: <defaults>
</compile_context>

<pallas_src>
import functools

import jax
import jax.numpy as jnp
import numpy as np
from jax import lax
from jax.experimental import pallas as pl
from jax.experimental.pallas import tpu as pltpu


def _att_pooling_kernel(x_ref, wfc_ref, wmlp_ref, shift_ref, o_ref, *, approx_recip):
    # x_ref:     (1, K, C_in, tn)  neighbors x channels x points (points on lanes)
    # wfc_ref:   (C_in, C_in)      fc weight [out_ch, in_ch], in x's dtype (bf16 or f32)
    # wmlp_ref:  (d_out, C_in)     mlp weight with BN scale pre-folded, f32
    # shift_ref: (d_out, 1)        folded BN shift, f32 (broadcasts over lanes)
    # o_ref:     (1, d_out, tn)    NCHW-ordered output block (lane-dense store)
    K = x_ref.shape[1]
    wfc = wfc_ref[...]                                   # hoisted, loaded once

    # --- fc: 1x1 conv == (C_out, C_in) @ (C_in, tn) on the MXU, per neighbor ---
    # Leading-dim slices x_ref[0, k] are cheap views; native dtype to the MXU,
    # f32 accumulation.
    att = [
        lax.dot_general(
            wfc, x_ref[0, k],
            dimension_numbers=(((1,), (0,)), ((), ())),
            preferred_element_type=jnp.float32,
        )
        for k in range(K)
    ]                                                    # K slabs of (C_in, tn), f32

    # --- softmax over the neighbor axis: cross-slab VALU max / EUP exp ---
    m = att[0]
    for k in range(1, K):
        m = jnp.maximum(m, att[k])

    denom = None
    acc = None
    for k in range(K):
        e_k = jnp.exp(att[k] - m)                        # (C_in, tn), f32
        x_k = x_ref[0, k].astype(jnp.float32)            # elementwise math in f32 (v5e-safe)
        denom = e_k if denom is None else denom + e_k
        acc = x_k * e_k if acc is None else acc + x_k * e_k

    # Reciprocal applied once after the K reduction (EUP slot; no att_s temporary).
    agg = acc * pl.reciprocal(denom, approx=approx_recip)        # (C_in, tn)

    # --- mlp 1x1 conv (BN scale pre-folded) + shift + ReLU, lane-dense store ---
    y = lax.dot_general(
        wmlp_ref[...], agg,
        dimension_numbers=(((1,), (0,)), ((), ())),
        preferred_element_type=jnp.float32,
    )                                                    # (d_out, tn)
    y = y + shift_ref[...]
    o_ref[0] = jnp.maximum(y, 0.0).astype(o_ref.dtype)


def _pick_point_tile(n, batch, target=512):
    """Lane-dim point tile: a multiple of 128 (ragged tail OK), or == N if N < 128.

    Prefer >= 4 total grid steps so the double-buffered pipeline reaches steady
    state, and >= 2 so both v7x TensorCores get work; never shrink below 128 lanes.
    """
    if n < 128:
        return n
    tn = min((max(target, 128) // 128) * 128, (n // 128) * 128)
    tn = max(tn, 128)
    while tn > 128 and batch * ((n + tn - 1) // tn) < 4:
        tn = max(128, (tn // 2 // 128) * 128)
    return tn


def att_pooling(feature_set, w_fc, w_mlp, bn_gamma, bn_beta, bn_mean, bn_var,
                eps=1e-5, point_tile=512, approx_reciprocal=True):
    """feature_set: (B, C_in, N, K) PyTorch NCHW, f32 or bf16. Returns (B, d_out, N, 1)."""
    B, C_in, N, K = feature_set.shape
    d_out = w_mlp.shape[0]

    tn = _pick_point_tile(N, B, point_tile)
    n_blocks = pl.cdiv(N, tn)

    # Lane-dense layout: points last. Marked fusable into the pallas_call input
    # stream below so XLA can avoid materialising a second full HBM copy.
    x = jnp.transpose(feature_set, (0, 3, 1, 2))         # (B, K, C_in, N)

    # bf16 inputs go to the MXU in bf16 (f32 accumulation); f32 stays f32.
    w_fc_in = w_fc.astype(feature_set.dtype)

    # Fold eval-mode BatchNorm2d into the mlp weight (scale) + a shift add.
    # TODO(synk): training-mode BN (batch statistics) is not computed in-kernel.
    scale = (bn_gamma.astype(jnp.float32) /
             jnp.sqrt(bn_var.astype(jnp.float32) + eps))
    shift = bn_beta.astype(jnp.float32) - bn_mean.astype(jnp.float32) * scale
    w_mlp_scaled = scale[:, None] * w_mlp.astype(jnp.float32)    # (d_out, C_in)
    shift2d = shift.reshape(d_out, 1)

    kernel = functools.partial(_att_pooling_kernel, approx_recip=approx_reciprocal)

    out = pl.pallas_call(
        kernel,
        out_shape=jax.ShapeDtypeStruct((B, d_out, N), feature_set.dtype),
        grid_spec=pltpu.PrefetchScalarGridSpec(
            num_scalar_prefetch=0,
            grid=(B, n_blocks),
            in_specs=[
                pl.BlockSpec((1, K, C_in, tn), lambda b, i: (b, 0, 0, i)),
                pl.BlockSpec((C_in, C_in), lambda b, i: (0, 0)),
                pl.BlockSpec((d_out, C_in), lambda b, i: (0, 0)),
                pl.BlockSpec((d_out, 1), lambda b, i: (0, 0)),
            ],
            out_specs=pl.BlockSpec((1, d_out, tn), lambda b, i: (b, 0, i)),
        ),
        compiler_params=pltpu.CompilerParams(
            # Both axes independent -> shard across v7x's two TensorCores.
            dimension_semantics=("parallel", "parallel"),
            # Best effort: fuse the NCHW -> (B,K,C,N) transpose into the input fetch.
            allow_input_fusion=[True, False, False, False],
        ),
    )(x, w_fc_in, w_mlp_scaled, shift2d)

    return out[..., None]                                # (B, d_out, N, 1)


def att_pooling_ref(feature_set, w_fc, w_mlp, bn_gamma, bn_beta, bn_mean, bn_var,
                    eps=1e-5):
    """Pure-JAX reference mirroring the PyTorch forward (eval-mode BN)."""
    att = jnp.einsum('oc,bcnk->bonk', w_fc, feature_set)
    att = jax.nn.softmax(att, axis=3)
    agg = jnp.sum(feature_set * att, axis=3, keepdims=True)       # (B, C, N, 1)
    y = jnp.einsum('oc,bcnk->bonk', w_mlp, agg)                   # (B, d_out, N, 1)
    scale = bn_gamma / jnp.sqrt(bn_var + eps)
    shift = bn_beta - bn_mean * scale
    y = y * scale[None, :, None, None] + shift[None, :, None, None]
    return jnp.maximum(y, 0.0)


if __name__ == "__main__":
    B, d_in, d_out, N, K = 2, 32, 64, 512, 16

    key = jax.random.PRNGKey(0)
    k1, k2, k3, k4, k5, k6, k7 = jax.random.split(key, 7)

    feature_set = jax.random.normal(k1, (B, d_in, N, K), dtype=jnp.float32)

    # Deterministic parameter init (shapes from the module's __init__).
    w_fc = jax.random.normal(k2, (d_in, d_in), dtype=jnp.float32) * 0.1    # Conv2d(d_in, d_in, 1x1, bias=False)
    w_mlp = jax.random.normal(k3, (d_out, d_in), dtype=jnp.float32) * 0.1  # pt_utils.Conv2d(d_in, d_out, bn=True)
    bn_gamma = 1.0 + 0.1 * jax.random.normal(k4, (d_out,), dtype=jnp.float32)
    bn_beta = 0.1 * jax.random.normal(k5, (d_out,), dtype=jnp.float32)
    bn_mean = 0.1 * jax.random.normal(k6, (d_out,), dtype=jnp.float32)
    bn_var = jnp.abs(1.0 + 0.1 * jax.random.normal(k7, (d_out,), dtype=jnp.float32))

    # Jit the wrapper so the (fusable) layout transpose and the pallas_call are
    # compiled together.
    fwd = jax.jit(att_pooling)
    out = jax.block_until_ready(
        fwd(feature_set, w_fc, w_mlp, bn_gamma, bn_beta, bn_mean, bn_var))

    ref = att_pooling_ref(feature_set, w_fc, w_mlp, bn_gamma, bn_beta, bn_mean, bn_var)
    # Tolerance accounts for pl.reciprocal(approx=True) in the softmax normalizer.
    np.testing.assert_allclose(np.asarray(out), np.asarray(ref), rtol=5e-3, atol=5e-3)

    print("KERNEL_OK")
</pallas_src>

<mosaic_0001>
module attributes {stable_mosaic.version = 11 : i64} {
  func.func @_att_pooling_kernel(%arg0: i32, %arg1: i32, %arg2: memref<1x16x32x256xf32, #tpu.memory_space<vmem>>, %arg3: memref<32x32xf32, #tpu.memory_space<vmem>>, %arg4: memref<64x32xf32, #tpu.memory_space<vmem>>, %arg5: memref<64x1xf32, #tpu.memory_space<vmem>>, %arg6: memref<1x64x256xf32, #tpu.memory_space<vmem>>) attributes {dimension_semantics = [#tpu.dimension_semantics<parallel>, #tpu.dimension_semantics<parallel>], iteration_bounds = array<i64: 2, 2>, scalar_prefetch = 0 : i64, scratch_operands = 0 : i64, tpu.core_type = #tpu.core_type<tc>, window_params = [{transform_indices = @transform_0, window_bounds = array<i64: 1, 16, 32, 256>}, {pipeline_mode = #tpu.pipeline_mode<synchronous>, transform_indices = @transform_1, window_bounds = array<i64: 32, 32>}, {pipeline_mode = #tpu.pipeline_mode<synchronous>, transform_indices = @transform_2, window_bounds = array<i64: 64, 32>}, {pipeline_mode = #tpu.pipeline_mode<synchronous>, transform_indices = @transform_3, window_bounds = array<i64: 64, 1>}, {transform_indices = @transform_4, window_bounds = array<i64: 1, 64, 256>}]} {
    %c0 = arith.constant 0 : index
    %c0_0 = arith.constant 0 : index
    %0 = vector.load %arg3[%c0, %c0_0] : memref<32x32xf32, #tpu.memory_space<vmem>>, vector<32x32xf32>
    %c0_1 = arith.constant 0 : index
    %c0_2 = arith.constant 0 : index
    %c0_3 = arith.constant 0 : index
    %c0_4 = arith.constant 0 : index
    %1 = vector.load %arg2[%c0_1, %c0_2, %c0_3, %c0_4] : memref<1x16x32x256xf32, #tpu.memory_space<vmem>>, vector<1x1x32x256xf32>
    %2 = vector.shape_cast %1 : vector<1x1x32x256xf32> to vector<32x256xf32>
    %cst = arith.constant dense<0.000000e+00> : vector<32x256xf32>
    %3 = tpu.matmul %0, %2, %cst {dimension_numbers = #tpu.dot_dimension_numbers<[1], [0], [0], [1], [0, 0, 1, 1], [], []>} : vector<32x32xf32>, vector<32x256xf32>, vector<32x256xf32> -> vector<32x256xf32>
    %c0_5 = arith.constant 0 : index
    %c1 = arith.constant 1 : index
    %c0_6 = arith.constant 0 : index
    %c0_7 = arith.constant 0 : index
    %4 = vector.load %arg2[%c0_5, %c1, %c0_6, %c0_7] : memref<1x16x32x256xf32, #tpu.memory_space<vmem>>, vector<1x1x32x256xf32>
    %5 = vector.shape_cast %4 : vector<1x1x32x256xf32> to vector<32x256xf32>
    %cst_8 = arith.constant dense<0.000000e+00> : vector<32x256xf32>
    %6 = tpu.matmul %0, %5, %cst_8 {dimension_numbers = #tpu.dot_dimension_numbers<[1], [0], [0], [1], [0, 0, 1, 1], [], []>} : vector<32x32xf32>, vector<32x256xf32>, vector<32x256xf32> -> vector<32x256xf32>
    %c0_9 = arith.constant 0 : index
    %c2 = arith.constant 2 : index
    %c0_10 = arith.constant 0 : index
    %c0_11 = arith.constant 0 : index
    %7 = vector.load %arg2[%c0_9, %c2, %c0_10, %c0_11] : memref<1x16x32x256xf32, #tpu.memory_space<vmem>>, vector<1x1x32x256xf32>
    %8 = vector.shape_cast %7 : vector<1x1x32x256xf32> to vector<32x256xf32>
    %cst_12 = arith.constant dense<0.000000e+00> : vector<32x256xf32>
    %9 = tpu.matmul %0, %8, %cst_12 {dimension_numbers = #tpu.dot_dimension_numbers<[1], [0], [0], [1], [0, 0, 1, 1], [], []>} : vector<32x32xf32>, vector<32x256xf32>, vector<32x256xf32> -> vector<32x256xf32>
    %c0_13 = arith.constant 0 : index
    %c3 = arith.constant 3 : index
    %c0_14 = arith.constant 0 : index
    %c0_15 = arith.constant 0 : index
    %10 = vector.load %arg2[%c0_13, %c3, %c0_14, %c0_15] : memref<1x16x32x256xf32, #tpu.memory_space<vmem>>, vector<1x1x32x256xf32>
    %11 = vector.shape_cast %10 : vector<1x1x32x256xf32> to vector<32x256xf32>
    %cst_16 = arith.constant dense<0.000000e+00> : vector<32x256xf32>
    %12 = tpu.matmul %0, %11, %cst_16 {dimension_numbers = #tpu.dot_dimension_numbers<[1], [0], [0], [1], [0, 0, 1, 1], [], []>} : vector<32x32xf32>, vector<32x256xf32>, vector<32x256xf32> -> vector<32x256xf32>
    %c0_17 = arith.constant 0 : index
    %c4 = arith.constant 4 : index
    %c0_18 = arith.constant 0 : index
    %c0_19 = arith.constant 0 : index
    %13 = vector.load %arg2[%c0_17, %c4, %c0_18, %c0_19] : memref<1x16x32x256xf32, #tpu.memory_space<vmem>>, vector<1x1x32x256xf32>
    %14 = vector.shape_cast %13 : vector<1x1x32x256xf32> to vector<32x256xf32>
    %cst_20 = arith.constant dense<0.000000e+00> : vector<32x256xf32>
    %15 = tpu.matmul %0, %14, %cst_20 {dimension_numbers = #tpu.dot_dimension_numbers<[1], [0], [0], [1], [0, 0, 1, 1], [], []>} : vector<32x32xf32>, vector<32x256xf32>, vector<32x256xf32> -> vector<32x256xf32>
    %c0_21 = arith.constant 0 : index
    %c5 = arith.constant 5 : index
    %c0_22 = arith.constant 0 : index
    %c0_23 = arith.constant 0 : index
    %16 = vector.load %arg2[%c0_21, %c5, %c0_22, %c0_23] : memref<1x16x32x256xf32, #tpu.memory_space<vmem>>, vector<1x1x32x256xf32>
    %17 = vector.shape_cast %16 : vector<1x1x32x256xf32> to vector<32x256xf32>
    %cst_24 = arith.constant dense<0.000000e+00> : vector<32x256xf32>
    %18 = tpu.matmul %0, %17, %cst_24 {dimension_numbers = #tpu.dot_dimension_numbers<[1], [0], [0], [1], [0, 0, 1, 1], [], []>} : vector<32x32xf32>, vector<32x256xf32>, vector<32x256xf32> -> vector<32x256xf32>
    %c0_25 = arith.constant 0 : index
    %c6 = arith.constant 6 : index
    %c0_26 = arith.constant 0 : index
    %c0_27 = arith.constant 0 : index
    %19 = vector.load %arg2[%c0_25, %c6, %c0_26, %c0_27] : memref<1x16x32x256xf32, #tpu.memory_space<vmem>>, vector<1x1x32x256xf32>
    %20 = vector.shape_cast %19 : vector<1x1x32x256xf32> to vector<32x256xf32>
    %cst_28 = arith.constant dense<0.000000e+00> : vector<32x256xf32>
    %21 = tpu.matmul %0, %20, %cst_28 {dimension_numbers = #tpu.dot_dimension_numbers<[1], [0], [0], [1], [0, 0, 1, 1], [], []>} : vector<32x32xf32>, vector<32x256xf32>, vector<32x256xf32> -> vector<32x256xf32>
    %c0_29 = arith.constant 0 : index
    %c7 = arith.constant 7 : index
    %c0_30 = arith.constant 0 : index
    %c0_31 = arith.constant 0 : index
    %22 = vector.load %arg2[%c0_29, %c7, %c0_30, %c0_31] : memref<1x16x32x256xf32, #tpu.memory_space<vmem>>, vector<1x1x32x256xf32>
    %23 = vector.shape_cast %22 : vector<1x1x32x256xf32> to vector<32x256xf32>
    %cst_32 = arith.constant dense<0.000000e+00> : vector<32x256xf32>
    %24 = tpu.matmul %0, %23, %cst_32 {dimension_numbers = #tpu.dot_dimension_numbers<[1], [0], [0], [1], [0, 0, 1, 1], [], []>} : vector<32x32xf32>, vector<32x256xf32>, vector<32x256xf32> -> vector<32x256xf32>
    %c0_33 = arith.constant 0 : index
    %c8 = arith.constant 8 : index
    %c0_34 = arith.constant 0 : index
    %c0_35 = arith.constant 0 : index
    %25 = vector.load %arg2[%c0_33, %c8, %c0_34, %c0_35] : memref<1x16x32x256xf32, #tpu.memory_space<vmem>>, vector<1x1x32x256xf32>
    %26 = vector.shape_cast %25 : vector<1x1x32x256xf32> to vector<32x256xf32>
    %cst_36 = arith.constant dense<0.000000e+00> : vector<32x256xf32>
    %27 = tpu.matmul %0, %26, %cst_36 {dimension_numbers = #tpu.dot_dimension_numbers<[1], [0], [0], [1], [0, 0, 1, 1], [], []>} : vector<32x32xf32>, vector<32x256xf32>, vector<32x256xf32> -> vector<32x256xf32>
    %c0_37 = arith.constant 0 : index
    %c9 = arith.constant 9 : index
    %c0_38 = arith.constant 0 : index
    %c0_39 = arith.constant 0 : index
    %28 = vector.load %arg2[%c0_37, %c9, %c0_38, %c0_39] : memref<1x16x32x256xf32, #tpu.memory_space<vmem>>, vector<1x1x32x256xf32>
    %29 = vector.shape_cast %28 : vector<1x1x32x256xf32> to vector<32x256xf32>
    %cst_40 = arith.constant dense<0.000000e+00> : vector<32x256xf32>
    %30 = tpu.matmul %0, %29, %cst_40 {dimension_numbers = #tpu.dot_dimension_numbers<[1], [0], [0], [1], [0, 0, 1, 1], [], []>} : vector<32x32xf32>, vector<32x256xf32>, vector<32x256xf32> -> vector<32x256xf32>
    %c0_41 = arith.constant 0 : index
    %c10 = arith.constant 10 : index
    %c0_42 = arith.constant 0 : index
    %c0_43 = arith.constant 0 : index
    %31 = vector.load %arg2[%c0_41, %c10, %c0_42, %c0_43] : memref<1x16x32x256xf32, #tpu.memory_space<vmem>>, vector<1x1x32x256xf32>
    %32 = vector.shape_cast %31 : vector<1x1x32x256xf32> to vector<32x256xf32>
    %cst_44 = arith.constant dense<0.000000e+00> : vector<32x256xf32>
    %33 = tpu.matmul %0, %32, %cst_44 {dimension_numbers = #tpu.dot_dimension_numbers<[1], [0], [0], [1], [0, 0, 1, 1], [], []>} : vector<32x32xf32>, vector<32x256xf32>, vector<32x256xf32> -> vector<32x256xf32>
    %c0_45 = arith.constant 0 : index
    %c11 = arith.constant 11 : index
    %c0_46 = arith.constant 0 : index
    %c0_47 = arith.constant 0 : index
    %34 = vector.load %arg2[%c0_45, %c11, %c0_46, %c0_47] : memref<1x16x32x256xf32, #tpu.memory_space<vmem>>, vector<1x1x32x256xf32>
    %35 = vector.shape_cast %34 : vector<1x1x32x256xf32> to vector<32x256xf32>
    %cst_48 = arith.constant dense<0.000000e+00> : vector<32x256xf32>
    %36 = tpu.matmul %0, %35, %cst_48 {dimension_numbers = #tpu.dot_dimension_numbers<[1], [0], [0], [1], [0, 0, 1, 1], [], []>} : vector<32x32xf32>, vector<32x256xf32>, vector<32x256xf32> -> vector<32x256xf32>
    %c0_49 = arith.constant 0 : index
    %c12 = arith.constant 12 : index
    %c0_50 = arith.constant 0 : index
    %c0_51 = arith.constant 0 : index
    %37 = vector.load %arg2[%c0_49, %c12, %c0_50, %c0_51] : memref<1x16x32x256xf32, #tpu.memory_space<vmem>>, vector<1x1x32x256xf32>
    %38 = vector.shape_cast %37 : vector<1x1x32x256xf32> to vector<32x256xf32>
    %cst_52 = arith.constant dense<0.000000e+00> : vector<32x256xf32>
    %39 = tpu.matmul %0, %38, %cst_52 {dimension_numbers = #tpu.dot_dimension_numbers<[1], [0], [0], [1], [0, 0, 1, 1], [], []>} : vector<32x32xf32>, vector<32x256xf32>, vector<32x256xf32> -> vector<32x256xf32>
    %c0_53 = arith.constant 0 : index
    %c13 = arith.constant 13 : index
    %c0_54 = arith.constant 0 : index
    %c0_55 = arith.constant 0 : index
    %40 = vector.load %arg2[%c0_53, %c13, %c0_54, %c0_55] : memref<1x16x32x256xf32, #tpu.memory_space<vmem>>, vector<1x1x32x256xf32>
    %41 = vector.shape_cast %40 : vector<1x1x32x256xf32> to vector<32x256xf32>
    %cst_56 = arith.constant dense<0.000000e+00> : vector<32x256xf32>
    %42 = tpu.matmul %0, %41, %cst_56 {dimension_numbers = #tpu.dot_dimension_numbers<[1], [0], [0], [1], [0, 0, 1, 1], [], []>} : vector<32x32xf32>, vector<32x256xf32>, vector<32x256xf32> -> vector<32x256xf32>
    %c0_57 = arith.constant 0 : index
    %c14 = arith.constant 14 : index
    %c0_58 = arith.constant 0 : index
    %c0_59 = arith.constant 0 : index
    %43 = vector.load %arg2[%c0_57, %c14, %c0_58, %c0_59] : memref<1x16x32x256xf32, #tpu.memory_space<vmem>>, vector<1x1x32x256xf32>
    %44 = vector.shape_cast %43 : vector<1x1x32x256xf32> to vector<32x256xf32>
    %cst_60 = arith.constant dense<0.000000e+00> : vector<32x256xf32>
    %45 = tpu.matmul %0, %44, %cst_60 {dimension_numbers = #tpu.dot_dimension_numbers<[1], [0], [0], [1], [0, 0, 1, 1], [], []>} : vector<32x32xf32>, vector<32x256xf32>, vector<32x256xf32> -> vector<32x256xf32>
    %c0_61 = arith.constant 0 : index
    %c15 = arith.constant 15 : index
    %c0_62 = arith.constant 0 : index
    %c0_63 = arith.constant 0 : index
    %46 = vector.load %arg2[%c0_61, %c15, %c0_62, %c0_63] : memref<1x16x32x256xf32, #tpu.memory_space<vmem>>, vector<1x1x32x256xf32>
    %47 = vector.shape_cast %46 : vector<1x1x32x256xf32> to vector<32x256xf32>
    %cst_64 = arith.constant dense<0.000000e+00> : vector<32x256xf32>
    %48 = tpu.matmul %0, %47, %cst_64 {dimension_numbers = #tpu.dot_dimension_numbers<[1], [0], [0], [1], [0, 0, 1, 1], [], []>} : vector<32x32xf32>, vector<32x256xf32>, vector<32x256xf32> -> vector<32x256xf32>
    %49 = arith.maximumf %3, %6 : vector<32x256xf32>
    %50 = arith.maximumf %49, %9 : vector<32x256xf32>
    %51 = arith.maximumf %50, %12 : vector<32x256xf32>
    %52 = arith.maximumf %51, %15 : vector<32x256xf32>
    %53 = arith.maximumf %52, %18 : vector<32x256xf32>
    %54 = arith.maximumf %53, %21 : vector<32x256xf32>
    %55 = arith.maximumf %54, %24 : vector<32x256xf32>
    %56 = arith.maximumf %55, %27 : vector<32x256xf32>
    %57 = arith.maximumf %56, %30 : vector<32x256xf32>
    %58 = arith.maximumf %57, %33 : vector<32x256xf32>
    %59 = arith.maximumf %58, %36 : vector<32x256xf32>
    %60 = arith.maximumf %59, %39 : vector<32x256xf32>
    %61 = arith.maximumf %60, %42 : vector<32x256xf32>
    %62 = arith.maximumf %61, %45 : vector<32x256xf32>
    %63 = arith.maximumf %62, %48 : vector<32x256xf32>
    %64 = arith.subf %3, %63 : vector<32x256xf32>
    %65 = math.exp %64 : vector<32x256xf32>
    %c0_65 = arith.constant 0 : index
    %c0_66 = arith.constant 0 : index
    %c0_67 = arith.constant 0 : index
    %c0_68 = arith.constant 0 : index
    %66 = vector.load %arg2[%c0_65, %c0_66, %c0_67, %c0_68] : memref<1x16x32x256xf32, #tpu.memory_space<vmem>>, vector<1x1x32x256xf32>
    %67 = vector.shape_cast %66 : vector<1x1x32x256xf32> to vector<32x256xf32>
    %68 = arith.mulf %67, %65 : vector<32x256xf32>
    %69 = arith.subf %6, %63 : vector<32x256xf32>
    %70 = math.exp %69 : vector<32x256xf32>
    %c0_69 = arith.constant 0 : index
    %c1_70 = arith.constant 1 : index
    %c0_71 = arith.constant 0 : index
    %c0_72 = arith.constant 0 : index
    %71 = vector.load %arg2[%c0_69, %c1_70, %c0_71, %c0_72] : memref<1x16x32x256xf32, #tpu.memory_space<vmem>>, vector<1x1x32x256xf32>
    %72 = vector.shape_cast %71 : vector<1x1x32x256xf32> to vector<32x256xf32>
    %73 = arith.addf %65, %70 : vector<32x256xf32>
    %74 = arith.mulf %72, %70 : vector<32x256xf32>
    %75 = arith.addf %68, %74 : vector<32x256xf32>
    %76 = arith.subf %9, %63 : vector<32x256xf32>
    %77 = math.exp %76 : vector<32x256xf32>
    %c0_73 = arith.constant 0 : index
    %c2_74 = arith.constant 2 : index
    %c0_75 = arith.constant 0 : index
    %c0_76 = arith.constant 0 : index
    %78 = vector.load %arg2[%c0_73, %c2_74, %c0_75, %c0_76] : memref<1x16x32x256xf32, #tpu.memory_space<vmem>>, vector<1x1x32x256xf32>
    %79 = vector.shape_cast %78 : vector<1x1x32x256xf32> to vector<32x256xf32>
    %80 = arith.addf %73, %77 : vector<32x256xf32>
    %81 = arith.mulf %79, %77 : vector<32x256xf32>
    %82 = arith.addf %75, %81 : vector<32x256xf32>
    %83 = arith.subf %12, %63 : vector<32x256xf32>
    %84 = math.exp %83 : vector<32x256xf32>
    %c0_77 = arith.constant 0 : index
    %c3_78 = arith.constant 3 : index
    %c0_79 = arith.constant 0 : index
    %c0_80 = arith.constant 0 : index
    %85 = vector.load %arg2[%c0_77, %c3_78, %c0_79, %c0_80] : memref<1x16x32x256xf32, #tpu.memory_space<vmem>>, vector<1x1x32x256xf32>
    %86 = vector.shape_cast %85 : vector<1x1x32x256xf32> to vector<32x256xf32>
    %87 = arith.addf %80, %84 : vector<32x256xf32>
    %88 = arith.mulf %86, %84 : vector<32x256xf32>
    %89 = arith.addf %82, %88 : vector<32x256xf32>
    %90 = arith.subf %15, %63 : vector<32x256xf32>
    %91 = math.exp %90 : vector<32x256xf32>
    %c0_81 = arith.constant 0 : index
    %c4_82 = arith.constant 4 : index
    %c0_83 = arith.constant 0 : index
    %c0_84 = arith.constant 0 : index
    %92 = vector.load %arg2[%c0_81, %c4_82, %c0_83, %c0_84] : memref<1x16x32x256xf32, #tpu.memory_space<vmem>>, vector<1x1x32x256xf32>
    %93 = vector.shape_cast %92 : vector<1x1x32x256xf32> to vector<32x256xf32>
    %94 = arith.addf %87, %91 : vector<32x256xf32>
    %95 = arith.mulf %93, %91 : vector<32x256xf32>
    %96 = arith.addf %89, %95 : vector<32x256xf32>
    %97 = arith.subf %18, %63 : vector<32x256xf32>
    %98 = math.exp %97 : vector<32x256xf32>
    %c0_85 = arith.constant 0 : index
    %c5_86 = arith.constant 5 : index
    %c0_87 = arith.constant 0 : index
    %c0_88 = arith.constant 0 : index
    %99 = vector.load %arg2[%c0_85, %c5_86, %c0_87, %c0_88] : memref<1x16x32x256xf32, #tpu.memory_space<vmem>>, vector<1x1x32x256xf32>
    %100 = vector.shape_cast %99 : vector<1x1x32x256xf32> to vector<32x256xf32>
    %101 = arith.addf %94, %98 : vector<32x256xf32>
    %102 = arith.mulf %100, %98 : vector<32x256xf32>
    %103 = arith.addf %96, %102 : vector<32x256xf32>
    %104 = arith.subf %21, %63 : vector<32x256xf32>
    %105 = math.exp %104 : vector<32x256xf32>
    %c0_89 = arith.constant 0 : index
    %c6_90 = arith.constant 6 : index
    %c0_91 = arith.constant 0 : index
    %c0_92 = arith.constant 0 : index
    %106 = vector.load %arg2[%c0_89, %c6_90, %c0_91, %c0_92] : memref<1x16x32x256xf32, #tpu.memory_space<vmem>>, vector<1x1x32x256xf32>
    %107 = vector.shape_cast %106 : vector<1x1x32x256xf32> to vector<32x256xf32>
    %108 = arith.addf %101, %105 : vector<32x256xf32>
    %109 = arith.mulf %107, %105 : vector<32x256xf32>
    %110 = arith.addf %103, %109 : vector<32x256xf32>
    %111 = arith.subf %24, %63 : vector<32x256xf32>
    %112 = math.exp %111 : vector<32x256xf32>
    %c0_93 = arith.constant 0 : index
    %c7_94 = arith.constant 7 : index
    %c0_95 = arith.constant 0 : index
    %c0_96 = arith.constant 0 : index
    %113 = vector.load %arg2[%c0_93, %c7_94, %c0_95, %c0_96] : memref<1x16x32x256xf32, #tpu.memory_space<vmem>>, vector<1x1x32x256xf32>
    %114 = vector.shape_cast %113 : vector<1x1x32x256xf32> to vector<32x256xf32>
    %115 = arith.addf %108, %112 : vector<32x256xf32>
    %116 = arith.mulf %114, %112 : vector<32x256xf32>
    %117 = arith.addf %110, %116 : vector<32x256xf32>
    %118 = arith.subf %27, %63 : vector<32x256xf32>
    %119 = math.exp %118 : vector<32x256xf32>
    %c0_97 = arith.constant 0 : index
    %c8_98 = arith.constant 8 : index
    %c0_99 = arith.constant 0 : index
    %c0_100 = arith.constant 0 : index
    %120 = vector.load %arg2[%c0_97, %c8_98, %c0_99, %c0_100] : memref<1x16x32x256xf32, #tpu.memory_space<vmem>>, vector<1x1x32x256xf32>
    %121 = vector.shape_cast %120 : vector<1x1x32x256xf32> to vector<32x256xf32>
    %122 = arith.addf %115, %119 : vector<32x256xf32>
    %123 = arith.mulf %121, %119 : vector<32x256xf32>
    %124 = arith.addf %117, %123 : vector<32x256xf32>
    %125 = arith.subf %30, %63 : vector<32x256xf32>
    %126 = math.exp %125 : vector<32x256xf32>
    %c0_101 = arith.constant 0 : index
    %c9_102 = arith.constant 9 : index
    %c0_103 = arith.constant 0 : index
    %c0_104 = arith.constant 0 : index
    %127 = vector.load %arg2[%c0_101, %c9_102, %c0_103, %c0_104] : memref<1x16x32x256xf32, #tpu.memory_space<vmem>>, vector<1x1x32x256xf32>
    %128 = vector.shape_cast %127 : vector<1x1x32x256xf32> to vector<32x256xf32>
    %129 = arith.addf %122, %126 : vector<32x256xf32>
    %130 = arith.mulf %128, %126 : vector<32x256xf32>
    %131 = arith.addf %124, %130 : vector<32x256xf32>
    %132 = arith.subf %33, %63 : vector<32x256xf32>
    %133 = math.exp %132 : vector<32x256xf32>
    %c0_105 = arith.constant 0 : index
    %c10_106 = arith.constant 10 : index
    %c0_107 = arith.constant 0 : index
    %c0_108 = arith.constant 0 : index
    %134 = vector.load %arg2[%c0_105, %c10_106, %c0_107, %c0_108] : memref<1x16x32x256xf32, #tpu.memory_space<vmem>>, vector<1x1x32x256xf32>
    %135 = vector.shape_cast %134 : vector<1x1x32x256xf32> to vector<32x256xf32>
    %136 = arith.addf %129, %133 : vector<32x256xf32>
    %137 = arith.mulf %135, %133 : vector<32x256xf32>
    %138 = arith.addf %131, %137 : vector<32x256xf32>
    %139 = arith.subf %36, %63 : vector<32x256xf32>
    %140 = math.exp %139 : vector<32x256xf32>
    %c0_109 = arith.constant 0 : index
    %c11_110 = arith.constant 11 : index
    %c0_111 = arith.constant 0 : index
    %c0_112 = arith.constant 0 : index
    %141 = vector.load %arg2[%c0_109, %c11_110, %c0_111, %c0_112] : memref<1x16x32x256xf32, #tpu.memory_space<vmem>>, vector<1x1x32x256xf32>
    %142 = vector.shape_cast %141 : vector<1x1x32x256xf32> to vector<32x256xf32>
    %143 = arith.addf %136, %140 : vector<32x256xf32>
    %144 = arith.mulf %142, %140 : vector<32x256xf32>
    %145 = arith.addf %138, %144 : vector<32x256xf32>
    %146 = arith.subf %39, %63 : vector<32x256xf32>
    %147 = math.exp %146 : vector<32x256xf32>
    %c0_113 = arith.constant 0 : index
    %c12_114 = arith.constant 12 : index
    %c0_115 = arith.constant 0 : index
    %c0_116 = arith.constant 0 : index
    %148 = vector.load %arg2[%c0_113, %c12_114, %c0_115, %c0_116] : memref<1x16x32x256xf32, #tpu.memory_space<vmem>>, vector<1x1x32x256xf32>
    %149 = vector.shape_cast %148 : vector<1x1x32x256xf32> to vector<32x256xf32>
    %150 = arith.addf %143, %147 : vector<32x256xf32>
    %151 = arith.mulf %149, %147 : vector<32x256xf32>
    %152 = arith.addf %145, %151 : vector<32x256xf32>
    %153 = arith.subf %42, %63 : vector<32x256xf32>
    %154 = math.exp %153 : vector<32x256xf32>
    %c0_117 = arith.constant 0 : index
    %c13_118 = arith.constant 13 : index
    %c0_119 = arith.constant 0 : index
    %c0_120 = arith.constant 0 : index
    %155 = vector.load %arg2[%c0_117, %c13_118, %c0_119, %c0_120] : memref<1x16x32x256xf32, #tpu.memory_space<vmem>>, vector<1x1x32x256xf32>
    %156 = vector.shape_cast %155 : vector<1x1x32x256xf32> to vector<32x256xf32>
    %157 = arith.addf %150, %154 : vector<32x256xf32>
    %158 = arith.mulf %156, %154 : vector<32x256xf32>
    %159 = arith.addf %152, %158 : vector<32x256xf32>
    %160 = arith.subf %45, %63 : vector<32x256xf32>
    %161 = math.exp %160 : vector<32x256xf32>
    %c0_121 = arith.constant 0 : index
    %c14_122 = arith.constant 14 : index
    %c0_123 = arith.constant 0 : index
    %c0_124 = arith.constant 0 : index
    %162 = vector.load %arg2[%c0_121, %c14_122, %c0_123, %c0_124] : memref<1x16x32x256xf32, #tpu.memory_space<vmem>>, vector<1x1x32x256xf32>
    %163 = vector.shape_cast %162 : vector<1x1x32x256xf32> to vector<32x256xf32>
    %164 = arith.addf %157, %161 : vector<32x256xf32>
    %165 = arith.mulf %163, %161 : vector<32x256xf32>
    %166 = arith.addf %159, %165 : vector<32x256xf32>
    %167 = arith.subf %48, %63 : vector<32x256xf32>
    %168 = math.exp %167 : vector<32x256xf32>
    %c0_125 = arith.constant 0 : index
    %c15_126 = arith.constant 15 : index
    %c0_127 = arith.constant 0 : index
    %c0_128 = arith.constant 0 : index
    %169 = vector.load %arg2[%c0_125, %c15_126, %c0_127, %c0_128] : memref<1x16x32x256xf32, #tpu.memory_space<vmem>>, vector<1x1x32x256xf32>
    %170 = vector.shape_cast %169 : vector<1x1x32x256xf32> to vector<32x256xf32>
    %171 = arith.addf %164, %168 : vector<32x256xf32>
    %172 = arith.mulf %170, %168 : vector<32x256xf32>
    %173 = arith.addf %166, %172 : vector<32x256xf32>
    %174 = tpu.reciprocal %171 {approx = true} : vector<32x256xf32> -> vector<32x256xf32>
    %175 = arith.mulf %173, %174 : vector<32x256xf32>
    %c0_129 = arith.constant 0 : index
    %c0_130 = arith.constant 0 : index
    %176 = vector.load %arg4[%c0_129, %c0_130] : memref<64x32xf32, #tpu.memory_space<vmem>>, vector<64x32xf32>
    %cst_131 = arith.constant dense<0.000000e+00> : vector<64x256xf32>
    %177 = tpu.matmul %176, %175, %cst_131 {dimension_numbers = #tpu.dot_dimension_numbers<[1], [0], [0], [1], [0, 0, 1, 1], [], []>} : vector<64x32xf32>, vector<32x256xf32>, vector<64x256xf32> -> vector<64x256xf32>
    %c0_132 = arith.constant 0 : index
    %c0_133 = arith.constant 0 : index
    %178 = vector.load %arg5[%c0_132, %c0_133] : memref<64x1xf32, #tpu.memory_space<vmem>>, vector<64x1xf32>
    %179 = vector.broadcast %178 : vector<64x1xf32> to vector<64x256xf32>
    %180 = arith.addf %177, %179 : vector<64x256xf32>
    %cst_134 = arith.constant 0.000000e+00 : f32
    %181 = vector.broadcast %cst_134 : f32 to vector<64x256xf32>
    %182 = arith.maximumf %180, %181 : vector<64x256xf32>
    %c0_135 = arith.constant 0 : index
    %c0_136 = arith.constant 0 : index
    %c0_137 = arith.constant 0 : index
    %183 = vector.load %arg6[%c0_135, %c0_136, %c0_137] : memref<1x64x256xf32, #tpu.memory_space<vmem>>, vector<1x64x256xf32>
    %184 = vector.shape_cast %183 : vector<1x64x256xf32> to vector<64x256xf32>
    %185 = vector.shape_cast %182 : vector<64x256xf32> to vector<1x64x256xf32>
    tpu.vector_store %arg6[%c0_135, %c0_136, %c0_137], %185 {strides = array<i32>} : memref<1x64x256xf32, #tpu.memory_space<vmem>>, vector<1x64x256xf32>,
    return
  }
  func.func @transform_0(%arg0: i32, %arg1: i32) -> (i32, i32, i32, i32) {
    %c0_i32 = arith.constant 0 : i32
    %c0_i32_0 = arith.constant 0 : i32
    %c0_i32_1 = arith.constant 0 : i32
    return %arg0, %c0_i32, %c0_i32_0, %arg1 : i32, i32, i32, i32
  }
  func.func @transform_1(%arg0: i32, %arg1: i32) -> (i32, i32) {
    %c0_i32 = arith.constant 0 : i32
    %c0_i32_0 = arith.constant 0 : i32
    %c0_i32_1 = arith.constant 0 : i32
    return %c0_i32, %c0_i32_0 : i32, i32
  }
  func.func @transform_2(%arg0: i32, %arg1: i32) -> (i32, i32) {
    %c0_i32 = arith.constant 0 : i32
    %c0_i32_0 = arith.constant 0 : i32
    %c0_i32_1 = arith.constant 0 : i32
    return %c0_i32, %c0_i32_0 : i32, i32
  }
  func.func @transform_3(%arg0: i32, %arg1: i32) -> (i32, i32) {
    %c0_i32 = arith.constant 0 : i32
    %c0_i32_0 = arith.constant 0 : i32
    %c0_i32_1 = arith.constant 0 : i32
    return %c0_i32, %c0_i32_0 : i32, i32
  }
  func.func @transform_4(%arg0: i32, %arg1: i32) -> (i32, i32, i32) {
    %c0_i32 = arith.constant 0 : i32
    %c0_i32_0 = arith.constant 0 : i32
    return %arg0, %c0_i32, %arg1 : i32, i32, i32
  }
}

</mosaic_0001>

<llo_original>
// kernel: att_pooling.2
$region0: #{att_pooling.2}
  #allocation0 [shape = 'u32[]', space=smem, size = 0x4, offset = 0x4, fixed_abs, tag = 'smem constant byte address 0x4 - core index']
  #allocation1 [shape = 'u32[144,128]{1,0:T(1,128)}', space=vmem, size = 0x12000, scoped, tag = 'internal scratch']
  %s0 = inlined_call_operand.vmem [shape: f32[32,32], index: 0, kind: input, shape index: {}]
  %s1 = inlined_call_operand.vmem [shape: f32[64,32], index: 1, kind: input, shape index: {}]
  %s2 = inlined_call_operand.vmem [shape: f32[64,1], index: 2, kind: input, shape index: {}]
  %s3 = inlined_call_operand.vmem [shape: f32[2,32,512,16], index: 3, kind: input, shape index: {}]
  %s4 = inlined_call_operand.vmem [shape: f32[2,64,512], index: 4, kind: output, shape index: {}]
  %s5 = sld [smem:[#allocation0]]
  $region68: #{att_pooling.2} parent=0
    _
  %s7 = ssub.s32 1, %s5
  %s8 = scalar_select 0, %s7, %s5
  $region1: #{att_pooling.2} parent=0
    #allocation2 [shape = 'u8[131072]{0}', space=vmem, size = 0x20000, scoped, tag = 'output window, operand 0']
    loop: start=0, step=1, limit=6
    $region2: #{att_pooling.2} parent=1 // loop_pre_header
      _
    $region3: #{att_pooling.2} parent=1 // loop_header
      %s10 = sphi 0, %s14
      %p11 = scmp.ge.s32.totalorder %s10, 6
      %s17 = sphi 0, %s29
      %s18 = sphi 0, %s25
      %s19 = sphi 0, %s17
      %s20 = sphi 0, %s18
      %s21 = sphi 0, %s19
      %s22 = sphi 0, %s20
      %s34 = sphi 0, %s36
      %s37 = sphi 0, %s34
      %s38 = sphi 0, %s37
      %s54 = sphi 0, %s38
      %s58 = sphi 0, %s58
      %s60 = sphi 0, %s58
      %s61 = sphi 0, %s60
      %s75 = sphi 0, %s61
      %s79 = sphi 0, %s79
      %s81 = sphi 0, %s79
      %s82 = sphi 0, %s81
      %s96 = sphi 0, %s82
      %s100 = sphi 0, %s100
      %s102 = sphi 0, %s100
      %s103 = sphi 0, %s102
      %s117 = sphi 0, %s103
      %s125 = sphi 0, %s127
      %s128 = sphi 0, %s125
      %s129 = sphi 0, %s128
      %s145 = sphi 0, %s129
    $region4: #{att_pooling.2} parent=1 // loop_header_branch
      %13 = sbr.rel (%p11) target = $region8
    $region5: #{att_pooling.2} parent=1 // loop_body
      %s15 = ssub.s32 %s10, 1
      %s16 = ssub.s32 %s10, 2
      %s23 = sadd.s32 1, %s18
      %p24 = scmp.ge.s32.totalorder %s23, 2
      %s25 = scalar_select %p24, 0, %s23
      %s26 = sadd.s32 1, %s17
      %s27 = scalar_select %p24, %s26, %s17
      %p28 = scmp.ge.s32.totalorder %s27, 2
      %s29 = scalar_select %p28, 0, %s27
      %s30 = ssub.s32 %s17, %s29
      %s31 = ssub.s32 %s18, %s25
      %s32 = sor.u32 %s30, %s31
      %p33 = scmp.eq.s32.totalorder %s32, 0
      %s35 = sadd.s32 %s34, 1
      %s36 = scalar_select %p33, %s34, %s35
      %p39 = pneg %p33
      %p40 = scmp.eq.s32.totalorder %s10, 3
      %p41 = por %p39, %p40
      %p42 = scmp.ne.s32.totalorder %s34, %s37
      %p43 = scmp.eq.s32.totalorder %s10, 0
      %p44 = por %p42, %p43
      %p45 = scmp.ne.s32.totalorder %s34, %s37
      %p46 = scmp.eq.s32.totalorder %s15, 3
      %p47 = por %p45, %p46
      %p48 = scmp.ne.s32.totalorder %s37, %s38
      %p49 = scmp.eq.s32.totalorder %s15, 0
      %p50 = por %p48, %p49
      %p51 = scmp.ne.s32.totalorder %s37, %s38
      %p52 = scmp.eq.s32.totalorder %s16, 3
      %p53 = por %p51, %p52
      %p55 = scmp.ne.s32.totalorder %s38, %s54
      %p56 = scmp.eq.s32.totalorder %s16, 0
      %p57 = por %p55, %p56
      %s59 = sadd.s32 %s58, 1
      %p62 = scmp.eq.s32.totalorder %s10, 3
      %p63 = scmp.ne.s32.totalorder %s58, %s60
      %p64 = scmp.eq.s32.totalorder %s10, 0
      %p65 = por %p63, %p64
      %p66 = scmp.ne.s32.totalorder %s58, %s60
      %p67 = scmp.eq.s32.totalorder %s15, 3
      %p68 = por %p66, %p67
      %p69 = scmp.ne.s32.totalorder %s60, %s61
      %p70 = scmp.eq.s32.totalorder %s15, 0
      %p71 = por %p69, %p70
      %p72 = scmp.ne.s32.totalorder %s60, %s61
      %p73 = scmp.eq.s32.totalorder %s16, 3
      %p74 = por %p72, %p73
      %p76 = scmp.ne.s32.totalorder %s61, %s75
      %p77 = scmp.eq.s32.totalorder %s16, 0
      %p78 = por %p76, %p77
      %s80 = sadd.s32 %s79, 1
      %p83 = scmp.eq.s32.totalorder %s10, 3
      %p84 = scmp.ne.s32.totalorder %s79, %s81
      %p85 = scmp.eq.s32.totalorder %s10, 0
      %p86 = por %p84, %p85
      %p87 = scmp.ne.s32.totalorder %s79, %s81
      %p88 = scmp.eq.s32.totalorder %s15, 3
      %p89 = por %p87, %p88
      %p90 = scmp.ne.s32.totalorder %s81, %s82
      %p91 = scmp.eq.s32.totalorder %s15, 0
      %p92 = por %p90, %p91
      %p93 = scmp.ne.s32.totalorder %s81, %s82
      %p94 = scmp.eq.s32.totalorder %s16, 3
      %p95 = por %p93, %p94
      %p97 = scmp.ne.s32.totalorder %s82, %s96
      %p98 = scmp.eq.s32.totalorder %s16, 0
      %p99 = por %p97, %p98
      %s101 = sadd.s32 %s100, 1
      %p104 = scmp.eq.s32.totalorder %s10, 3
      %p105 = scmp.ne.s32.totalorder %s100, %s102
      %p106 = scmp.eq.s32.totalorder %s10, 0
      %p107 = por %p105, %p106
      %p108 = scmp.ne.s32.totalorder %s100, %s102
      %p109 = scmp.eq.s32.totalorder %s15, 3
      %p110 = por %p108, %p109
      %p111 = scmp.ne.s32.totalorder %s102, %s103
      %p112 = scmp.eq.s32.totalorder %s15, 0
      %p113 = por %p111, %p112
      %p114 = scmp.ne.s32.totalorder %s102, %s103
      %p115 = scmp.eq.s32.totalorder %s16, 3
      %p116 = por %p114, %p115
      %p118 = scmp.ne.s32.totalorder %s103, %s117
      %p119 = scmp.eq.s32.totalorder %s16, 0
      %p120 = por %p118, %p119
      %s121 = ssub.s32 %s17, %s29
      %s122 = ssub.s32 %s18, %s25
      %s123 = sor.u32 %s121, %s122
      %p124 = scmp.eq.s32.totalorder %s123, 0
      %s126 = sadd.s32 %s125, 1
      %s127 = scalar_select %p124, %s125, %s126
      %p130 = pneg %p124
      %p131 = scmp.eq.s32.totalorder %s10, 3
      %p132 = por %p130, %p131
      %p133 = scmp.ne.s32.totalorder %s125, %s128
      %p134 = scmp.eq.s32.totalorder %s10, 0
      %p135 = por %p133, %p134
      %p136 = scmp.ne.s32.totalorder %s125, %s128
      %p137 = scmp.eq.s32.totalorder %s15, 3
      %p138 = por %p136, %p137
      %p139 = scmp.ne.s32.totalorder %s128, %s129
      %p140 = scmp.eq.s32.totalorder %s15, 0
      %p141 = por %p139, %p140
      %p142 = scmp.ne.s32.totalorder %s128, %s129
      %p143 = scmp.eq.s32.totalorder %s16, 3
      %p144 = por %p142, %p143
      %p146 = scmp.ne.s32.totalorder %s129, %s145
      %p147 = scmp.eq.s32.totalorder %s16, 0
      %p148 = por %p146, %p147
      %p149 = scmp.le.s32.totalorder 1, %s10
      %p150 = scmp.lt.s32.totalorder %s10, 5
      %p151 = pnand %p149, %p150
      %p152 = pneg %p151
      // Predicated region
      $region9: #{att_pooling.2} parent=5 // pred_check
        _
      $region10: #{att_pooling.2} parent=5 // pred_check_branch
        %154 = sbr.rel (%p151) target = $region12
      $region11: #{att_pooling.2} parent=5 // pred_region
        %s155 = ssub.s32 %s10, 1
        // Predicated region
        $region13: #{att_pooling.2} parent=11 // pred_check
          %p156 = pneg %p71
        $region14: #{att_pooling.2} parent=11 // pred_check_branch
          %158 = sbr.rel (%p156) target = $region16
        $region15: #{att_pooling.2} parent=11 // pred_region
          _
        $region16: #{att_pooling.2} parent=11 // pred_fallthru
          _
        // Predicated region
        $region17: #{att_pooling.2} parent=11 // pred_check
          %p159 = pneg %p92
        $region18: #{att_pooling.2} parent=11 // pred_check_branch
          %161 = sbr.rel (%p159) target = $region20
        $region19: #{att_pooling.2} parent=11 // pred_region
          _
        $region20: #{att_pooling.2} parent=11 // pred_fallthru
          _
        // Predicated region
        $region21: #{att_pooling.2} parent=11 // pred_check
          %p162 = pneg %p113
        $region22: #{att_pooling.2} parent=11 // pred_check_branch
          %164 = sbr.rel (%p162) target = $region24
        $region23: #{att_pooling.2} parent=11 // pred_region
          _
        $region24: #{att_pooling.2} parent=11 // pred_fallthru
          _
      $region12: #{att_pooling.2} parent=5 // pred_fallthru
        _
      %p165 = scmp.lt.s32.totalorder %s10, 4
      // Predicated region
      $region25: #{att_pooling.2} parent=5 // pred_check
        %p166 = pneg %p165
      $region26: #{att_pooling.2} parent=5 // pred_check_branch
        %168 = sbr.rel (%p166) target = $region28
      $region27: #{att_pooling.2} parent=5 // pred_region
        // Predicated region
        $region29: #{att_pooling.2} parent=27 // pred_check
          %p169 = pneg %p44
        $region30: #{att_pooling.2} parent=27 // pred_check_branch
          %171 = sbr.rel (%p169) target = $region32
        $region31: #{att_pooling.2} parent=27 // pred_region
          %s172 = smul.u32 2, %s18
          %p173 = scmp.lt.s32.totalorder %s17, 1
          %s174 = scalar_select %p173, %s17, 1
          %p175 = scmp.lt.s32.totalorder %s172, 3
          %s176 = scalar_select %p175, %s172, 3
          %s177 = smul.addr %s174, 256
          %s178 = sadd.s32 %s176, %s177
          %s179 = smul.addr %s178, 8
          %s180 = scalar_lea.vmem %s3, %s179
          %s181 = smul.u32 2, %s18
        $region32: #{att_pooling.2} parent=27 // pred_fallthru
          _
      $region28: #{att_pooling.2} parent=5 // pred_fallthru
        _
      %p182 = scmp.le.s32.totalorder 1, %s10
      %p183 = scmp.lt.s32.totalorder %s10, 5
      %p184 = pnand %p182, %p183
      %p185 = pneg %p184
      // Predicated region
      $region33: #{att_pooling.2} parent=5 // pred_check
        _
      $region34: #{att_pooling.2} parent=5 // pred_check_branch
        %187 = sbr.rel (%p184) target = $region36
      $region35: #{att_pooling.2} parent=5 // pred_region
        #allocation3 [shape = 'u8[524288]{0}', space=vmem, size = 0x80000, dematerialized = true, scoped, tag = 'FusionAdapter Buffer %fusion.1 = f32[2,16,32,512]{3,2,1,0:T(8,128)} fusion(%param_3.1), kind=kLoop, calls=%fused_computation.1.clone, metadata={op_name="jit(att_pooling)/transpose" stack_frame_id=8}']
        %s188 = ssub.s32 %s10, 1
        %s189 = smul.u32 2, %s20
        %p190 = scmp.lt.s32.totalorder %s19, 1
        %s191 = scalar_select %p190, %s19, 1
        %p192 = scmp.lt.s32.totalorder %s189, 3
        %s193 = scalar_select %p192, %s189, 3
        %s194 = smul.addr %s191, 256
        %s195 = sadd.s32 %s193, %s194
        %s196 = smul.addr %s195, 8
        %s197 = scalar_lea.vmem %s3, %s196
        %p198 = pneg %p50
        %p199 = pneg %p47
        %p200 = pneg %p71
        %p201 = pneg %p68
        %p202 = pneg %p92
        %p203 = pneg %p89
        %p204 = pneg %p113
        %p205 = pneg %p110
        %p206 = pneg %p141
        %p207 = pneg %p138
        %s208 = sand.u32 %s128, 1
        %s209 = sand.u32 %s128, 1
        %s210 = smul.addr %s209, 128
        %s211 = scalar_lea.vmem [#allocation2], %s210
        %s212 = smul.u32 2, %s20
        %p213 = scmp.lt.s32.totalorder %s19, 1
        %s214 = scalar_select %p213, %s19, 1
        %p215 = scmp.lt.s32.totalorder %s212, 3
        %s216 = scalar_select %p215, %s212, 3
        %s217 = smul.addr %s214, 256
        %s218 = sadd.s32 %s216, %s217
        %s219 = smul.addr %s218, 8
        %s220 = scalar_lea.vmem %s3, %s219
        %s221 = smul.u32 2, %s20
        %s222 = smul.u32 2, %s20
        %v223 = vld [vmem:[%s220] sm:$0xff]
        %s225 = ssub.s32 256, 1
        %226 = vst [vmem:[#allocation3] sm:%s225] %v223
        %s227 = scalar_lea.vmem %s220, 8
        %v228 = vld [vmem:[%s227] sm:$0xff]
        %s229 = scalar_lea.vmem [#allocation3], 8
        %s231 = ssub.s32 256, 1
        %232 = vst [vmem:[%s229] sm:%s231] %v228
        %s233 = scalar_lea.vmem %s220, 32
        %v234 = vld [vmem:[%s233] sm:$0xff]
        %s235 = scalar_lea.vmem [#allocation3], 16
        %s237 = ssub.s32 256, 1
        %238 = vst [vmem:[%s235] sm:%s237] %v234
        %s239 = scalar_lea.vmem %s220, 40
        %v240 = vld [vmem:[%s239] sm:$0xff]
        %s241 = scalar_lea.vmem [#allocation3], 24
        %s243 = ssub.s32 256, 1
        %244 = vst [vmem:[%s241] sm:%s243] %v240
        %s245 = scalar_lea.vmem %s220, 64
        %v246 = vld [vmem:[%s245] sm:$0xff]
        %s247 = scalar_lea.vmem [#allocation3], 32
        %s249 = ssub.s32 256, 1
        %250 = vst [vmem:[%s247] sm:%s249] %v246
        %s251 = scalar_lea.vmem %s220, 72
        %v252 = vld [vmem:[%s251] sm:$0xff]
        %s253 = scalar_lea.vmem [#allocation3], 40
        %s255 = ssub.s32 256, 1
        %256 = vst [vmem:[%s253] sm:%s255] %v252
        %s257 = scalar_lea.vmem %s220, 96
        %v258 = vld [vmem:[%s257] sm:$0xff]
        %s259 = scalar_lea.vmem [#allocation3], 48
        %s261 = ssub.s32 256, 1
        %262 = vst [vmem:[%s259] sm:%s261] %v258
        %s263 = scalar_lea.vmem %s220, 104
        %v264 = vld [vmem:[%s263] sm:$0xff]
        %s265 = scalar_lea.vmem [#allocation3], 56
        %s267 = ssub.s32 256, 1
        %268 = vst [vmem:[%s265] sm:%s267] %v264
        %s269 = scalar_lea.vmem %s220, 128
        %v270 = vld [vmem:[%s269] sm:$0xff]
        %s271 = scalar_lea.vmem [#allocation3], 64
        %s273 = ssub.s32 256, 1
        %274 = vst [vmem:[%s271] sm:%s273] %v270
        %s275 = scalar_lea.vmem %s220, 136
        %v276 = vld [vmem:[%s275] sm:$0xff]
        %s277 = scalar_lea.vmem [#allocation3], 72
        %s279 = ssub.s32 256, 1
        %280 = vst [vmem:[%s277] sm:%s279] %v276
        %s281 = scalar_lea.vmem %s220, 160
        %v282 = vld [vmem:[%s281] sm:$0xff]
        %s283 = scalar_lea.vmem [#allocation3], 80
        %s285 = ssub.s32 256, 1
        %286 = vst [vmem:[%s283] sm:%s285] %v282
        %s287 = scalar_lea.vmem %s220, 168
        %v288 = vld [vmem:[%s287] sm:$0xff]
        %s289 = scalar_lea.vmem [#allocation3], 88
        %s291 = ssub.s32 256, 1
        %292 = vst [vmem:[%s289] sm:%s291] %v288
        %s293 = scalar_lea.vmem %s220, 192
        %v294 = vld [vmem:[%s293] sm:$0xff]
        %s295 = scalar_lea.vmem [#allocation3], 96
        %s297 = ssub.s32 256, 1
        %298 = vst [vmem:[%s295] sm:%s297] %v294
        %s299 = scalar_lea.vmem %s220, 200
        %v300 = vld [vmem:[%s299] sm:$0xff]
        %s301 = scalar_lea.vmem [#allocation3], 104
        %s303 = ssub.s32 256, 1
        %304 = vst [vmem:[%s301] sm:%s303] %v300
        %s305 = scalar_lea.vmem %s220, 224
        %v306 = vld [vmem:[%s305] sm:$0xff]
        %s307 = scalar_lea.vmem [#allocation3], 112
        %s309 = ssub.s32 256, 1
        %310 = vst [vmem:[%s307] sm:%s309] %v306
        %s311 = scalar_lea.vmem %s220, 232
        %v312 = vld [vmem:[%s311] sm:$0xff]
        %s313 = scalar_lea.vmem [#allocation3], 120
        %s315 = ssub.s32 256, 1
        %316 = vst [vmem:[%s313] sm:%s315] %v312
        %s317 = scalar_lea.vmem %s220, 256
        %v318 = vld [vmem:[%s317] sm:$0xff]
        %s319 = scalar_lea.vmem [#allocation3], 128
        %s321 = ssub.s32 256, 1
        %322 = vst [vmem:[%s319] sm:%s321] %v318
        %s323 = scalar_lea.vmem %s220, 264
        %v324 = vld [vmem:[%s323] sm:$0xff]
        %s325 = scalar_lea.vmem [#allocation3], 136
        %s327 = ssub.s32 256, 1
        %328 = vst [vmem:[%s325] sm:%s327] %v324
        %s329 = scalar_lea.vmem %s220, 288
        %v330 = vld [vmem:[%s329] sm:$0xff]
        %s331 = scalar_lea.vmem [#allocation3], 144
        %s333 = ssub.s32 256, 1
        %334 = vst [vmem:[%s331] sm:%s333] %v330
        %s335 = scalar_lea.vmem %s220, 296
        %v336 = vld [vmem:[%s335] sm:$0xff]
        %s337 = scalar_lea.vmem [#allocation3], 152
        %s339 = ssub.s32 256, 1
        %340 = vst [vmem:[%s337] sm:%s339] %v336
        %s341 = scalar_lea.vmem %s220, 320
        %v342 = vld [vmem:[%s341] sm:$0xff]
        %s343 = scalar_lea.vmem [#allocation3], 160
        %s345 = ssub.s32 256, 1
        %346 = vst [vmem:[%s343] sm:%s345] %v342
        %s347 = scalar_lea.vmem %s220, 328
        %v348 = vld [vmem:[%s347] sm:$0xff]
        %s349 = scalar_lea.vmem [#allocation3], 168
        %s351 = ssub.s32 256, 1
        %352 = vst [vmem:[%s349] sm:%s351] %v348
        %s353 = scalar_lea.vmem %s220, 352
        %v354 = vld [vmem:[%s353] sm:$0xff]
        %s355 = scalar_lea.vmem [#allocation3], 176
        %s357 = ssub.s32 256, 1
        %358 = vst [vmem:[%s355] sm:%s357] %v354
        %s359 = scalar_lea.vmem %s220, 360
        %v360 = vld [vmem:[%s359] sm:$0xff]
        %s361 = scalar_lea.vmem [#allocation3], 184
        %s363 = ssub.s32 256, 1
        %364 = vst [vmem:[%s361] sm:%s363] %v360
        %s365 = scalar_lea.vmem %s220, 384
        %v366 = vld [vmem:[%s365] sm:$0xff]
        %s367 = scalar_lea.vmem [#allocation3], 192
        %s369 = ssub.s32 256, 1
        %370 = vst [vmem:[%s367] sm:%s369] %v366
        %s371 = scalar_lea.vmem %s220, 392
        %v372 = vld [vmem:[%s371] sm:$0xff]
        %s373 = scalar_lea.vmem [#allocation3], 200
        %s375 = ssub.s32 256, 1
        %376 = vst [vmem:[%s373] sm:%s375] %v372
        %s377 = scalar_lea.vmem %s220, 416
        %v378 = vld [vmem:[%s377] sm:$0xff]
        %s379 = scalar_lea.vmem [#allocation3], 208
        %s381 = ssub.s32 256, 1
        %382 = vst [vmem:[%s379] sm:%s381] %v378
        %s383 = scalar_lea.vmem %s220, 424
        %v384 = vld [vmem:[%s383] sm:$0xff]
        %s385 = scalar_lea.vmem [#allocation3], 216
        %s387 = ssub.s32 256, 1
        %388 = vst [vmem:[%s385] sm:%s387] %v384
        %s389 = scalar_lea.vmem %s220, 448
        %v390 = vld [vmem:[%s389] sm:$0xff]
        %s391 = scalar_lea.vmem [#allocation3], 224
        %s393 = ssub.s32 256, 1
        %394 = vst [vmem:[%s391] sm:%s393] %v390
        %s395 = scalar_lea.vmem %s220, 456
        %v396 = vld [vmem:[%s395] sm:$0xff]
        %s397 = scalar_lea.vmem [#allocation3], 232
        %s399 = ssub.s32 256, 1
        %400 = vst [vmem:[%s397] sm:%s399] %v396
        %s401 = scalar_lea.vmem %s220, 480
        %v402 = vld [vmem:[%s401] sm:$0xff]
        %s403 = scalar_lea.vmem [#allocation3], 240
        %s405 = ssub.s32 256, 1
        %406 = vst [vmem:[%s403] sm:%s405] %v402
        %s407 = scalar_lea.vmem %s220, 488
        %v408 = vld [vmem:[%s407] sm:$0xff]
        %s409 = scalar_lea.vmem [#allocation3], 248
        %s411 = ssub.s32 256, 1
        %412 = vst [vmem:[%s409] sm:%s411] %v408
        %s413 = scalar_lea.vmem %s220, 512
        %v414 = vld [vmem:[%s413] sm:$0xff]
        %s415 = scalar_lea.vmem [#allocation3], 256
        %s417 = ssub.s32 256, 1
        %418 = vst [vmem:[%s415] sm:%s417] %v414
        %s419 = scalar_lea.vmem %s220, 520
        %v420 = vld [vmem:[%s419] sm:$0xff]
        %s421 = scalar_lea.vmem [#allocation3], 264
        %s423 = ssub.s32 256, 1
        %424 = vst [vmem:[%s421] sm:%s423] %v420
        %s425 = scalar_lea.vmem %s220, 544
        %v426 = vld [vmem:[%s425] sm:$0xff]
        %s427 = scalar_lea.vmem [#allocation3], 272
        %s429 = ssub.s32 256, 1
        %430 = vst [vmem:[%s427] sm:%s429] %v426
        %s431 = scalar_lea.vmem %s220, 552
        %v432 = vld [vmem:[%s431] sm:$0xff]
        %s433 = scalar_lea.vmem [#allocation3], 280
        %s435 = ssub.s32 256, 1
        %436 = vst [vmem:[%s433] sm:%s435] %v432
        %s437 = scalar_lea.vmem %s220, 576
        %v438 = vld [vmem:[%s437] sm:$0xff]
        %s439 = scalar_lea.vmem [#allocation3], 288
        %s441 = ssub.s32 256, 1
        %442 = vst [vmem:[%s439] sm:%s441] %v438
        %s443 = scalar_lea.vmem %s220, 584
        %v444 = vld [vmem:[%s443] sm:$0xff]
        %s445 = scalar_lea.vmem [#allocation3], 296
        %s447 = ssub.s32 256, 1
        %448 = vst [vmem:[%s445] sm:%s447] %v444
        %s449 = scalar_lea.vmem %s220, 608
        %v450 = vld [vmem:[%s449] sm:$0xff]
        %s451 = scalar_lea.vmem [#allocation3], 304
        %s453 = ssub.s32 256, 1
        %454 = vst [vmem:[%s451] sm:%s453] %v450
        %s455 = scalar_lea.vmem %s220, 616
        %v456 = vld [vmem:[%s455] sm:$0xff]
        %s457 = scalar_lea.vmem [#allocation3], 312
        %s459 = ssub.s32 256, 1
        %460 = vst [vmem:[%s457] sm:%s459] %v456
        %s461 = scalar_lea.vmem %s220, 640
        %v462 = vld [vmem:[%s461] sm:$0xff]
        %s463 = scalar_lea.vmem [#allocation3], 320
        %s465 = ssub.s32 256, 1
        %466 = vst [vmem:[%s463] sm:%s465] %v462
        %s467 = scalar_lea.vmem %s220, 648
        %v468 = vld [vmem:[%s467] sm:$0xff]
        %s469 = scalar_lea.vmem [#allocation3], 328
        %s471 = ssub.s32 256, 1
        %472 = vst [vmem:[%s469] sm:%s471] %v468
        %s473 = scalar_lea.vmem %s220, 672
        %v474 = vld [vmem:[%s473] sm:$0xff]
        %s475 = scalar_lea.vmem [#allocation3], 336
        %s477 = ssub.s32 256, 1
        %478 = vst [vmem:[%s475] sm:%s477] %v474
        %s479 = scalar_lea.vmem %s220, 680
        %v480 = vld [vmem:[%s479] sm:$0xff]
        %s481 = scalar_lea.vmem [#allocation3], 344
        %s483 = ssub.s32 256, 1
        %484 = vst [vmem:[%s481] sm:%s483] %v480
        %s485 = scalar_lea.vmem %s220, 704
        %v486 = vld [vmem:[%s485] sm:$0xff]
        %s487 = scalar_lea.vmem [#allocation3], 352
        %s489 = ssub.s32 256, 1
        %490 = vst [vmem:[%s487] sm:%s489] %v486
        %s491 = scalar_lea.vmem %s220, 712
        %v492 = vld [vmem:[%s491] sm:$0xff]
        %s493 = scalar_lea.vmem [#allocation3], 360
        %s495 = ssub.s32 256, 1
        %496 = vst [vmem:[%s493] sm:%s495] %v492
        %s497 = scalar_lea.vmem %s220, 736
        %v498 = vld [vmem:[%s497] sm:$0xff]
        %s499 = scalar_lea.vmem [#allocation3], 368
        %s501 = ssub.s32 256, 1
        %502 = vst [vmem:[%s499] sm:%s501] %v498
        %s503 = scalar_lea.vmem %s220, 744
        %v504 = vld [vmem:[%s503] sm:$0xff]
        %s505 = scalar_lea.vmem [#allocation3], 376
        %s507 = ssub.s32 256, 1
        %508 = vst [vmem:[%s505] sm:%s507] %v504
        %s509 = scalar_lea.vmem %s220, 768
        %v510 = vld [vmem:[%s509] sm:$0xff]
        %s511 = scalar_lea.vmem [#allocation3], 384
        %s513 = ssub.s32 256, 1
        %514 = vst [vmem:[%s511] sm:%s513] %v510
        %s515 = scalar_lea.vmem %s220, 776
        %v516 = vld [vmem:[%s515] sm:$0xff]
        %s517 = scalar_lea.vmem [#allocation3], 392
        %s519 = ssub.s32 256, 1
        %520 = vst [vmem:[%s517] sm:%s519] %v516
        %s521 = scalar_lea.vmem %s220, 800
        %v522 = vld [vmem:[%s521] sm:$0xff]
        %s523 = scalar_lea.vmem [#allocation3], 400
        %s525 = ssub.s32 256, 1
        %526 = vst [vmem:[%s523] sm:%s525] %v522
        %s527 = scalar_lea.vmem %s220, 808
        %v528 = vld [vmem:[%s527] sm:$0xff]
        %s529 = scalar_lea.vmem [#allocation3], 408
        %s531 = ssub.s32 256, 1
        %532 = vst [vmem:[%s529] sm:%s531] %v528
        %s533 = scalar_lea.vmem %s220, 832
        %v534 = vld [vmem:[%s533] sm:$0xff]
        %s535 = scalar_lea.vmem [#allocation3], 416
        %s537 = ssub.s32 256, 1
        %538 = vst [vmem:[%s535] sm:%s537] %v534
        %s539 = scalar_lea.vmem %s220, 840
        %v540 = vld [vmem:[%s539] sm:$0xff]
        %s541 = scalar_lea.vmem [#allocation3], 424
        %s543 = ssub.s32 256, 1
        %544 = vst [vmem:[%s541] sm:%s543] %v540
        %s545 = scalar_lea.vmem %s220, 864
        %v546 = vld [vmem:[%s545] sm:$0xff]
        %s547 = scalar_lea.vmem [#allocation3], 432
        %s549 = ssub.s32 256, 1
        %550 = vst [vmem:[%s547] sm:%s549] %v546
        %s551 = scalar_lea.vmem %s220, 872
        %v552 = vld [vmem:[%s551] sm:$0xff]
        %s553 = scalar_lea.vmem [#allocation3], 440
        %s555 = ssub.s32 256, 1
        %556 = vst [vmem:[%s553] sm:%s555] %v552
        %s557 = scalar_lea.vmem %s220, 896
        %v558 = vld [vmem:[%s557] sm:$0xff]
        %s559 = scalar_lea.vmem [#allocation3], 448
        %s561 = ssub.s32 256, 1
        %562 = vst [vmem:[%s559] sm:%s561] %v558
        %s563 = scalar_lea.vmem %s220, 904
        %v564 = vld [vmem:[%s563] sm:$0xff]
        %s565 = scalar_lea.vmem [#allocation3], 456
        %s567 = ssub.s32 256, 1
        %568 = vst [vmem:[%s565] sm:%s567] %v564
        %s569 = scalar_lea.vmem %s220, 928
        %v570 = vld [vmem:[%s569] sm:$0xff]
        %s571 = scalar_lea.vmem [#allocation3], 464
        %s573 = ssub.s32 256, 1
        %574 = vst [vmem:[%s571] sm:%s573] %v570
        %s575 = scalar_lea.vmem %s220, 936
        %v576 = vld [vmem:[%s575] sm:$0xff]
        %s577 = scalar_lea.vmem [#allocation3], 472
        %s579 = ssub.s32 256, 1
        %580 = vst [vmem:[%s577] sm:%s579] %v576
        %s581 = scalar_lea.vmem %s220, 960
        %v582 = vld [vmem:[%s581] sm:$0xff]
        %s583 = scalar_lea.vmem [#allocation3], 480
        %s585 = ssub.s32 256, 1
        %586 = vst [vmem:[%s583] sm:%s585] %v582
        %s587 = scalar_lea.vmem %s220, 968
        %v588 = vld [vmem:[%s587] sm:$0xff]
        %s589 = scalar_lea.vmem [#allocation3], 488
        %s591 = ssub.s32 256, 1
        %592 = vst [vmem:[%s589] sm:%s591] %v588
        %s593 = scalar_lea.vmem %s220, 992
        %v594 = vld [vmem:[%s593] sm:$0xff]
        %s595 = scalar_lea.vmem [#allocation3], 496
        %s597 = ssub.s32 256, 1
        %598 = vst [vmem:[%s595] sm:%s597] %v594
        %s599 = scalar_lea.vmem %s220, 1000
        %v600 = vld [vmem:[%s599] sm:$0xff]
        %s601 = scalar_lea.vmem [#allocation3], 504
        %s603 = ssub.s32 256, 1
        %604 = vst [vmem:[%s601] sm:%s603] %v600
        %s605 = scalar_lea.vmem %s220, 1024
        %v606 = vld [vmem:[%s605] sm:$0xff]
        %s607 = scalar_lea.vmem [#allocation3], 512
        %s609 = ssub.s32 256, 1
        %610 = vst [vmem:[%s607] sm:%s609] %v606
        %s611 = scalar_lea.vmem %s220, 1032
        %v612 = vld [vmem:[%s611] sm:$0xff]
        %s613 = scalar_lea.vmem [#allocation3], 520
        %s615 = ssub.s32 256, 1
        %616 = vst [vmem:[%s613] sm:%s615] %v612
        %s617 = scalar_lea.vmem %s220, 1056
        %v618 = vld [vmem:[%s617] sm:$0xff]
        %s619 = scalar_lea.vmem [#allocation3], 528
        %s621 = ssub.s32 256, 1
        %622 = vst [vmem:[%s619] sm:%s621] %v618
        %s623 = scalar_lea.vmem %s220, 1064
        %v624 = vld [vmem:[%s623] sm:$0xff]
        %s625 = scalar_lea.vmem [#allocation3], 536
        %s627 = ssub.s32 256, 1
        %628 = vst [vmem:[%s625] sm:%s627] %v624
        %s629 = scalar_lea.vmem %s220, 1088
        %v630 = vld [vmem:[%s629] sm:$0xff]
        %s631 = scalar_lea.vmem [#allocation3], 544
        %s633 = ssub.s32 256, 1
        %634 = vst [vmem:[%s631] sm:%s633] %v630
        %s635 = scalar_lea.vmem %s220, 1096
        %v636 = vld [vmem:[%s635] sm:$0xff]
        %s637 = scalar_lea.vmem [#allocation3], 552
        %s639 = ssub.s32 256, 1
        %640 = vst [vmem:[%s637] sm:%s639] %v636
        %s641 = scalar_lea.vmem %s220, 1120
        %v642 = vld [vmem:[%s641] sm:$0xff]
        %s643 = scalar_lea.vmem [#allocation3], 560
        %s645 = ssub.s32 256, 1
        %646 = vst [vmem:[%s643] sm:%s645] %v642
        %s647 = scalar_lea.vmem %s220, 1128
        %v648 = vld [vmem:[%s647] sm:$0xff]
        %s649 = scalar_lea.vmem [#allocation3], 568
        %s651 = ssub.s32 256, 1
        %652 = vst [vmem:[%s649] sm:%s651] %v648
        %s653 = scalar_lea.vmem %s220, 1152
        %v654 = vld [vmem:[%s653] sm:$0xff]
        %s655 = scalar_lea.vmem [#allocation3], 576
        %s657 = ssub.s32 256, 1
        %658 = vst [vmem:[%s655] sm:%s657] %v654
        %s659 = scalar_lea.vmem %s220, 1160
        %v660 = vld [vmem:[%s659] sm:$0xff]
        %s661 = scalar_lea.vmem [#allocation3], 584
        %s663 = ssub.s32 256, 1
        %664 = vst [vmem:[%s661] sm:%s663] %v660
        %s665 = scalar_lea.vmem %s220, 1184
        %v666 = vld [vmem:[%s665] sm:$0xff]
        %s667 = scalar_lea.vmem [#allocation3], 592
        %s669 = ssub.s32 256, 1
        %670 = vst [vmem:[%s667] sm:%s669] %v666
        %s671 = scalar_lea.vmem %s220, 1192
        %v672 = vld [vmem:[%s671] sm:$0xff]
        %s673 = scalar_lea.vmem [#allocation3], 600
        %s675 = ssub.s32 256, 1
        %676 = vst [vmem:[%s673] sm:%s675] %v672
        %s677 = scalar_lea.vmem %s220, 1216
        %v678 = vld [vmem:[%s677] sm:$0xff]
        %s679 = scalar_lea.vmem [#allocation3], 608
        %s681 = ssub.s32 256, 1
        %682 = vst [vmem:[%s679] sm:%s681] %v678
        %s683 = scalar_lea.vmem %s220, 1224
        %v684 = vld [vmem:[%s683] sm:$0xff]
        %s685 = scalar_lea.vmem [#allocation3], 616
        %s687 = ssub.s32 256, 1
        %688 = vst [vmem:[%s685] sm:%s687] %v684
        %s689 = scalar_lea.vmem %s220, 1248
        %v690 = vld [vmem:[%s689] sm:$0xff]
        %s691 = scalar_lea.vmem [#allocation3], 624
        %s693 = ssub.s32 256, 1
        %694 = vst [vmem:[%s691] sm:%s693] %v690
        %s695 = scalar_lea.vmem %s220, 1256
        %v696 = vld [vmem:[%s695] sm:$0xff]
        %s697 = scalar_lea.vmem [#allocation3], 632
        %s699 = ssub.s32 256, 1
        %700 = vst [vmem:[%s697] sm:%s699] %v696
        %s701 = scalar_lea.vmem %s220, 1280
        %v702 = vld [vmem:[%s701] sm:$0xff]
        %s703 = scalar_lea.vmem [#allocation3], 640
        %s705 = ssub.s32 256, 1
        %706 = vst [vmem:[%s703] sm:%s705] %v702
        %s707 = scalar_lea.vmem %s220, 1288
        %v708 = vld [vmem:[%s707] sm:$0xff]
        %s709 = scalar_lea.vmem [#allocation3], 648
        %s711 = ssub.s32 256, 1
        %712 = vst [vmem:[%s709] sm:%s711] %v708
        %s713 = scalar_lea.vmem %s220, 1312
        %v714 = vld [vmem:[%s713] sm:$0xff]
        %s715 = scalar_lea.vmem [#allocation3], 656
        %s717 = ssub.s32 256, 1
        %718 = vst [vmem:[%s715] sm:%s717] %v714
        %s719 = scalar_lea.vmem %s220, 1320
        %v720 = vld [vmem:[%s719] sm:$0xff]
        %s721 = scalar_lea.vmem [#allocation3], 664
        %s723 = ssub.s32 256, 1
        %724 = vst [vmem:[%s721] sm:%s723] %v720
        %s725 = scalar_lea.vmem %s220, 1344
        %v726 = vld [vmem:[%s725] sm:$0xff]
        %s727 = scalar_lea.vmem [#allocation3], 672
        %s729 = ssub.s32 256, 1
        %730 = vst [vmem:[%s727] sm:%s729] %v726
        %s731 = scalar_lea.vmem %s220, 1352
        %v732 = vld [vmem:[%s731] sm:$0xff]
        %s733 = scalar_lea.vmem [#allocation3], 680
        %s735 = ssub.s32 256, 1
        %736 = vst [vmem:[%s733] sm:%s735] %v732
        %s737 = scalar_lea.vmem %s220, 1376
        %v738 = vld [vmem:[%s737] sm:$0xff]
        %s739 = scalar_lea.vmem [#allocation3], 688
        %s741 = ssub.s32 256, 1
        %742 = vst [vmem:[%s739] sm:%s741] %v738
        %s743 = scalar_lea.vmem %s220, 1384
        %v744 = vld [vmem:[%s743] sm:$0xff]
        %s745 = scalar_lea.vmem [#allocation3], 696
        %s747 = ssub.s32 256, 1
        %748 = vst [vmem:[%s745] sm:%s747] %v744
        %s749 = scalar_lea.vmem %s220, 1408
        %v750 = vld [vmem:[%s749] sm:$0xff]
        %s751 = scalar_lea.vmem [#allocation3], 704
        %s753 = ssub.s32 256, 1
        %754 = vst [vmem:[%s751] sm:%s753] %v750
        %s755 = scalar_lea.vmem %s220, 1416
        %v756 = vld [vmem:[%s755] sm:$0xff]
        %s757 = scalar_lea.vmem [#allocation3], 712
        %s759 = ssub.s32 256, 1
        %760 = vst [vmem:[%s757] sm:%s759] %v756
        %s761 = scalar_lea.vmem %s220, 1440
        %v762 = vld [vmem:[%s761] sm:$0xff]
        %s763 = scalar_lea.vmem [#allocation3], 720
        %s765 = ssub.s32 256, 1
        %766 = vst [vmem:[%s763] sm:%s765] %v762
        %s767 = scalar_lea.vmem %s220, 1448
        %v768 = vld [vmem:[%s767] sm:$0xff]
        %s769 = scalar_lea.vmem [#allocation3], 728
        %s771 = ssub.s32 256, 1
        %772 = vst [vmem:[%s769] sm:%s771] %v768
        %s773 = scalar_lea.vmem %s220, 1472
        %v774 = vld [vmem:[%s773] sm:$0xff]
        %s775 = scalar_lea.vmem [#allocation3], 736
        %s777 = ssub.s32 256, 1
        %778 = vst [vmem:[%s775] sm:%s777] %v774
        %s779 = scalar_lea.vmem %s220, 1480
        %v780 = vld [vmem:[%s779] sm:$0xff]
        %s781 = scalar_lea.vmem [#allocation3], 744
        %s783 = ssub.s32 256, 1
        %784 = vst [vmem:[%s781] sm:%s783] %v780
        %s785 = scalar_lea.vmem %s220, 1504
        %v786 = vld [vmem:[%s785] sm:$0xff]
        %s787 = scalar_lea.vmem [#allocation3], 752
        %s789 = ssub.s32 256, 1
        %790 = vst [vmem:[%s787] sm:%s789] %v786
        %s791 = scalar_lea.vmem %s220, 1512
        %v792 = vld [vmem:[%s791] sm:$0xff]
        %s793 = scalar_lea.vmem [#allocation3], 760
        %s795 = ssub.s32 256, 1
        %796 = vst [vmem:[%s793] sm:%s795] %v792
        %s797 = scalar_lea.vmem %s220, 1536
        %v798 = vld [vmem:[%s797] sm:$0xff]
        %s799 = scalar_lea.vmem [#allocation3], 768
        %s801 = ssub.s32 256, 1
        %802 = vst [vmem:[%s799] sm:%s801] %v798
        %s803 = scalar_lea.vmem %s220, 1544
        %v804 = vld [vmem:[%s803] sm:$0xff]
        %s805 = scalar_lea.vmem [#allocation3], 776
        %s807 = ssub.s32 256, 1
        %808 = vst [vmem:[%s805] sm:%s807] %v804
        %s809 = scalar_lea.vmem %s220, 1568
        %v810 = vld [vmem:[%s809] sm:$0xff]
        %s811 = scalar_lea.vmem [#allocation3], 784
        %s813 = ssub.s32 256, 1
        %814 = vst [vmem:[%s811] sm:%s813] %v810
        %s815 = scalar_lea.vmem %s220, 1576
        %v816 = vld [vmem:[%s815] sm:$0xff]
        %s817 = scalar_lea.vmem [#allocation3], 792
        %s819 = ssub.s32 256, 1
        %820 = vst [vmem:[%s817] sm:%s819] %v816
        %s821 = scalar_lea.vmem %s220, 1600
        %v822 = vld [vmem:[%s821] sm:$0xff]
        %s823 = scalar_lea.vmem [#allocation3], 800
        %s825 = ssub.s32 256, 1
        %826 = vst [vmem:[%s823] sm:%s825] %v822
        %s827 = scalar_lea.vmem %s220, 1608
        %v828 = vld [vmem:[%s827] sm:$0xff]
        %s829 = scalar_lea.vmem [#allocation3], 808
        %s831 = ssub.s32 256, 1
        %832 = vst [vmem:[%s829] sm:%s831] %v828
        %s833 = scalar_lea.vmem %s220, 1632
        %v834 = vld [vmem:[%s833] sm:$0xff]
        %s835 = scalar_lea.vmem [#allocation3], 816
        %s837 = ssub.s32 256, 1
        %838 = vst [vmem:[%s835] sm:%s837] %v834
        %s839 = scalar_lea.vmem %s220, 1640
        %v840 = vld [vmem:[%s839] sm:$0xff]
        %s841 = scalar_lea.vmem [#allocation3], 824
        %s843 = ssub.s32 256, 1
        %844 = vst [vmem:[%s841] sm:%s843] %v840
        %s845 = scalar_lea.vmem %s220, 1664
        %v846 = vld [vmem:[%s845] sm:$0xff]
        %s847 = scalar_lea.vmem [#allocation3], 832
        %s849 = ssub.s32 256, 1
        %850 = vst [vmem:[%s847] sm:%s849] %v846
        %s851 = scalar_lea.vmem %s220, 1672
        %v852 = vld [vmem:[%s851] sm:$0xff]
        %s853 = scalar_lea.vmem [#allocation3], 840
        %s855 = ssub.s32 256, 1
        %856 = vst [vmem:[%s853] sm:%s855] %v852
        %s857 = scalar_lea.vmem %s220, 1696
        %v858 = vld [vmem:[%s857] sm:$0xff]
        %s859 = scalar_lea.vmem [#allocation3], 848
        %s861 = ssub.s32 256, 1
        %862 = vst [vmem:[%s859] sm:%s861] %v858
        %s863 = scalar_lea.vmem %s220, 1704
        %v864 = vld [vmem:[%s863] sm:$0xff]
        %s865 = scalar_lea.vmem [#allocation3], 856
        %s867 = ssub.s32 256, 1
        %868 = vst [vmem:[%s865] sm:%s867] %v864
        %s869 = scalar_lea.vmem %s220, 1728
        %v870 = vld [vmem:[%s869] sm:$0xff]
        %s871 = scalar_lea.vmem [#allocation3], 864
        %s873 = ssub.s32 256, 1
        %874 = vst [vmem:[%s871] sm:%s873] %v870
        %s875 = scalar_lea.vmem %s220, 1736
        %v876 = vld [vmem:[%s875] sm:$0xff]
        %s877 = scalar_lea.vmem [#allocation3], 872
        %s879 = ssub.s32 256, 1
        %880 = vst [vmem:[%s877] sm:%s879] %v876
        %s881 = scalar_lea.vmem %s220, 1760
        %v882 = vld [vmem:[%s881] sm:$0xff]
        %s883 = scalar_lea.vmem [#allocation3], 880
        %s885 = ssub.s32 256, 1
        %886 = vst [vmem:[%s883] sm:%s885] %v882
        %s887 = scalar_lea.vmem %s220, 1768
        %v888 = vld [vmem:[%s887] sm:$0xff]
        %s889 = scalar_lea.vmem [#allocation3], 888
        %s891 = ssub.s32 256, 1
        %892 = vst [vmem:[%s889] sm:%s891] %v888
        %s893 = scalar_lea.vmem %s220, 1792
        %v894 = vld [vmem:[%s893] sm:$0xff]
        %s895 = scalar_lea.vmem [#allocation3], 896
        %s897 = ssub.s32 256, 1
        %898 = vst [vmem:[%s895] sm:%s897] %v894
        %s899 = scalar_lea.vmem %s220, 1800
        %v900 = vld [vmem:[%s899] sm:$0xff]
        %s901 = scalar_lea.vmem [#allocation3], 904
        %s903 = ssub.s32 256, 1
        %904 = vst [vmem:[%s901] sm:%s903] %v900
        %s905 = scalar_lea.vmem %s220, 1824
        %v906 = vld [vmem:[%s905] sm:$0xff]
        %s907 = scalar_lea.vmem [#allocation3], 912
        %s909 = ssub.s32 256, 1
        %910 = vst [vmem:[%s907] sm:%s909] %v906
        %s911 = scalar_lea.vmem %s220, 1832
        %v912 = vld [vmem:[%s911] sm:$0xff]
        %s913 = scalar_lea.vmem [#allocation3], 920
        %s915 = ssub.s32 256, 1
        %916 = vst [vmem:[%s913] sm:%s915] %v912
        %s917 = scalar_lea.vmem %s220, 1856
        %v918 = vld [vmem:[%s917] sm:$0xff]
        %s919 = scalar_lea.vmem [#allocation3], 928
        %s921 = ssub.s32 256, 1
        %922 = vst [vmem:[%s919] sm:%s921] %v918
        %s923 = scalar_lea.vmem %s220, 1864
        %v924 = vld [vmem:[%s923] sm:$0xff]
        %s925 = scalar_lea.vmem [#allocation3], 936
        %s927 = ssub.s32 256, 1
        %928 = vst [vmem:[%s925] sm:%s927] %v924
        %s929 = scalar_lea.vmem %s220, 1888
        %v930 = vld [vmem:[%s929] sm:$0xff]
        %s931 = scalar_lea.vmem [#allocation3], 944
        %s933 = ssub.s32 256, 1
        %934 = vst [vmem:[%s931] sm:%s933] %v930
        %s935 = scalar_lea.vmem %s220, 1896
        %v936 = vld [vmem:[%s935] sm:$0xff]
        %s937 = scalar_lea.vmem [#allocation3], 952
        %s939 = ssub.s32 256, 1
        %940 = vst [vmem:[%s937] sm:%s939] %v936
        %s941 = scalar_lea.vmem %s220, 1920
        %v942 = vld [vmem:[%s941] sm:$0xff]
        %s943 = scalar_lea.vmem [#allocation3], 960
        %s945 = ssub.s32 256, 1
        %946 = vst [vmem:[%s943] sm:%s945] %v942
        %s947 = scalar_lea.vmem %s220, 1928
        %v948 = vld [vmem:[%s947] sm:$0xff]
        %s949 = scalar_lea.vmem [#allocation3], 968
        %s951 = ssub.s32 256, 1
        %952 = vst [vmem:[%s949] sm:%s951] %v948
        %s953 = scalar_lea.vmem %s220, 1952
        %v954 = vld [vmem:[%s953] sm:$0xff]
        %s955 = scalar_lea.vmem [#allocation3], 976
        %s957 = ssub.s32 256, 1
        %958 = vst [vmem:[%s955] sm:%s957] %v954
        %s959 = scalar_lea.vmem %s220, 1960
        %v960 = vld [vmem:[%s959] sm:$0xff]
        %s961 = scalar_lea.vmem [#allocation3], 984
        %s963 = ssub.s32 256, 1
        %964 = vst [vmem:[%s961] sm:%s963] %v960
        %s965 = scalar_lea.vmem %s220, 1984
        %v966 = vld [vmem:[%s965] sm:$0xff]
        %s967 = scalar_lea.vmem [#allocation3], 992
        %s969 = ssub.s32 256, 1
        %970 = vst [vmem:[%s967] sm:%s969] %v966
        %s971 = scalar_lea.vmem %s220, 1992
        %v972 = vld [vmem:[%s971] sm:$0xff]
        %s973 = scalar_lea.vmem [#allocation3], 1000
        %s975 = ssub.s32 256, 1
        %976 = vst [vmem:[%s973] sm:%s975] %v972
        %s977 = scalar_lea.vmem %s220, 2016
        %v978 = vld [vmem:[%s977] sm:$0xff]
        %s979 = scalar_lea.vmem [#allocation3], 1008
        %s981 = ssub.s32 256, 1
        %982 = vst [vmem:[%s979] sm:%s981] %v978
        %s983 = scalar_lea.vmem %s220, 2024
        %v984 = vld [vmem:[%s983] sm:$0xff]
        %s985 = scalar_lea.vmem [#allocation3], 1016
        %s987 = ssub.s32 256, 1
        %988 = vst [vmem:[%s985] sm:%s987] %v984
        %v989 = vld [vmem:[%s0] sm:$0xff]
        %v990 = vld [vmem:[%s0 + $0x8] sm:$0xff]
        %v991 = vld [vmem:[%s0 + $0x10] sm:$0xff]
        %v992 = vld [vmem:[%s0 + $0x18] sm:$0xff]
        %v993 = vld [vmem:[#allocation3] sm:$0xff]
        %v994 = vld [vmem:[#allocation3 + $0x8] sm:$0xff]
        %v995 = vld [vmem:[#allocation3 + $0x10] sm:$0xff]
        %v996 = vld [vmem:[#allocation3 + $0x18] sm:$0xff]
        %v997 = vld [vmem:[#allocation3 + $0x20] sm:$0xff]
        %v998 = vld [vmem:[#allocation3 + $0x28] sm:$0xff]
        %v999 = vld [vmem:[#allocation3 + $0x30] sm:$0xff]
        %v1000 = vld [vmem:[#allocation3 + $0x38] sm:$0xff]
        %vm1001 = vcmask 261120
        %v1003 = vsel %vm1001, %v989, 0
        %v1006 = vsel %vm1001, %v990, 0
        %v1009 = vsel %vm1001, %v991, 0
        %v1012 = vsel %vm1001, %v992, 0
        %1014 = vmatprep.subr.mxu0 0.0
        %1015 = vmatpush1.msra.mxu0 0.0
        %1016 = vmatprep.subr.mxu0 0.0
        %1017 = vmatpush1.msra.mxu0 0.0
        %1018 = vmatprep.subr.mxu0 0.0
        %1019 = vmatpush1.msra.mxu0 0.0
        %1020 = vmatprep.subr.mxu0 0.0
        %1021 = vmatpush1.msra.mxu0 0.0
        %1022 = vmatprep.subr.mxu0 0.0
        %1023 = vmatpush1.msra.mxu0 0.0
        %1024 = vmatprep.subr.mxu0 0.0
        %1025 = vmatpush1.msra.mxu0 0.0
        %1026 = vmatprep.subr.mxu0 0.0
        %1027 = vmatpush1.msra.mxu0 0.0
        %1028 = vmatprep.subr.mxu0 0.0
        %1029 = vmatpush1.msra.mxu0 0.0
        %1030 = vmatprep.subr.mxu0 0.0
        %1031 = vmatpush1.msra.mxu0 0.0
        %1032 = vmatprep.subr.mxu0 0.0
        %1033 = vmatpush1.msra.mxu0 0.0
        %1034 = vmatprep.subr.mxu0 0.0
        %1035 = vmatpush1.msra.mxu0 0.0
        %1036 = vmatprep.subr.mxu0 0.0
        %1037 = vmatpush1.msra.mxu0 0.0
        %1038 = vmatprep.subr.mxu0 %v1000
        %1039 = vmatpush1.msra.mxu0 %v999
        %1040 = vmatprep.subr.mxu0 %v998
        %1041 = vmatpush1.msra.mxu0 %v997
        %1042 = vmatprep.subr.mxu0 %v996
        %1043 = vmatpush1.msra.mxu0 %v995
        %1044 = vmatprep.subr.mxu0 %v994
        %1045 = vmatpush1.msra.mxu0 %v993
        %1046 = vmatprep.subr.mxu0 0.0
        %1047 = vmatpush2.msra.mxu0 0.0
        %1048 = vmatprep.subr.mxu0 0.0
        %1049 = vmatpush2.msra.mxu0 0.0
        %1050 = vmatprep.subr.mxu0 0.0
        %1051 = vmatpush2.msra.mxu0 0.0
        %1052 = vmatprep.subr.mxu0 0.0
        %1053 = vmatpush2.msra.mxu0 0.0
        %1054 = vmatprep.subr.mxu0 0.0
        %1055 = vmatpush2.msra.mxu0 0.0
        %1056 = vmatprep.subr.mxu0 0.0
        %1057 = vmatpush2.msra.mxu0 0.0
        %1058 = vmatprep.subr.mxu0 0.0
        %1059 = vmatpush2.msra.mxu0 0.0
        %1060 = vmatprep.subr.mxu0 0.0
        %1061 = vmatpush2.msra.mxu0 0.0
        %1062 = vmatprep.subr.mxu0 0.0
        %1063 = vmatpush2.msra.mxu0 0.0
        %1064 = vmatprep.subr.mxu0 0.0
        %1065 = vmatpush2.msra.mxu0 0.0
        %1066 = vmatprep.subr.mxu0 0.0
        %1067 = vmatpush2.msra.mxu0 0.0
        %1068 = vmatprep.subr.mxu0 0.0
        %1069 = vmatpush2.msra.mxu0 0.0
        %1070 = vmatprep.subr.mxu0 0.0
        %1071 = vmatpush2.msra.mxu0 0.0
        %1072 = vmatprep.subr.mxu0 0.0
        %1073 = vmatpush2.msra.mxu0 0.0
        %1074 = vmatprep.subr.mxu0 0.0
        %1075 = vmatpush2.msra.mxu0 0.0
        %1076 = vmatprep.subr.mxu0 0.0
        %1077 = vmatpush2.msra.mxu0 0.0
        %1078 = vmatprep.mubr.f32.mxu0 0.0
        %1079 = vmatmul.mubr.f32.gmra.mxu0 %v1003
        %v1080 = vpop.f32.mrf.mxu0
        %v1081 = vadd.f32 0.0, %v1080
        %v1082 = vpop.f32.mrf.mxu0
        %v1083 = vadd.f32 0.0, %v1082
        %1084 = vmatprep.mubr.f32.mxu0 0.0
        %1085 = vmatmul.mubr.f32.gmra.mxu0 %v1006
        %v1086 = vpop.f32.mrf.mxu0
        %v1087 = vadd.f32 0.0, %v1086
        %v1088 = vpop.f32.mrf.mxu0
        %v1089 = vadd.f32 0.0, %v1088
        %1090 = vmatprep.mubr.f32.mxu0 0.0
        %1091 = vmatmul.mubr.f32.gmra.mxu0 %v1009
        %v1092 = vpop.f32.mrf.mxu0
        %v1093 = vadd.f32 0.0, %v1092
        %v1094 = vpop.f32.mrf.mxu0
        %v1095 = vadd.f32 0.0, %v1094
        %1096 = vmatprep.mubr.f32.mxu0 0.0
        %1097 = vmatmul.mubr.f32.gmra.mxu0 %v1012
        %v1098 = vpop.f32.mrf.mxu0
        %v1099 = vadd.f32 0.0, %v1098
        %v1100 = vpop.f32.mrf.mxu0
        %v1101 = vadd.f32 0.0, %v1100
        %1102 = vdwg.mxu0
        %s1103 = scalar_lea.vmem [#allocation3], 64
        %v1104 = vld [vmem:[%s1103] sm:$0xff]
        %v1105 = vld [vmem:[%s1103 + $0x8] sm:$0xff]
        %v1106 = vld [vmem:[%s1103 + $0x10] sm:$0xff]
        %v1107 = vld [vmem:[%s1103 + $0x18] sm:$0xff]
        %v1108 = vld [vmem:[%s1103 + $0x20] sm:$0xff]
        %v1109 = vld [vmem:[%s1103 + $0x28] sm:$0xff]
        %v1110 = vld [vmem:[%s1103 + $0x30] sm:$0xff]
        %v1111 = vld [vmem:[%s1103 + $0x38] sm:$0xff]
        %1112 = vmatprep.subr.mxu0 0.0
        %1113 = vmatpush1.msra.mxu0 0.0
        %1114 = vmatprep.subr.mxu0 0.0
        %1115 = vmatpush1.msra.mxu0 0.0
        %1116 = vmatprep.subr.mxu0 0.0
        %1117 = vmatpush1.msra.mxu0 0.0
        %1118 = vmatprep.subr.mxu0 0.0
        %1119 = vmatpush1.msra.mxu0 0.0
        %1120 = vmatprep.subr.mxu0 0.0
        %1121 = vmatpush1.msra.mxu0 0.0
        %1122 = vmatprep.subr.mxu0 0.0
        %1123 = vmatpush1.msra.mxu0 0.0
        %1124 = vmatprep.subr.mxu0 0.0
        %1125 = vmatpush1.msra.mxu0 0.0
        %1126 = vmatprep.subr.mxu0 0.0
        %1127 = vmatpush1.msra.mxu0 0.0
        %1128 = vmatprep.subr.mxu0 0.0
        %1129 = vmatpush1.msra.mxu0 0.0
        %1130 = vmatprep.subr.mxu0 0.0
        %1131 = vmatpush1.msra.mxu0 0.0
        %1132 = vmatprep.subr.mxu0 0.0
        %1133 = vmatpush1.msra.mxu0 0.0
        %1134 = vmatprep.subr.mxu0 0.0
        %1135 = vmatpush1.msra.mxu0 0.0
        %1136 = vmatprep.subr.mxu0 %v1111
        %1137 = vmatpush1.msra.mxu0 %v1110
        %1138 = vmatprep.subr.mxu0 %v1109
        %1139 = vmatpush1.msra.mxu0 %v1108
        %1140 = vmatprep.subr.mxu0 %v1107
        %1141 = vmatpush1.msra.mxu0 %v1106
        %1142 = vmatprep.subr.mxu0 %v1105
        %1143 = vmatpush1.msra.mxu0 %v1104
        %1144 = vmatprep.subr.mxu0 0.0
        %1145 = vmatpush2.msra.mxu0 0.0
        %1146 = vmatprep.subr.mxu0 0.0
        %1147 = vmatpush2.msra.mxu0 0.0
        %1148 = vmatprep.subr.mxu0 0.0
        %1149 = vmatpush2.msra.mxu0 0.0
        %1150 = vmatprep.subr.mxu0 0.0
        %1151 = vmatpush2.msra.mxu0 0.0
        %1152 = vmatprep.subr.mxu0 0.0
        %1153 = vmatpush2.msra.mxu0 0.0
        %1154 = vmatprep.subr.mxu0 0.0
        %1155 = vmatpush2.msra.mxu0 0.0
        %1156 = vmatprep.subr.mxu0 0.0
        %1157 = vmatpush2.msra.mxu0 0.0
        %1158 = vmatprep.subr.mxu0 0.0
        %1159 = vmatpush2.msra.mxu0 0.0
        %1160 = vmatprep.subr.mxu0 0.0
        %1161 = vmatpush2.msra.mxu0 0.0
        %1162 = vmatprep.subr.mxu0 0.0
        %1163 = vmatpush2.msra.mxu0 0.0
        %1164 = vmatprep.subr.mxu0 0.0
        %1165 = vmatpush2.msra.mxu0 0.0
        %1166 = vmatprep.subr.mxu0 0.0
        %1167 = vmatpush2.msra.mxu0 0.0
        %1168 = vmatprep.subr.mxu0 0.0
        %1169 = vmatpush2.msra.mxu0 0.0
        %1170 = vmatprep.subr.mxu0 0.0
        %1171 = vmatpush2.msra.mxu0 0.0
        %1172 = vmatprep.subr.mxu0 0.0
        %1173 = vmatpush2.msra.mxu0 0.0
        %1174 = vmatprep.subr.mxu0 0.0
        %1175 = vmatpush2.msra.mxu0 0.0
        %1176 = vmatprep.mubr.f32.mxu0 0.0
        %1177 = vmatmul.mubr.f32.gmra.mxu0 %v1003
        %v1178 = vpop.f32.mrf.mxu0
        %v1179 = vadd.f32 0.0, %v1178
        %v1180 = vpop.f32.mrf.mxu0
        %v1181 = vadd.f32 0.0, %v1180
        %1182 = vmatprep.mubr.f32.mxu0 0.0
        %1183 = vmatmul.mubr.f32.gmra.mxu0 %v1006
        %v1184 = vpop.f32.mrf.mxu0
        %v1185 = vadd.f32 0.0, %v1184
        %v1186 = vpop.f32.mrf.mxu0
        %v1187 = vadd.f32 0.0, %v1186
        %1188 = vmatprep.mubr.f32.mxu0 0.0
        %1189 = vmatmul.mubr.f32.gmra.mxu0 %v1009
        %v1190 = vpop.f32.mrf.mxu0
        %v1191 = vadd.f32 0.0, %v1190
        %v1192 = vpop.f32.mrf.mxu0
        %v1193 = vadd.f32 0.0, %v1192
        %1194 = vmatprep.mubr.f32.mxu0 0.0
        %1195 = vmatmul.mubr.f32.gmra.mxu0 %v1012
        %v1196 = vpop.f32.mrf.mxu0
        %v1197 = vadd.f32 0.0, %v1196
        %v1198 = vpop.f32.mrf.mxu0
        %v1199 = vadd.f32 0.0, %v1198
        %1200 = vdwg.mxu0
        %s1201 = scalar_lea.vmem [#allocation3], 128
        %v1202 = vld [vmem:[%s1201] sm:$0xff]
        %v1203 = vld [vmem:[%s1201 + $0x8] sm:$0xff]
        %v1204 = vld [vmem:[%s1201 + $0x10] sm:$0xff]
        %v1205 = vld [vmem:[%s1201 + $0x18] sm:$0xff]
        %v1206 = vld [vmem:[%s1201 + $0x20] sm:$0xff]
        %v1207 = vld [vmem:[%s1201 + $0x28] sm:$0xff]
        %v1208 = vld [vmem:[%s1201 + $0x30] sm:$0xff]
        %v1209 = vld [vmem:[%s1201 + $0x38] sm:$0xff]
        %1210 = vmatprep.subr.mxu0 0.0
        %1211 = vmatpush1.msra.mxu0 0.0
        %1212 = vmatprep.subr.mxu0 0.0
        %1213 = vmatpush1.msra.mxu0 0.0
        %1214 = vmatprep.subr.mxu0 0.0
        %1215 = vmatpush1.msra.mxu0 0.0
        %1216 = vmatprep.subr.mxu0 0.0
        %1217 = vmatpush1.msra.mxu0 0.0
        %1218 = vmatprep.subr.mxu0 0.0
        %1219 = vmatpush1.msra.mxu0 0.0
        %1220 = vmatprep.subr.mxu0 0.0
        %1221 = vmatpush1.msra.mxu0 0.0
        %1222 = vmatprep.subr.mxu0 0.0
        %1223 = vmatpush1.msra.mxu0 0.0
        %1224 = vmatprep.subr.mxu0 0.0
        %1225 = vmatpush1.msra.mxu0 0.0
        %1226 = vmatprep.subr.mxu0 0.0
        %1227 = vmatpush1.msra.mxu0 0.0
        %1228 = vmatprep.subr.mxu0 0.0
        %1229 = vmatpush1.msra.mxu0 0.0
        %1230 = vmatprep.subr.mxu0 0.0
        %1231 = vmatpush1.msra.mxu0 0.0
        %1232 = vmatprep.subr.mxu0 0.0
        %1233 = vmatpush1.msra.mxu0 0.0
        %1234 = vmatprep.subr.mxu0 %v1209
        %1235 = vmatpush1.msra.mxu0 %v1208
        %1236 = vmatprep.subr.mxu0 %v1207
        %1237 = vmatpush1.msra.mxu0 %v1206
        %1238 = vmatprep.subr.mxu0 %v1205
        %1239 = vmatpush1.msra.mxu0 %v1204
        %1240 = vmatprep.subr.mxu0 %v1203
        %1241 = vmatpush1.msra.mxu0 %v1202
        %1242 = vmatprep.subr.mxu0 0.0
        %1243 = vmatpush2.msra.mxu0 0.0
        %1244 = vmatprep.subr.mxu0 0.0
        %1245 = vmatpush2.msra.mxu0 0.0
        %1246 = vmatprep.subr.mxu0 0.0
        %1247 = vmatpush2.msra.mxu0 0.0
        %1248 = vmatprep.subr.mxu0 0.0
        %1249 = vmatpush2.msra.mxu0 0.0
        %1250 = vmatprep.subr.mxu0 0.0
        %1251 = vmatpush2.msra.mxu0 0.0
        %1252 = vmatprep.subr.mxu0 0.0
        %1253 = vmatpush2.msra.mxu0 0.0
        %1254 = vmatprep.subr.mxu0 0.0
        %1255 = vmatpush2.msra.mxu0 0.0
        %1256 = vmatprep.subr.mxu0 0.0
        %1257 = vmatpush2.msra.mxu0 0.0
        %1258 = vmatprep.subr.mxu0 0.0
        %1259 = vmatpush2.msra.mxu0 0.0
        %1260 = vmatprep.subr.mxu0 0.0
        %1261 = vmatpush2.msra.mxu0 0.0
        %1262 = vmatprep.subr.mxu0 0.0
        %1263 = vmatpush2.msra.mxu0 0.0
        %1264 = vmatprep.subr.mxu0 0.0
        %1265 = vmatpush2.msra.mxu0 0.0
        %1266 = vmatprep.subr.mxu0 0.0
        %1267 = vmatpush2.msra.mxu0 0.0
        %1268 = vmatprep.subr.mxu0 0.0
        %1269 = vmatpush2.msra.mxu0 0.0
        %1270 = vmatprep.subr.mxu0 0.0
        %1271 = vmatpush2.msra.mxu0 0.0
        %1272 = vmatprep.subr.mxu0 0.0
        %1273 = vmatpush2.msra.mxu0 0.0
        %1274 = vmatprep.mubr.f32.mxu0 0.0
        %1275 = vmatmul.mubr.f32.gmra.mxu0 %v1003
        %v1276 = vpop.f32.mrf.mxu0
        %v1277 = vadd.f32 0.0, %v1276
        %v1278 = vpop.f32.mrf.mxu0
        %v1279 = vadd.f32 0.0, %v1278
        %1280 = vmatprep.mubr.f32.mxu0 0.0
        %1281 = vmatmul.mubr.f32.gmra.mxu0 %v1006
        %v1282 = vpop.f32.mrf.mxu0
        %v1283 = vadd.f32 0.0, %v1282
        %v1284 = vpop.f32.mrf.mxu0
        %v1285 = vadd.f32 0.0, %v1284
        %1286 = vmatprep.mubr.f32.mxu0 0.0
        %1287 = vmatmul.mubr.f32.gmra.mxu0 %v1009
        %v1288 = vpop.f32.mrf.mxu0
        %v1289 = vadd.f32 0.0, %v1288
        %v1290 = vpop.f32.mrf.mxu0
        %v1291 = vadd.f32 0.0, %v1290
        %1292 = vmatprep.mubr.f32.mxu0 0.0
        %1293 = vmatmul.mubr.f32.gmra.mxu0 %v1012
        %v1294 = vpop.f32.mrf.mxu0
        %v1295 = vadd.f32 0.0, %v1294
        %v1296 = vpop.f32.mrf.mxu0
        %v1297 = vadd.f32 0.0, %v1296
        %1298 = vdwg.mxu0
        %s1299 = scalar_lea.vmem [#allocation3], 192
        %v1300 = vld [vmem:[%s1299] sm:$0xff]
        %v1301 = vld [vmem:[%s1299 + $0x8] sm:$0xff]
        %v1302 = vld [vmem:[%s1299 + $0x10] sm:$0xff]
        %v1303 = vld [vmem:[%s1299 + $0x18] sm:$0xff]
        %v1304 = vld [vmem:[%s1299 + $0x20] sm:$0xff]
        %v1305 = vld [vmem:[%s1299 + $0x28] sm:$0xff]
        %v1306 = vld [vmem:[%s1299 + $0x30] sm:$0xff]
        %v1307 = vld [vmem:[%s1299 + $0x38] sm:$0xff]
        %1308 = vmatprep.subr.mxu0 0.0
        %1309 = vmatpush1.msra.mxu0 0.0
        %1310 = vmatprep.subr.mxu0 0.0
        %1311 = vmatpush1.msra.mxu0 0.0
        %1312 = vmatprep.subr.mxu0 0.0
        %1313 = vmatpush1.msra.mxu0 0.0
        %1314 = vmatprep.subr.mxu0 0.0
        %1315 = vmatpush1.msra.mxu0 0.0
        %1316 = vmatprep.subr.mxu0 0.0
        %1317 = vmatpush1.msra.mxu0 0.0
        %1318 = vmatprep.subr.mxu0 0.0
        %1319 = vmatpush1.msra.mxu0 0.0
        %1320 = vmatprep.subr.mxu0 0.0
        %1321 = vmatpush1.msra.mxu0 0.0
        %1322 = vmatprep.subr.mxu0 0.0
        %1323 = vmatpush1.msra.mxu0 0.0
        %1324 = vmatprep.subr.mxu0 0.0
        %1325 = vmatpush1.msra.mxu0 0.0
        %1326 = vmatprep.subr.mxu0 0.0
        %1327 = vmatpush1.msra.mxu0 0.0
        %1328 = vmatprep.subr.mxu0 0.0
        %1329 = vmatpush1.msra.mxu0 0.0
        %1330 = vmatprep.subr.mxu0 0.0
        %1331 = vmatpush1.msra.mxu0 0.0
        %1332 = vmatprep.subr.mxu0 %v1307
        %1333 = vmatpush1.msra.mxu0 %v1306
        %1334 = vmatprep.subr.mxu0 %v1305
        %1335 = vmatpush1.msra.mxu0 %v1304
        %1336 = vmatprep.subr.mxu0 %v1303
        %1337 = vmatpush1.msra.mxu0 %v1302
        %1338 = vmatprep.subr.mxu0 %v1301
        %1339 = vmatpush1.msra.mxu0 %v1300
        %1340 = vmatprep.subr.mxu0 0.0
        %1341 = vmatpush2.msra.mxu0 0.0
        %1342 = vmatprep.subr.mxu0 0.0
        %1343 = vmatpush2.msra.mxu0 0.0
        %1344 = vmatprep.subr.mxu0 0.0
        %1345 = vmatpush2.msra.mxu0 0.0
        %1346 = vmatprep.subr.mxu0 0.0
        %1347 = vmatpush2.msra.mxu0 0.0
        %1348 = vmatprep.subr.mxu0 0.0
        %1349 = vmatpush2.msra.mxu0 0.0
        %1350 = vmatprep.subr.mxu0 0.0
        %1351 = vmatpush2.msra.mxu0 0.0
        %1352 = vmatprep.subr.mxu0 0.0
        %1353 = vmatpush2.msra.mxu0 0.0
        %1354 = vmatprep.subr.mxu0 0.0
        %1355 = vmatpush2.msra.mxu0 0.0
        %1356 = vmatprep.subr.mxu0 0.0
        %1357 = vmatpush2.msra.mxu0 0.0
        %1358 = vmatprep.subr.mxu0 0.0
        %1359 = vmatpush2.msra.mxu0 0.0
        %1360 = vmatprep.subr.mxu0 0.0
        %1361 = vmatpush2.msra.mxu0 0.0
        %1362 = vmatprep.subr.mxu0 0.0
        %1363 = vmatpush2.msra.mxu0 0.0
        %1364 = vmatprep.subr.mxu0 0.0
        %1365 = vmatpush2.msra.mxu0 0.0
        %1366 = vmatprep.subr.mxu0 0.0
        %1367 = vmatpush2.msra.mxu0 0.0
        %1368 = vmatprep.subr.mxu0 0.0
        %1369 = vmatpush2.msra.mxu0 0.0
        %1370 = vmatprep.subr.mxu0 0.0
        %1371 = vmatpush2.msra.mxu0 0.0
        %1372 = vmatprep.mubr.f32.mxu0 0.0
        %1373 = vmatmul.mubr.f32.gmra.mxu0 %v1003
        %v1374 = vpop.f32.mrf.mxu0
        %v1375 = vadd.f32 0.0, %v1374
        %v1376 = vpop.f32.mrf.mxu0
        %v1377 = vadd.f32 0.0, %v1376
        %1378 = vmatprep.mubr.f32.mxu0 0.0
        %1379 = vmatmul.mubr.f32.gmra.mxu0 %v1006
        %v1380 = vpop.f32.mrf.mxu0
        %v1381 = vadd.f32 0.0, %v1380
        %v1382 = vpop.f32.mrf.mxu0
        %v1383 = vadd.f32 0.0, %v1382
        %1384 = vmatprep.mubr.f32.mxu0 0.0
        %1385 = vmatmul.mubr.f32.gmra.mxu0 %v1009
        %v1386 = vpop.f32.mrf.mxu0
        %v1387 = vadd.f32 0.0, %v1386
        %v1388 = vpop.f32.mrf.mxu0
        %v1389 = vadd.f32 0.0, %v1388
        %1390 = vmatprep.mubr.f32.mxu0 0.0
        %1391 = vmatmul.mubr.f32.gmra.mxu0 %v1012
        %v1392 = vpop.f32.mrf.mxu0
        %v1393 = vadd.f32 0.0, %v1392
        %v1394 = vpop.f32.mrf.mxu0
        %v1395 = vadd.f32 0.0, %v1394
        %1396 = vdwg.mxu0
        %s1397 = scalar_lea.vmem [#allocation3], 256
        %v1398 = vld [vmem:[%s1397] sm:$0xff]
        %v1399 = vld [vmem:[%s1397 + $0x8] sm:$0xff]
        %v1400 = vld [vmem:[%s1397 + $0x10] sm:$0xff]
        %v1401 = vld [vmem:[%s1397 + $0x18] sm:$0xff]
        %v1402 = vld [vmem:[%s1397 + $0x20] sm:$0xff]
        %v1403 = vld [vmem:[%s1397 + $0x28] sm:$0xff]
        %v1404 = vld [vmem:[%s1397 + $0x30] sm:$0xff]
        %v1405 = vld [vmem:[%s1397 + $0x38] sm:$0xff]
        %1406 = vmatprep.subr.mxu0 0.0
        %1407 = vmatpush1.msra.mxu0 0.0
        %1408 = vmatprep.subr.mxu0 0.0
        %1409 = vmatpush1.msra.mxu0 0.0
        %1410 = vmatprep.subr.mxu0 0.0
        %1411 = vmatpush1.msra.mxu0 0.0
        %1412 = vmatprep.subr.mxu0 0.0
        %1413 = vmatpush1.msra.mxu0 0.0
        %1414 = vmatprep.subr.mxu0 0.0
        %1415 = vmatpush1.msra.mxu0 0.0
        %1416 = vmatprep.subr.mxu0 0.0
        %1417 = vmatpush1.msra.mxu0 0.0
        %1418 = vmatprep.subr.mxu0 0.0
        %1419 = vmatpush1.msra.mxu0 0.0
        %1420 = vmatprep.subr.mxu0 0.0
        %1421 = vmatpush1.msra.mxu0 0.0
        %1422 = vmatprep.subr.mxu0 0.0
        %1423 = vmatpush1.msra.mxu0 0.0
        %1424 = vmatprep.subr.mxu0 0.0
        %1425 = vmatpush1.msra.mxu0 0.0
        %1426 = vmatprep.subr.mxu0 0.0
        %1427 = vmatpush1.msra.mxu0 0.0
        %1428 = vmatprep.subr.mxu0 0.0
        %1429 = vmatpush1.msra.mxu0 0.0
        %1430 = vmatprep.subr.mxu0 %v1405
        %1431 = vmatpush1.msra.mxu0 %v1404
        %1432 = vmatprep.subr.mxu0 %v1403
        %1433 = vmatpush1.msra.mxu0 %v1402
        %1434 = vmatprep.subr.mxu0 %v1401
        %1435 = vmatpush1.msra.mxu0 %v1400
        %1436 = vmatprep.subr.mxu0 %v1399
        %1437 = vmatpush1.msra.mxu0 %v1398
        %1438 = vmatprep.subr.mxu0 0.0
        %1439 = vmatpush2.msra.mxu0 0.0
        %1440 = vmatprep.subr.mxu0 0.0
        %1441 = vmatpush2.msra.mxu0 0.0
        %1442 = vmatprep.subr.mxu0 0.0
        %1443 = vmatpush2.msra.mxu0 0.0
        %1444 = vmatprep.subr.mxu0 0.0
        %1445 = vmatpush2.msra.mxu0 0.0
        %1446 = vmatprep.subr.mxu0 0.0
        %1447 = vmatpush2.msra.mxu0 0.0
        %1448 = vmatprep.subr.mxu0 0.0
        %1449 = vmatpush2.msra.mxu0 0.0
        %1450 = vmatprep.subr.mxu0 0.0
        %1451 = vmatpush2.msra.mxu0 0.0
        %1452 = vmatprep.subr.mxu0 0.0
        %1453 = vmatpush2.msra.mxu0 0.0
        %1454 = vmatprep.subr.mxu0 0.0
        %1455 = vmatpush2.msra.mxu0 0.0
        %1456 = vmatprep.subr.mxu0 0.0
        %1457 = vmatpush2.msra.mxu0 0.0
        %1458 = vmatprep.subr.mxu0 0.0
        %1459 = vmatpush2.msra.mxu0 0.0
        %1460 = vmatprep.subr.mxu0 0.0
        %1461 = vmatpush2.msra.mxu0 0.0
        %1462 = vmatprep.subr.mxu0 0.0
        %1463 = vmatpush2.msra.mxu0 0.0
        %1464 = vmatprep.subr.mxu0 0.0
        %1465 = vmatpush2.msra.mxu0 0.0
        %1466 = vmatprep.subr.mxu0 0.0
        %1467 = vmatpush2.msra.mxu0 0.0
        %1468 = vmatprep.subr.mxu0 0.0
        %1469 = vmatpush2.msra.mxu0 0.0
        %1470 = vmatprep.mubr.f32.mxu0 0.0
        %1471 = vmatmul.mubr.f32.gmra.mxu0 %v1003
        %v1472 = vpop.f32.mrf.mxu0
        %v1473 = vadd.f32 0.0, %v1472
        %v1474 = vpop.f32.mrf.mxu0
        %v1475 = vadd.f32 0.0, %v1474
        %1476 = vmatprep.mubr.f32.mxu0 0.0
        %1477 = vmatmul.mubr.f32.gmra.mxu0 %v1006
        %v1478 = vpop.f32.mrf.mxu0
        %v1479 = vadd.f32 0.0, %v1478
        %v1480 = vpop.f32.mrf.mxu0
        %v1481 = vadd.f32 0.0, %v1480
        %1482 = vmatprep.mubr.f32.mxu0 0.0
        %1483 = vmatmul.mubr.f32.gmra.mxu0 %v1009
        %v1484 = vpop.f32.mrf.mxu0
        %v1485 = vadd.f32 0.0, %v1484
        %v1486 = vpop.f32.mrf.mxu0
        %v1487 = vadd.f32 0.0, %v1486
        %1488 = vmatprep.mubr.f32.mxu0 0.0
        %1489 = vmatmul.mubr.f32.gmra.mxu0 %v1012
        %v1490 = vpop.f32.mrf.mxu0
        %v1491 = vadd.f32 0.0, %v1490
        %v1492 = vpop.f32.mrf.mxu0
        %v1493 = vadd.f32 0.0, %v1492
        %1494 = vdwg.mxu0
        %s1495 = scalar_lea.vmem [#allocation3], 320
        %v1496 = vld [vmem:[%s1495] sm:$0xff]
        %v1497 = vld [vmem:[%s1495 + $0x8] sm:$0xff]
        %v1498 = vld [vmem:[%s1495 + $0x10] sm:$0xff]
        %v1499 = vld [vmem:[%s1495 + $0x18] sm:$0xff]
        %v1500 = vld [vmem:[%s1495 + $0x20] sm:$0xff]
        %v1501 = vld [vmem:[%s1495 + $0x28] sm:$0xff]
        %v1502 = vld [vmem:[%s1495 + $0x30] sm:$0xff]
        %v1503 = vld [vmem:[%s1495 + $0x38] sm:$0xff]
        %1504 = vmatprep.subr.mxu0 0.0
        %1505 = vmatpush1.msra.mxu0 0.0
        %1506 = vmatprep.subr.mxu0 0.0
        %1507 = vmatpush1.msra.mxu0 0.0
        %1508 = vmatprep.subr.mxu0 0.0
        %1509 = vmatpush1.msra.mxu0 0.0
        %1510 = vmatprep.subr.mxu0 0.0
        %1511 = vmatpush1.msra.mxu0 0.0
        %1512 = vmatprep.subr.mxu0 0.0
        %1513 = vmatpush1.msra.mxu0 0.0
        %1514 = vmatprep.subr.mxu0 0.0
        %1515 = vmatpush1.msra.mxu0 0.0
        %1516 = vmatprep.subr.mxu0 0.0
        %1517 = vmatpush1.msra.mxu0 0.0
        %1518 = vmatprep.subr.mxu0 0.0
        %1519 = vmatpush1.msra.mxu0 0.0
        %1520 = vmatprep.subr.mxu0 0.0
        %1521 = vmatpush1.msra.mxu0 0.0
        %1522 = vmatprep.subr.mxu0 0.0
        %1523 = vmatpush1.msra.mxu0 0.0
        %1524 = vmatprep.subr.mxu0 0.0
        %1525 = vmatpush1.msra.mxu0 0.0
        %1526 = vmatprep.subr.mxu0 0.0
        %1527 = vmatpush1.msra.mxu0 0.0
        %1528 = vmatprep.subr.mxu0 %v1503
        %1529 = vmatpush1.msra.mxu0 %v1502
        %1530 = vmatprep.subr.mxu0 %v1501
        %1531 = vmatpush1.msra.mxu0 %v1500
        %1532 = vmatprep.subr.mxu0 %v1499
        %1533 = vmatpush1.msra.mxu0 %v1498
        %1534 = vmatprep.subr.mxu0 %v1497
        %1535 = vmatpush1.msra.mxu0 %v1496
        %1536 = vmatprep.subr.mxu0 0.0
        %1537 = vmatpush2.msra.mxu0 0.0
        %1538 = vmatprep.subr.mxu0 0.0
        %1539 = vmatpush2.msra.mxu0 0.0
        %1540 = vmatprep.subr.mxu0 0.0
        %1541 = vmatpush2.msra.mxu0 0.0
        %1542 = vmatprep.subr.mxu0 0.0
        %1543 = vmatpush2.msra.mxu0 0.0
        %1544 = vmatprep.subr.mxu0 0.0
        %1545 = vmatpush2.msra.mxu0 0.0
        %1546 = vmatprep.subr.mxu0 0.0
        %1547 = vmatpush2.msra.mxu0 0.0
        %1548 = vmatprep.subr.mxu0 0.0
        %1549 = vmatpush2.msra.mxu0 0.0
        %1550 = vmatprep.subr.mxu0 0.0
        %1551 = vmatpush2.msra.mxu0 0.0
        %1552 = vmatprep.subr.mxu0 0.0
        %1553 = vmatpush2.msra.mxu0 0.0
        %1554 = vmatprep.subr.mxu0 0.0
        %1555 = vmatpush2.msra.mxu0 0.0
        %1556 = vmatprep.subr.mxu0 0.0
        %1557 = vmatpush2.msra.mxu0 0.0
        %1558 = vmatprep.subr.mxu0 0.0
        %1559 = vmatpush2.msra.mxu0 0.0
        %1560 = vmatprep.subr.mxu0 0.0
        %1561 = vmatpush2.msra.mxu0 0.0
        %1562 = vmatprep.subr.mxu0 0.0
        %1563 = vmatpush2.msra.mxu0 0.0
        %1564 = vmatprep.subr.mxu0 0.0
        %1565 = vmatpush2.msra.mxu0 0.0
        %1566 = vmatprep.subr.mxu0 0.0
        %1567 = vmatpush2.msra.mxu0 0.0
        %1568 = vmatprep.mubr.f32.mxu0 0.0
        %1569 = vmatmul.mubr.f32.gmra.mxu0 %v1003
        %v1570 = vpop.f32.mrf.mxu0
        %v1571 = vadd.f32 0.0, %v1570
        %v1572 = vpop.f32.mrf.mxu0
        %v1573 = vadd.f32 0.0, %v1572
        %1574 = vmatprep.mubr.f32.mxu0 0.0
        %1575 = vmatmul.mubr.f32.gmra.mxu0 %v1006
        %v1576 = vpop.f32.mrf.mxu0
        %v1577 = vadd.f32 0.0, %v1576
        %v1578 = vpop.f32.mrf.mxu0
        %v1579 = vadd.f32 0.0, %v1578
        %1580 = vmatprep.mubr.f32.mxu0 0.0
        %1581 = vmatmul.mubr.f32.gmra.mxu0 %v1009
        %v1582 = vpop.f32.mrf.mxu0
        %v1583 = vadd.f32 0.0, %v1582
        %v1584 = vpop.f32.mrf.mxu0
        %v1585 = vadd.f32 0.0, %v1584
        %1586 = vmatprep.mubr.f32.mxu0 0.0
        %1587 = vmatmul.mubr.f32.gmra.mxu0 %v1012
        %v1588 = vpop.f32.mrf.mxu0
        %v1589 = vadd.f32 0.0, %v1588
        %v1590 = vpop.f32.mrf.mxu0
        %v1591 = vadd.f32 0.0, %v1590
        %1592 = vdwg.mxu0
        %s1593 = scalar_lea.vmem [#allocation3], 384
        %v1594 = vld [vmem:[%s1593] sm:$0xff]
        %v1595 = vld [vmem:[%s1593 + $0x8] sm:$0xff]
        %v1596 = vld [vmem:[%s1593 + $0x10] sm:$0xff]
        %v1597 = vld [vmem:[%s1593 + $0x18] sm:$0xff]
        %v1598 = vld [vmem:[%s1593 + $0x20] sm:$0xff]
        %v1599 = vld [vmem:[%s1593 + $0x28] sm:$0xff]
        %v1600 = vld [vmem:[%s1593 + $0x30] sm:$0xff]
        %v1601 = vld [vmem:[%s1593 + $0x38] sm:$0xff]
        %1602 = vmatprep.subr.mxu0 0.0
        %1603 = vmatpush1.msra.mxu0 0.0
        %1604 = vmatprep.subr.mxu0 0.0
        %1605 = vmatpush1.msra.mxu0 0.0
        %1606 = vmatprep.subr.mxu0 0.0
        %1607 = vmatpush1.msra.mxu0 0.0
        %1608 = vmatprep.subr.mxu0 0.0
        %1609 = vmatpush1.msra.mxu0 0.0
        %1610 = vmatprep.subr.mxu0 0.0
        %1611 = vmatpush1.msra.mxu0 0.0
        %1612 = vmatprep.subr.mxu0 0.0
        %1613 = vmatpush1.msra.mxu0 0.0
        %1614 = vmatprep.subr.mxu0 0.0
        %1615 = vmatpush1.msra.mxu0 0.0
        %1616 = vmatprep.subr.mxu0 0.0
        %1617 = vmatpush1.msra.mxu0 0.0
        %1618 = vmatprep.subr.mxu0 0.0
        %1619 = vmatpush1.msra.mxu0 0.0
        %1620 = vmatprep.subr.mxu0 0.0
        %1621 = vmatpush1.msra.mxu0 0.0
        %1622 = vmatprep.subr.mxu0 0.0
        %1623 = vmatpush1.msra.mxu0 0.0
        %1624 = vmatprep.subr.mxu0 0.0
        %1625 = vmatpush1.msra.mxu0 0.0
        %1626 = vmatprep.subr.mxu0 %v1601
        %1627 = vmatpush1.msra.mxu0 %v1600
        %1628 = vmatprep.subr.mxu0 %v1599
        %1629 = vmatpush1.msra.mxu0 %v1598
        %1630 = vmatprep.subr.mxu0 %v1597
        %1631 = vmatpush1.msra.mxu0 %v1596
        %1632 = vmatprep.subr.mxu0 %v1595
        %1633 = vmatpush1.msra.mxu0 %v1594
        %1634 = vmatprep.subr.mxu0 0.0
        %1635 = vmatpush2.msra.mxu0 0.0
        %1636 = vmatprep.subr.mxu0 0.0
        %1637 = vmatpush2.msra.mxu0 0.0
        %1638 = vmatprep.subr.mxu0 0.0
        %1639 = vmatpush2.msra.mxu0 0.0
        %1640 = vmatprep.subr.mxu0 0.0
        %1641 = vmatpush2.msra.mxu0 0.0
        %1642 = vmatprep.subr.mxu0 0.0
        %1643 = vmatpush2.msra.mxu0 0.0
        %1644 = vmatprep.subr.mxu0 0.0
        %1645 = vmatpush2.msra.mxu0 0.0
        %1646 = vmatprep.subr.mxu0 0.0
        %1647 = vmatpush2.msra.mxu0 0.0
        %1648 = vmatprep.subr.mxu0 0.0
        %1649 = vmatpush2.msra.mxu0 0.0
        %1650 = vmatprep.subr.mxu0 0.0
        %1651 = vmatpush2.msra.mxu0 0.0
        %1652 = vmatprep.subr.mxu0 0.0
        %1653 = vmatpush2.msra.mxu0 0.0
        %1654 = vmatprep.subr.mxu0 0.0
        %1655 = vmatpush2.msra.mxu0 0.0
        %1656 = vmatprep.subr.mxu0 0.0
        %1657 = vmatpush2.msra.mxu0 0.0
        %1658 = vmatprep.subr.mxu0 0.0
        %1659 = vmatpush2.msra.mxu0 0.0
        %1660 = vmatprep.subr.mxu0 0.0
        %1661 = vmatpush2.msra.mxu0 0.0
        %1662 = vmatprep.subr.mxu0 0.0
        %1663 = vmatpush2.msra.mxu0 0.0
        %1664 = vmatprep.subr.mxu0 0.0
        %1665 = vmatpush2.msra.mxu0 0.0
        %1666 = vmatprep.mubr.f32.mxu0 0.0
        %1667 = vmatmul.mubr.f32.gmra.mxu0 %v1003
        %v1668 = vpop.f32.mrf.mxu0
        %v1669 = vadd.f32 0.0, %v1668
        %v1670 = vpop.f32.mrf.mxu0
        %v1671 = vadd.f32 0.0, %v1670
        %1672 = vmatprep.mubr.f32.mxu0 0.0
        %1673 = vmatmul.mubr.f32.gmra.mxu0 %v1006
        %v1674 = vpop.f32.mrf.mxu0
        %v1675 = vadd.f32 0.0, %v1674
        %v1676 = vpop.f32.mrf.mxu0
        %v1677 = vadd.f32 0.0, %v1676
        %1678 = vmatprep.mubr.f32.mxu0 0.0
        %1679 = vmatmul.mubr.f32.gmra.mxu0 %v1009
        %v1680 = vpop.f32.mrf.mxu0
        %v1681 = vadd.f32 0.0, %v1680
        %v1682 = vpop.f32.mrf.mxu0
        %v1683 = vadd.f32 0.0, %v1682
        %1684 = vmatprep.mubr.f32.mxu0 0.0
        %1685 = vmatmul.mubr.f32.gmra.mxu0 %v1012
        %v1686 = vpop.f32.mrf.mxu0
        %v1687 = vadd.f32 0.0, %v1686
        %v1688 = vpop.f32.mrf.mxu0
        %v1689 = vadd.f32 0.0, %v1688
        %1690 = vdwg.mxu0
        %s1691 = scalar_lea.vmem [#allocation3], 448
        %v1692 = vld [vmem:[%s1691] sm:$0xff]
        %v1693 = vld [vmem:[%s1691 + $0x8] sm:$0xff]
        %v1694 = vld [vmem:[%s1691 + $0x10] sm:$0xff]
        %v1695 = vld [vmem:[%s1691 + $0x18] sm:$0xff]
        %v1696 = vld [vmem:[%s1691 + $0x20] sm:$0xff]
        %v1697 = vld [vmem:[%s1691 + $0x28] sm:$0xff]
        %v1698 = vld [vmem:[%s1691 + $0x30] sm:$0xff]
        %v1699 = vld [vmem:[%s1691 + $0x38] sm:$0xff]
        %1700 = vmatprep.subr.mxu0 0.0
        %1701 = vmatpush1.msra.mxu0 0.0
        %1702 = vmatprep.subr.mxu0 0.0
        %1703 = vmatpush1.msra.mxu0 0.0
        %1704 = vmatprep.subr.mxu0 0.0
        %1705 = vmatpush1.msra.mxu0 0.0
        %1706 = vmatprep.subr.mxu0 0.0
        %1707 = vmatpush1.msra.mxu0 0.0
        %1708 = vmatprep.subr.mxu0 0.0
        %1709 = vmatpush1.msra.mxu0 0.0
        %1710 = vmatprep.subr.mxu0 0.0
        %1711 = vmatpush1.msra.mxu0 0.0
        %1712 = vmatprep.subr.mxu0 0.0
        %1713 = vmatpush1.msra.mxu0 0.0
        %1714 = vmatprep.subr.mxu0 0.0
        %1715 = vmatpush1.msra.mxu0 0.0
        %1716 = vmatprep.subr.mxu0 0.0
        %1717 = vmatpush1.msra.mxu0 0.0
        %1718 = vmatprep.subr.mxu0 0.0
        %1719 = vmatpush1.msra.mxu0 0.0
        %1720 = vmatprep.subr.mxu0 0.0
        %1721 = vmatpush1.msra.mxu0 0.0
        %1722 = vmatprep.subr.mxu0 0.0
        %1723 = vmatpush1.msra.mxu0 0.0
        %1724 = vmatprep.subr.mxu0 %v1699
        %1725 = vmatpush1.msra.mxu0 %v1698
        %1726 = vmatprep.subr.mxu0 %v1697
        %1727 = vmatpush1.msra.mxu0 %v1696
        %1728 = vmatprep.subr.mxu0 %v1695
        %1729 = vmatpush1.msra.mxu0 %v1694
        %1730 = vmatprep.subr.mxu0 %v1693
        %1731 = vmatpush1.msra.mxu0 %v1692
        %1732 = vmatprep.subr.mxu0 0.0
        %1733 = vmatpush2.msra.mxu0 0.0
        %1734 = vmatprep.subr.mxu0 0.0
        %1735 = vmatpush2.msra.mxu0 0.0
        %1736 = vmatprep.subr.mxu0 0.0
        %1737 = vmatpush2.msra.mxu0 0.0
        %1738 = vmatprep.subr.mxu0 0.0
        %1739 = vmatpush2.msra.mxu0 0.0
        %1740 = vmatprep.subr.mxu0 0.0
        %1741 = vmatpush2.msra.mxu0 0.0
        %1742 = vmatprep.subr.mxu0 0.0
        %1743 = vmatpush2.msra.mxu0 0.0
        %1744 = vmatprep.subr.mxu0 0.0
        %1745 = vmatpush2.msra.mxu0 0.0
        %1746 = vmatprep.subr.mxu0 0.0
        %1747 = vmatpush2.msra.mxu0 0.0
        %1748 = vmatprep.subr.mxu0 0.0
        %1749 = vmatpush2.msra.mxu0 0.0
        %1750 = vmatprep.subr.mxu0 0.0
        %1751 = vmatpush2.msra.mxu0 0.0
        %1752 = vmatprep.subr.mxu0 0.0
        %1753 = vmatpush2.msra.mxu0 0.0
        %1754 = vmatprep.subr.mxu0 0.0
        %1755 = vmatpush2.msra.mxu0 0.0
        %1756 = vmatprep.subr.mxu0 0.0
        %1757 = vmatpush2.msra.mxu0 0.0
        %1758 = vmatprep.subr.mxu0 0.0
        %1759 = vmatpush2.msra.mxu0 0.0
        %1760 = vmatprep.subr.mxu0 0.0
        %1761 = vmatpush2.msra.mxu0 0.0
        %1762 = vmatprep.subr.mxu0 0.0
        %1763 = vmatpush2.msra.mxu0 0.0
        %1764 = vmatprep.mubr.f32.mxu0 0.0
        %1765 = vmatmul.mubr.f32.gmra.mxu0 %v1003
        %v1766 = vpop.f32.mrf.mxu0
        %v1767 = vadd.f32 0.0, %v1766
        %v1768 = vpop.f32.mrf.mxu0
        %v1769 = vadd.f32 0.0, %v1768
        %1770 = vmatprep.mubr.f32.mxu0 0.0
        %1771 = vmatmul.mubr.f32.gmra.mxu0 %v1006
        %v1772 = vpop.f32.mrf.mxu0
        %v1773 = vadd.f32 0.0, %v1772
        %v1774 = vpop.f32.mrf.mxu0
        %v1775 = vadd.f32 0.0, %v1774
        %1776 = vmatprep.mubr.f32.mxu0 0.0
        %1777 = vmatmul.mubr.f32.gmra.mxu0 %v1009
        %v1778 = vpop.f32.mrf.mxu0
        %v1779 = vadd.f32 0.0, %v1778
        %v1780 = vpop.f32.mrf.mxu0
        %v1781 = vadd.f32 0.0, %v1780
        %1782 = vmatprep.mubr.f32.mxu0 0.0
        %1783 = vmatmul.mubr.f32.gmra.mxu0 %v1012
        %v1784 = vpop.f32.mrf.mxu0
        %v1785 = vadd.f32 0.0, %v1784
        %v1786 = vpop.f32.mrf.mxu0
        %v1787 = vadd.f32 0.0, %v1786
        %1788 = vdwg.mxu0
        %s1789 = scalar_lea.vmem [#allocation3], 512
        %v1790 = vld [vmem:[%s1789] sm:$0xff]
        %v1791 = vld [vmem:[%s1789 + $0x8] sm:$0xff]
        %v1792 = vld [vmem:[%s1789 + $0x10] sm:$0xff]
        %v1793 = vld [vmem:[%s1789 + $0x18] sm:$0xff]
        %v1794 = vld [vmem:[%s1789 + $0x20] sm:$0xff]
        %v1795 = vld [vmem:[%s1789 + $0x28] sm:$0xff]
        %v1796 = vld [vmem:[%s1789 + $0x30] sm:$0xff]
        %v1797 = vld [vmem:[%s1789 + $0x38] sm:$0xff]
        %1798 = vmatprep.subr.mxu0 0.0
        %1799 = vmatpush1.msra.mxu0 0.0
        %1800 = vmatprep.subr.mxu0 0.0
        %1801 = vmatpush1.msra.mxu0 0.0
        %1802 = vmatprep.subr.mxu0 0.0
        %1803 = vmatpush1.msra.mxu0 0.0
        %1804 = vmatprep.subr.mxu0 0.0
        %1805 = vmatpush1.msra.mxu0 0.0
        %1806 = vmatprep.subr.mxu0 0.0
        %1807 = vmatpush1.msra.mxu0 0.0
        %1808 = vmatprep.subr.mxu0 0.0
        %1809 = vmatpush1.msra.mxu0 0.0
        %1810 = vmatprep.subr.mxu0 0.0
        %1811 = vmatpush1.msra.mxu0 0.0
        %1812 = vmatprep.subr.mxu0 0.0
        %1813 = vmatpush1.msra.mxu0 0.0
        %1814 = vmatprep.subr.mxu0 0.0
        %1815 = vmatpush1.msra.mxu0 0.0
        %1816 = vmatprep.subr.mxu0 0.0
        %1817 = vmatpush1.msra.mxu0 0.0
        %1818 = vmatprep.subr.mxu0 0.0
        %1819 = vmatpush1.msra.mxu0 0.0
        %1820 = vmatprep.subr.mxu0 0.0
        %1821 = vmatpush1.msra.mxu0 0.0
        %1822 = vmatprep.subr.mxu0 %v1797
        %1823 = vmatpush1.msra.mxu0 %v1796
        %1824 = vmatprep.subr.mxu0 %v1795
        %1825 = vmatpush1.msra.mxu0 %v1794
        %1826 = vmatprep.subr.mxu0 %v1793
        %1827 = vmatpush1.msra.mxu0 %v1792
        %1828 = vmatprep.subr.mxu0 %v1791
        %1829 = vmatpush1.msra.mxu0 %v1790
        %1830 = vmatprep.subr.mxu0 0.0
        %1831 = vmatpush2.msra.mxu0 0.0
        %1832 = vmatprep.subr.mxu0 0.0
        %1833 = vmatpush2.msra.mxu0 0.0
        %1834 = vmatprep.subr.mxu0 0.0
        %1835 = vmatpush2.msra.mxu0 0.0
        %1836 = vmatprep.subr.mxu0 0.0
        %1837 = vmatpush2.msra.mxu0 0.0
        %1838 = vmatprep.subr.mxu0 0.0
        %1839 = vmatpush2.msra.mxu0 0.0
        %1840 = vmatprep.subr.mxu0 0.0
        %1841 = vmatpush2.msra.mxu0 0.0
        %1842 = vmatprep.subr.mxu0 0.0
        %1843 = vmatpush2.msra.mxu0 0.0
        %1844 = vmatprep.subr.mxu0 0.0
        %1845 = vmatpush2.msra.mxu0 0.0
        %1846 = vmatprep.subr.mxu0 0.0
        %1847 = vmatpush2.msra.mxu0 0.0
        %1848 = vmatprep.subr.mxu0 0.0
        %1849 = vmatpush2.msra.mxu0 0.0
        %1850 = vmatprep.subr.mxu0 0.0
        %1851 = vmatpush2.msra.mxu0 0.0
        %1852 = vmatprep.subr.mxu0 0.0
        %1853 = vmatpush2.msra.mxu0 0.0
        %1854 = vmatprep.subr.mxu0 0.0
        %1855 = vmatpush2.msra.mxu0 0.0
        %1856 = vmatprep.subr.mxu0 0.0
        %1857 = vmatpush2.msra.mxu0 0.0
        %1858 = vmatprep.subr.mxu0 0.0
        %1859 = vmatpush2.msra.mxu0 0.0
        %1860 = vmatprep.subr.mxu0 0.0
        %1861 = vmatpush2.msra.mxu0 0.0
        %1862 = vmatprep.mubr.f32.mxu0 0.0
        %1863 = vmatmul.mubr.f32.gmra.mxu0 %v1003
        %v1864 = vpop.f32.mrf.mxu0
        %v1865 = vadd.f32 0.0, %v1864
        %v1866 = vpop.f32.mrf.mxu0
        %v1867 = vadd.f32 0.0, %v1866
        %1868 = vmatprep.mubr.f32.mxu0 0.0
        %1869 = vmatmul.mubr.f32.gmra.mxu0 %v1006
        %v1870 = vpop.f32.mrf.mxu0
        %v1871 = vadd.f32 0.0, %v1870
        %v1872 = vpop.f32.mrf.mxu0
        %v1873 = vadd.f32 0.0, %v1872
        %1874 = vmatprep.mubr.f32.mxu0 0.0
        %1875 = vmatmul.mubr.f32.gmra.mxu0 %v1009
        %v1876 = vpop.f32.mrf.mxu0
        %v1877 = vadd.f32 0.0, %v1876
        %v1878 = vpop.f32.mrf.mxu0
        %v1879 = vadd.f32 0.0, %v1878
        %1880 = vmatprep.mubr.f32.mxu0 0.0
        %1881 = vmatmul.mubr.f32.gmra.mxu0 %v1012
        %v1882 = vpop.f32.mrf.mxu0
        %v1883 = vadd.f32 0.0, %v1882
        %v1884 = vpop.f32.mrf.mxu0
        %v1885 = vadd.f32 0.0, %v1884
        %1886 = vdwg.mxu0
        %s1887 = scalar_lea.vmem [#allocation3], 576
        %v1888 = vld [vmem:[%s1887] sm:$0xff]
        %v1889 = vld [vmem:[%s1887 + $0x8] sm:$0xff]
        %v1890 = vld [vmem:[%s1887 + $0x10] sm:$0xff]
        %v1891 = vld [vmem:[%s1887 + $0x18] sm:$0xff]
        %v1892 = vld [vmem:[%s1887 + $0x20] sm:$0xff]
        %v1893 = vld [vmem:[%s1887 + $0x28] sm:$0xff]
        %v1894 = vld [vmem:[%s1887 + $0x30] sm:$0xff]
        %v1895 = vld [vmem:[%s1887 + $0x38] sm:$0xff]
        %1896 = vmatprep.subr.mxu0 0.0
        %1897 = vmatpush1.msra.mxu0 0.0
        %1898 = vmatprep.subr.mxu0 0.0
        %1899 = vmatpush1.msra.mxu0 0.0
        %1900 = vmatprep.subr.mxu0 0.0
        %1901 = vmatpush1.msra.mxu0 0.0
        %1902 = vmatprep.subr.mxu0 0.0
        %1903 = vmatpush1.msra.mxu0 0.0
        %1904 = vmatprep.subr.mxu0 0.0
        %1905 = vmatpush1.msra.mxu0 0.0
        %1906 = vmatprep.subr.mxu0 0.0
        %1907 = vmatpush1.msra.mxu0 0.0
        %1908 = vmatprep.subr.mxu0 0.0
        %1909 = vmatpush1.msra.mxu0 0.0
        %1910 = vmatprep.subr.mxu0 0.0
        %1911 = vmatpush1.msra.mxu0 0.0
        %1912 = vmatprep.subr.mxu0 0.0
        %1913 = vmatpush1.msra.mxu0 0.0
        %1914 = vmatprep.subr.mxu0 0.0
        %1915 = vmatpush1.msra.mxu0 0.0
        %1916 = vmatprep.subr.mxu0 0.0
        %1917 = vmatpush1.msra.mxu0 0.0
        %1918 = vmatprep.subr.mxu0 0.0
        %1919 = vmatpush1.msra.mxu0 0.0
        %1920 = vmatprep.subr.mxu0 %v1895
        %1921 = vmatpush1.msra.mxu0 %v1894
        %1922 = vmatprep.subr.mxu0 %v1893
        %1923 = vmatpush1.msra.mxu0 %v1892
        %1924 = vmatprep.subr.mxu0 %v1891
        %1925 = vmatpush1.msra.mxu0 %v1890
        %1926 = vmatprep.subr.mxu0 %v1889
        %1927 = vmatpush1.msra.mxu0 %v1888
        %1928 = vmatprep.subr.mxu0 0.0
        %1929 = vmatpush2.msra.mxu0 0.0
        %1930 = vmatprep.subr.mxu0 0.0
        %1931 = vmatpush2.msra.mxu0 0.0
        %1932 = vmatprep.subr.mxu0 0.0
        %1933 = vmatpush2.msra.mxu0 0.0
        %1934 = vmatprep.subr.mxu0 0.0
        %1935 = vmatpush2.msra.mxu0 0.0
        %1936 = vmatprep.subr.mxu0 0.0
        %1937 = vmatpush2.msra.mxu0 0.0
        %1938 = vmatprep.subr.mxu0 0.0
        %1939 = vmatpush2.msra.mxu0 0.0
        %1940 = vmatprep.subr.mxu0 0.0
        %1941 = vmatpush2.msra.mxu0 0.0
        %1942 = vmatprep.subr.mxu0 0.0
        %1943 = vmatpush2.msra.mxu0 0.0
        %1944 = vmatprep.subr.mxu0 0.0
        %1945 = vmatpush2.msra.mxu0 0.0
        %1946 = vmatprep.subr.mxu0 0.0
        %1947 = vmatpush2.msra.mxu0 0.0
        %1948 = vmatprep.subr.mxu0 0.0
        %1949 = vmatpush2.msra.mxu0 0.0
        %1950 = vmatprep.subr.mxu0 0.0
        %1951 = vmatpush2.msra.mxu0 0.0
        %1952 = vmatprep.subr.mxu0 0.0
        %1953 = vmatpush2.msra.mxu0 0.0
        %1954 = vmatprep.subr.mxu0 0.0
        %1955 = vmatpush2.msra.mxu0 0.0
        %1956 = vmatprep.subr.mxu0 0.0
        %1957 = vmatpush2.msra.mxu0 0.0
        %1958 = vmatprep.subr.mxu0 0.0
        %1959 = vmatpush2.msra.mxu0 0.0
        %1960 = vmatprep.mubr.f32.mxu0 0.0
        %1961 = vmatmul.mubr.f32.gmra.mxu0 %v1003
        %v1962 = vpop.f32.mrf.mxu0
        %v1963 = vadd.f32 0.0, %v1962
        %v1964 = vpop.f32.mrf.mxu0
        %v1965 = vadd.f32 0.0, %v1964
        %1966 = vmatprep.mubr.f32.mxu0 0.0
        %1967 = vmatmul.mubr.f32.gmra.mxu0 %v1006
        %v1968 = vpop.f32.mrf.mxu0
        %v1969 = vadd.f32 0.0, %v1968
        %v1970 = vpop.f32.mrf.mxu0
        %v1971 = vadd.f32 0.0, %v1970
        %1972 = vmatprep.mubr.f32.mxu0 0.0
        %1973 = vmatmul.mubr.f32.gmra.mxu0 %v1009
        %v1974 = vpop.f32.mrf.mxu0
        %v1975 = vadd.f32 0.0, %v1974
        %v1976 = vpop.f32.mrf.mxu0
        %v1977 = vadd.f32 0.0, %v1976
        %1978 = vmatprep.mubr.f32.mxu0 0.0
        %1979 = vmatmul.mubr.f32.gmra.mxu0 %v1012
        %v1980 = vpop.f32.mrf.mxu0
        %v1981 = vadd.f32 0.0, %v1980
        %v1982 = vpop.f32.mrf.mxu0
        %v1983 = vadd.f32 0.0, %v1982
        %1984 = vdwg.mxu0
        %s1985 = scalar_lea.vmem [#allocation3], 640
        %v1986 = vld [vmem:[%s1985] sm:$0xff]
        %v1987 = vld [vmem:[%s1985 + $0x8] sm:$0xff]
        %v1988 = vld [vmem:[%s1985 + $0x10] sm:$0xff]
        %v1989 = vld [vmem:[%s1985 + $0x18] sm:$0xff]
        %v1990 = vld [vmem:[%s1985 + $0x20] sm:$0xff]
        %v1991 = vld [vmem:[%s1985 + $0x28] sm:$0xff]
        %v1992 = vld [vmem:[%s1985 + $0x30] sm:$0xff]
        %v1993 = vld [vmem:[%s1985 + $0x38] sm:$0xff]
        %1994 = vmatprep.subr.mxu0 0.0
        %1995 = vmatpush1.msra.mxu0 0.0
        %1996 = vmatprep.subr.mxu0 0.0
        %1997 = vmatpush1.msra.mxu0 0.0
        %1998 = vmatprep.subr.mxu0 0.0
        %1999 = vmatpush1.msra.mxu0 0.0
        %2000 = vmatprep.subr.mxu0 0.0
        %2001 = vmatpush1.msra.mxu0 0.0
        %2002 = vmatprep.subr.mxu0 0.0
        %2003 = vmatpush1.msra.mxu0 0.0
        %2004 = vmatprep.subr.mxu0 0.0
        %2005 = vmatpush1.msra.mxu0 0.0
        %2006 = vmatprep.subr.mxu0 0.0
        %2007 = vmatpush1.msra.mxu0 0.0
        %2008 = vmatprep.subr.mxu0 0.0
        %2009 = vmatpush1.msra.mxu0 0.0
        %2010 = vmatprep.subr.mxu0 0.0
        %2011 = vmatpush1.msra.mxu0 0.0
        %2012 = vmatprep.subr.mxu0 0.0
        %2013 = vmatpush1.msra.mxu0 0.0
        %2014 = vmatprep.subr.mxu0 0.0
        %2015 = vmatpush1.msra.mxu0 0.0
        %2016 = vmatprep.subr.mxu0 0.0
        %2017 = vmatpush1.msra.mxu0 0.0
        %2018 = vmatprep.subr.mxu0 %v1993
        %2019 = vmatpush1.msra.mxu0 %v1992
        %2020 = vmatprep.subr.mxu0 %v1991
        %2021 = vmatpush1.msra.mxu0 %v1990
        %2022 = vmatprep.subr.mxu0 %v1989
        %2023 = vmatpush1.msra.mxu0 %v1988
        %2024 = vmatprep.subr.mxu0 %v1987
        %2025 = vmatpush1.msra.mxu0 %v1986
        %2026 = vmatprep.subr.mxu0 0.0
        %2027 = vmatpush2.msra.mxu0 0.0
        %2028 = vmatprep.subr.mxu0 0.0
        %2029 = vmatpush2.msra.mxu0 0.0
        %2030 = vmatprep.subr.mxu0 0.0
        %2031 = vmatpush2.msra.mxu0 0.0
        %2032 = vmatprep.subr.mxu0 0.0
        %2033 = vmatpush2.msra.mxu0 0.0
        %2034 = vmatprep.subr.mxu0 0.0
        %2035 = vmatpush2.msra.mxu0 0.0
        %2036 = vmatprep.subr.mxu0 0.0
        %2037 = vmatpush2.msra.mxu0 0.0
        %2038 = vmatprep.subr.mxu0 0.0
        %2039 = vmatpush2.msra.mxu0 0.0
        %2040 = vmatprep.subr.mxu0 0.0
        %2041 = vmatpush2.msra.mxu0 0.0
        %2042 = vmatprep.subr.mxu0 0.0
        %2043 = vmatpush2.msra.mxu0 0.0
        %2044 = vmatprep.subr.mxu0 0.0
        %2045 = vmatpush2.msra.mxu0 0.0
        %2046 = vmatprep.subr.mxu0 0.0
        %2047 = vmatpush2.msra.mxu0 0.0
        %2048 = vmatprep.subr.mxu0 0.0
        %2049 = vmatpush2.msra.mxu0 0.0
        %2050 = vmatprep.subr.mxu0 0.0
        %2051 = vmatpush2.msra.mxu0 0.0
        %2052 = vmatprep.subr.mxu0 0.0
        %2053 = vmatpush2.msra.mxu0 0.0
        %2054 = vmatprep.subr.mxu0 0.0
        %2055 = vmatpush2.msra.mxu0 0.0
        %2056 = vmatprep.subr.mxu0 0.0
        %2057 = vmatpush2.msra.mxu0 0.0
        %2058 = vmatprep.mubr.f32.mxu0 0.0
        %2059 = vmatmul.mubr.f32.gmra.mxu0 %v1003
        %v2060 = vpop.f32.mrf.mxu0
        %v2061 = vadd.f32 0.0, %v2060
        %v2062 = vpop.f32.mrf.mxu0
        %v2063 = vadd.f32 0.0, %v2062
        %2064 = vmatprep.mubr.f32.mxu0 0.0
        %2065 = vmatmul.mubr.f32.gmra.mxu0 %v1006
        %v2066 = vpop.f32.mrf.mxu0
        %v2067 = vadd.f32 0.0, %v2066
        %v2068 = vpop.f32.mrf.mxu0
        %v2069 = vadd.f32 0.0, %v2068
        %2070 = vmatprep.mubr.f32.mxu0 0.0
        %2071 = vmatmul.mubr.f32.gmra.mxu0 %v1009
        %v2072 = vpop.f32.mrf.mxu0
        %v2073 = vadd.f32 0.0, %v2072
        %v2074 = vpop.f32.mrf.mxu0
        %v2075 = vadd.f32 0.0, %v2074
        %2076 = vmatprep.mubr.f32.mxu0 0.0
        %2077 = vmatmul.mubr.f32.gmra.mxu0 %v1012
        %v2078 = vpop.f32.mrf.mxu0
        %v2079 = vadd.f32 0.0, %v2078
        %v2080 = vpop.f32.mrf.mxu0
        %v2081 = vadd.f32 0.0, %v2080
        %2082 = vdwg.mxu0
        %s2083 = scalar_lea.vmem [#allocation3], 704
        %v2084 = vld [vmem:[%s2083] sm:$0xff]
        %v2085 = vld [vmem:[%s2083 + $0x8] sm:$0xff]
        %v2086 = vld [vmem:[%s2083 + $0x10] sm:$0xff]
        %v2087 = vld [vmem:[%s2083 + $0x18] sm:$0xff]
        %v2088 = vld [vmem:[%s2083 + $0x20] sm:$0xff]
        %v2089 = vld [vmem:[%s2083 + $0x28] sm:$0xff]
        %v2090 = vld [vmem:[%s2083 + $0x30] sm:$0xff]
        %v2091 = vld [vmem:[%s2083 + $0x38] sm:$0xff]
        %2092 = vmatprep.subr.mxu0 0.0
        %2093 = vmatpush1.msra.mxu0 0.0
        %2094 = vmatprep.subr.mxu0 0.0
        %2095 = vmatpush1.msra.mxu0 0.0
        %2096 = vmatprep.subr.mxu0 0.0
        %2097 = vmatpush1.msra.mxu0 0.0
        %2098 = vmatprep.subr.mxu0 0.0
        %2099 = vmatpush1.msra.mxu0 0.0
        %2100 = vmatprep.subr.mxu0 0.0
        %2101 = vmatpush1.msra.mxu0 0.0
        %2102 = vmatprep.subr.mxu0 0.0
        %2103 = vmatpush1.msra.mxu0 0.0
        %2104 = vmatprep.subr.mxu0 0.0
        %2105 = vmatpush1.msra.mxu0 0.0
        %2106 = vmatprep.subr.mxu0 0.0
        %2107 = vmatpush1.msra.mxu0 0.0
        %2108 = vmatprep.subr.mxu0 0.0
        %2109 = vmatpush1.msra.mxu0 0.0
        %2110 = vmatprep.subr.mxu0 0.0
        %2111 = vmatpush1.msra.mxu0 0.0
        %2112 = vmatprep.subr.mxu0 0.0
        %2113 = vmatpush1.msra.mxu0 0.0
        %2114 = vmatprep.subr.mxu0 0.0
        %2115 = vmatpush1.msra.mxu0 0.0
        %2116 = vmatprep.subr.mxu0 %v2091
        %2117 = vmatpush1.msra.mxu0 %v2090
        %2118 = vmatprep.subr.mxu0 %v2089
        %2119 = vmatpush1.msra.mxu0 %v2088
        %2120 = vmatprep.subr.mxu0 %v2087
        %2121 = vmatpush1.msra.mxu0 %v2086
        %2122 = vmatprep.subr.mxu0 %v2085
        %2123 = vmatpush1.msra.mxu0 %v2084
        %2124 = vmatprep.subr.mxu0 0.0
        %2125 = vmatpush2.msra.mxu0 0.0
        %2126 = vmatprep.subr.mxu0 0.0
        %2127 = vmatpush2.msra.mxu0 0.0
        %2128 = vmatprep.subr.mxu0 0.0
        %2129 = vmatpush2.msra.mxu0 0.0
        %2130 = vmatprep.subr.mxu0 0.0
        %2131 = vmatpush2.msra.mxu0 0.0
        %2132 = vmatprep.subr.mxu0 0.0
        %2133 = vmatpush2.msra.mxu0 0.0
        %2134 = vmatprep.subr.mxu0 0.0
        %2135 = vmatpush2.msra.mxu0 0.0
        %2136 = vmatprep.subr.mxu0 0.0
        %2137 = vmatpush2.msra.mxu0 0.0
        %2138 = vmatprep.subr.mxu0 0.0
        %2139 = vmatpush2.msra.mxu0 0.0
        %2140 = vmatprep.subr.mxu0 0.0
        %2141 = vmatpush2.msra.mxu0 0.0
        %2142 = vmatprep.subr.mxu0 0.0
        %2143 = vmatpush2.msra.mxu0 0.0
        %2144 = vmatprep.subr.mxu0 0.0
        %2145 = vmatpush2.msra.mxu0 0.0
        %2146 = vmatprep.subr.mxu0 0.0
        %2147 = vmatpush2.msra.mxu0 0.0
        %2148 = vmatprep.subr.mxu0 0.0
        %2149 = vmatpush2.msra.mxu0 0.0
        %2150 = vmatprep.subr.mxu0 0.0
        %2151 = vmatpush2.msra.mxu0 0.0
        %2152 = vmatprep.subr.mxu0 0.0
        %2153 = vmatpush2.msra.mxu0 0.0
        %2154 = vmatprep.subr.mxu0 0.0
        %2155 = vmatpush2.msra.mxu0 0.0
        %2156 = vmatprep.mubr.f32.mxu0 0.0
        %2157 = vmatmul.mubr.f32.gmra.mxu0 %v1003
        %v2158 = vpop.f32.mrf.mxu0
        %v2159 = vadd.f32 0.0, %v2158
        %v2160 = vpop.f32.mrf.mxu0
        %v2161 = vadd.f32 0.0, %v2160
        %2162 = vmatprep.mubr.f32.mxu0 0.0
        %2163 = vmatmul.mubr.f32.gmra.mxu0 %v1006
        %v2164 = vpop.f32.mrf.mxu0
        %v2165 = vadd.f32 0.0, %v2164
        %v2166 = vpop.f32.mrf.mxu0
        %v2167 = vadd.f32 0.0, %v2166
        %2168 = vmatprep.mubr.f32.mxu0 0.0
        %2169 = vmatmul.mubr.f32.gmra.mxu0 %v1009
        %v2170 = vpop.f32.mrf.mxu0
        %v2171 = vadd.f32 0.0, %v2170
        %v2172 = vpop.f32.mrf.mxu0
        %v2173 = vadd.f32 0.0, %v2172
        %2174 = vmatprep.mubr.f32.mxu0 0.0
        %2175 = vmatmul.mubr.f32.gmra.mxu0 %v1012
        %v2176 = vpop.f32.mrf.mxu0
        %v2177 = vadd.f32 0.0, %v2176
        %v2178 = vpop.f32.mrf.mxu0
        %v2179 = vadd.f32 0.0, %v2178
        %2180 = vdwg.mxu0
        %s2181 = scalar_lea.vmem [#allocation3], 768
        %v2182 = vld [vmem:[%s2181] sm:$0xff]
        %v2183 = vld [vmem:[%s2181 + $0x8] sm:$0xff]
        %v2184 = vld [vmem:[%s2181 + $0x10] sm:$0xff]
        %v2185 = vld [vmem:[%s2181 + $0x18] sm:$0xff]
        %v2186 = vld [vmem:[%s2181 + $0x20] sm:$0xff]
        %v2187 = vld [vmem:[%s2181 + $0x28] sm:$0xff]
        %v2188 = vld [vmem:[%s2181 + $0x30] sm:$0xff]
        %v2189 = vld [vmem:[%s2181 + $0x38] sm:$0xff]
        %2190 = vmatprep.subr.mxu0 0.0
        %2191 = vmatpush1.msra.mxu0 0.0
        %2192 = vmatprep.subr.mxu0 0.0
        %2193 = vmatpush1.msra.mxu0 0.0
        %2194 = vmatprep.subr.mxu0 0.0
        %2195 = vmatpush1.msra.mxu0 0.0
        %2196 = vmatprep.subr.mxu0 0.0
        %2197 = vmatpush1.msra.mxu0 0.0
        %2198 = vmatprep.subr.mxu0 0.0
        %2199 = vmatpush1.msra.mxu0 0.0
        %2200 = vmatprep.subr.mxu0 0.0
        %2201 = vmatpush1.msra.mxu0 0.0
        %2202 = vmatprep.subr.mxu0 0.0
        %2203 = vmatpush1.msra.mxu0 0.0
        %2204 = vmatprep.subr.mxu0 0.0
        %2205 = vmatpush1.msra.mxu0 0.0
        %2206 = vmatprep.subr.mxu0 0.0
        %2207 = vmatpush1.msra.mxu0 0.0
        %2208 = vmatprep.subr.mxu0 0.0
        %2209 = vmatpush1.msra.mxu0 0.0
        %2210 = vmatprep.subr.mxu0 0.0
        %2211 = vmatpush1.msra.mxu0 0.0
        %2212 = vmatprep.subr.mxu0 0.0
        %2213 = vmatpush1.msra.mxu0 0.0
        %2214 = vmatprep.subr.mxu0 %v2189
        %2215 = vmatpush1.msra.mxu0 %v2188
        %2216 = vmatprep.subr.mxu0 %v2187
        %2217 = vmatpush1.msra.mxu0 %v2186
        %2218 = vmatprep.subr.mxu0 %v2185
        %2219 = vmatpush1.msra.mxu0 %v2184
        %2220 = vmatprep.subr.mxu0 %v2183
        %2221 = vmatpush1.msra.mxu0 %v2182
        %2222 = vmatprep.subr.mxu0 0.0
        %2223 = vmatpush2.msra.mxu0 0.0
        %2224 = vmatprep.subr.mxu0 0.0
        %2225 = vmatpush2.msra.mxu0 0.0
        %2226 = vmatprep.subr.mxu0 0.0
        %2227 = vmatpush2.msra.mxu0 0.0
        %2228 = vmatprep.subr.mxu0 0.0
        %2229 = vmatpush2.msra.mxu0 0.0
        %2230 = vmatprep.subr.mxu0 0.0
        %2231 = vmatpush2.msra.mxu0 0.0
        %2232 = vmatprep.subr.mxu0 0.0
        %2233 = vmatpush2.msra.mxu0 0.0
        %2234 = vmatprep.subr.mxu0 0.0
        %2235 = vmatpush2.msra.mxu0 0.0
        %2236 = vmatprep.subr.mxu0 0.0
        %2237 = vmatpush2.msra.mxu0 0.0
        %2238 = vmatprep.subr.mxu0 0.0
        %2239 = vmatpush2.msra.mxu0 0.0
        %2240 = vmatprep.subr.mxu0 0.0
        %2241 = vmatpush2.msra.mxu0 0.0
        %2242 = vmatprep.subr.mxu0 0.0
        %2243 = vmatpush2.msra.mxu0 0.0
        %2244 = vmatprep.subr.mxu0 0.0
        %2245 = vmatpush2.msra.mxu0 0.0
        %2246 = vmatprep.subr.mxu0 0.0
        %2247 = vmatpush2.msra.mxu0 0.0
        %2248 = vmatprep.subr.mxu0 0.0
        %2249 = vmatpush2.msra.mxu0 0.0
        %2250 = vmatprep.subr.mxu0 0.0
        %2251 = vmatpush2.msra.mxu0 0.0
        %2252 = vmatprep.subr.mxu0 0.0
        %2253 = vmatpush2.msra.mxu0 0.0
        %2254 = vmatprep.mubr.f32.mxu0 0.0
        %2255 = vmatmul.mubr.f32.gmra.mxu0 %v1003
        %v2256 = vpop.f32.mrf.mxu0
        %v2257 = vadd.f32 0.0, %v2256
        %v2258 = vpop.f32.mrf.mxu0
        %v2259 = vadd.f32 0.0, %v2258
        %2260 = vmatprep.mubr.f32.mxu0 0.0
        %2261 = vmatmul.mubr.f32.gmra.mxu0 %v1006
        %v2262 = vpop.f32.mrf.mxu0
        %v2263 = vadd.f32 0.0, %v2262
        %v2264 = vpop.f32.mrf.mxu0
        %v2265 = vadd.f32 0.0, %v2264
        %2266 = vmatprep.mubr.f32.mxu0 0.0
        %2267 = vmatmul.mubr.f32.gmra.mxu0 %v1009
        %v2268 = vpop.f32.mrf.mxu0
        %v2269 = vadd.f32 0.0, %v2268
        %v2270 = vpop.f32.mrf.mxu0
        %v2271 = vadd.f32 0.0, %v2270
        %2272 = vmatprep.mubr.f32.mxu0 0.0
        %2273 = vmatmul.mubr.f32.gmra.mxu0 %v1012
        %v2274 = vpop.f32.mrf.mxu0
        %v2275 = vadd.f32 0.0, %v2274
        %v2276 = vpop.f32.mrf.mxu0
        %v2277 = vadd.f32 0.0, %v2276
        %2278 = vdwg.mxu0
        %s2279 = scalar_lea.vmem [#allocation3], 832
        %v2280 = vld [vmem:[%s2279] sm:$0xff]
        %v2281 = vld [vmem:[%s2279 + $0x8] sm:$0xff]
        %v2282 = vld [vmem:[%s2279 + $0x10] sm:$0xff]
        %v2283 = vld [vmem:[%s2279 + $0x18] sm:$0xff]
        %v2284 = vld [vmem:[%s2279 + $0x20] sm:$0xff]
        %v2285 = vld [vmem:[%s2279 + $0x28] sm:$0xff]
        %v2286 = vld [vmem:[%s2279 + $0x30] sm:$0xff]
        %v2287 = vld [vmem:[%s2279 + $0x38] sm:$0xff]
        %2288 = vmatprep.subr.mxu0 0.0
        %2289 = vmatpush1.msra.mxu0 0.0
        %2290 = vmatprep.subr.mxu0 0.0
        %2291 = vmatpush1.msra.mxu0 0.0
        %2292 = vmatprep.subr.mxu0 0.0
        %2293 = vmatpush1.msra.mxu0 0.0
        %2294 = vmatprep.subr.mxu0 0.0
        %2295 = vmatpush1.msra.mxu0 0.0
        %2296 = vmatprep.subr.mxu0 0.0
        %2297 = vmatpush1.msra.mxu0 0.0
        %2298 = vmatprep.subr.mxu0 0.0
        %2299 = vmatpush1.msra.mxu0 0.0
        %2300 = vmatprep.subr.mxu0 0.0
        %2301 = vmatpush1.msra.mxu0 0.0
        %2302 = vmatprep.subr.mxu0 0.0
        %2303 = vmatpush1.msra.mxu0 0.0
        %2304 = vmatprep.subr.mxu0 0.0
        %2305 = vmatpush1.msra.mxu0 0.0
        %2306 = vmatprep.subr.mxu0 0.0
        %2307 = vmatpush1.msra.mxu0 0.0
        %2308 = vmatprep.subr.mxu0 0.0
        %2309 = vmatpush1.msra.mxu0 0.0
        %2310 = vmatprep.subr.mxu0 0.0
        %2311 = vmatpush1.msra.mxu0 0.0
        %2312 = vmatprep.subr.mxu0 %v2287
        %2313 = vmatpush1.msra.mxu0 %v2286
        %2314 = vmatprep.subr.mxu0 %v2285
        %2315 = vmatpush1.msra.mxu0 %v2284
        %2316 = vmatprep.subr.mxu0 %v2283
        %2317 = vmatpush1.msra.mxu0 %v2282
        %2318 = vmatprep.subr.mxu0 %v2281
        %2319 = vmatpush1.msra.mxu0 %v2280
        %2320 = vmatprep.subr.mxu0 0.0
        %2321 = vmatpush2.msra.mxu0 0.0
        %2322 = vmatprep.subr.mxu0 0.0
        %2323 = vmatpush2.msra.mxu0 0.0
        %2324 = vmatprep.subr.mxu0 0.0
        %2325 = vmatpush2.msra.mxu0 0.0
        %2326 = vmatprep.subr.mxu0 0.0
        %2327 = vmatpush2.msra.mxu0 0.0
        %2328 = vmatprep.subr.mxu0 0.0
        %2329 = vmatpush2.msra.mxu0 0.0
        %2330 = vmatprep.subr.mxu0 0.0
        %2331 = vmatpush2.msra.mxu0 0.0
        %2332 = vmatprep.subr.mxu0 0.0
        %2333 = vmatpush2.msra.mxu0 0.0
        %2334 = vmatprep.subr.mxu0 0.0
        %2335 = vmatpush2.msra.mxu0 0.0
        %2336 = vmatprep.subr.mxu0 0.0
        %2337 = vmatpush2.msra.mxu0 0.0
        %2338 = vmatprep.subr.mxu0 0.0
        %2339 = vmatpush2.msra.mxu0 0.0
        %2340 = vmatprep.subr.mxu0 0.0
        %2341 = vmatpush2.msra.mxu0 0.0
        %2342 = vmatprep.subr.mxu0 0.0
        %2343 = vmatpush2.msra.mxu0 0.0
        %2344 = vmatprep.subr.mxu0 0.0
        %2345 = vmatpush2.msra.mxu0 0.0
        %2346 = vmatprep.subr.mxu0 0.0
        %2347 = vmatpush2.msra.mxu0 0.0
        %2348 = vmatprep.subr.mxu0 0.0
        %2349 = vmatpush2.msra.mxu0 0.0
        %2350 = vmatprep.subr.mxu0 0.0
        %2351 = vmatpush2.msra.mxu0 0.0
        %2352 = vmatprep.mubr.f32.mxu0 0.0
        %2353 = vmatmul.mubr.f32.gmra.mxu0 %v1003
        %v2354 = vpop.f32.mrf.mxu0
        %v2355 = vadd.f32 0.0, %v2354
        %v2356 = vpop.f32.mrf.mxu0
        %v2357 = vadd.f32 0.0, %v2356
        %2358 = vmatprep.mubr.f32.mxu0 0.0
        %2359 = vmatmul.mubr.f32.gmra.mxu0 %v1006
        %v2360 = vpop.f32.mrf.mxu0
        %v2361 = vadd.f32 0.0, %v2360
        %v2362 = vpop.f32.mrf.mxu0
        %v2363 = vadd.f32 0.0, %v2362
        %2364 = vmatprep.mubr.f32.mxu0 0.0
        %2365 = vmatmul.mubr.f32.gmra.mxu0 %v1009
        %v2366 = vpop.f32.mrf.mxu0
        %v2367 = vadd.f32 0.0, %v2366
        %v2368 = vpop.f32.mrf.mxu0
        %v2369 = vadd.f32 0.0, %v2368
        %2370 = vmatprep.mubr.f32.mxu0 0.0
        %2371 = vmatmul.mubr.f32.gmra.mxu0 %v1012
        %v2372 = vpop.f32.mrf.mxu0
        %v2373 = vadd.f32 0.0, %v2372
        %v2374 = vpop.f32.mrf.mxu0
        %v2375 = vadd.f32 0.0, %v2374
        %2376 = vdwg.mxu0
        %s2377 = scalar_lea.vmem [#allocation3], 896
        %v2378 = vld [vmem:[%s2377] sm:$0xff]
        %v2379 = vld [vmem:[%s2377 + $0x8] sm:$0xff]
        %v2380 = vld [vmem:[%s2377 + $0x10] sm:$0xff]
        %v2381 = vld [vmem:[%s2377 + $0x18] sm:$0xff]
        %v2382 = vld [vmem:[%s2377 + $0x20] sm:$0xff]
        %v2383 = vld [vmem:[%s2377 + $0x28] sm:$0xff]
        %v2384 = vld [vmem:[%s2377 + $0x30] sm:$0xff]
        %v2385 = vld [vmem:[%s2377 + $0x38] sm:$0xff]
        %2386 = vmatprep.subr.mxu0 0.0
        %2387 = vmatpush1.msra.mxu0 0.0
        %2388 = vmatprep.subr.mxu0 0.0
        %2389 = vmatpush1.msra.mxu0 0.0
        %2390 = vmatprep.subr.mxu0 0.0
        %2391 = vmatpush1.msra.mxu0 0.0
        %2392 = vmatprep.subr.mxu0 0.0
        %2393 = vmatpush1.msra.mxu0 0.0
        %2394 = vmatprep.subr.mxu0 0.0
        %2395 = vmatpush1.msra.mxu0 0.0
        %2396 = vmatprep.subr.mxu0 0.0
        %2397 = vmatpush1.msra.mxu0 0.0
        %2398 = vmatprep.subr.mxu0 0.0
        %2399 = vmatpush1.msra.mxu0 0.0
        %2400 = vmatprep.subr.mxu0 0.0
        %2401 = vmatpush1.msra.mxu0 0.0
        %2402 = vmatprep.subr.mxu0 0.0
        %2403 = vmatpush1.msra.mxu0 0.0
        %2404 = vmatprep.subr.mxu0 0.0
        %2405 = vmatpush1.msra.mxu0 0.0
        %2406 = vmatprep.subr.mxu0 0.0
        %2407 = vmatpush1.msra.mxu0 0.0
        %2408 = vmatprep.subr.mxu0 0.0
        %2409 = vmatpush1.msra.mxu0 0.0
        %2410 = vmatprep.subr.mxu0 %v2385
        %2411 = vmatpush1.msra.mxu0 %v2384
        %2412 = vmatprep.subr.mxu0 %v2383
        %2413 = vmatpush1.msra.mxu0 %v2382
        %2414 = vmatprep.subr.mxu0 %v2381
        %2415 = vmatpush1.msra.mxu0 %v2380
        %2416 = vmatprep.subr.mxu0 %v2379
        %2417 = vmatpush1.msra.mxu0 %v2378
        %2418 = vmatprep.subr.mxu0 0.0
        %2419 = vmatpush2.msra.mxu0 0.0
        %2420 = vmatprep.subr.mxu0 0.0
        %2421 = vmatpush2.msra.mxu0 0.0
        %2422 = vmatprep.subr.mxu0 0.0
        %2423 = vmatpush2.msra.mxu0 0.0
        %2424 = vmatprep.subr.mxu0 0.0
        %2425 = vmatpush2.msra.mxu0 0.0
        %2426 = vmatprep.subr.mxu0 0.0
        %2427 = vmatpush2.msra.mxu0 0.0
        %2428 = vmatprep.subr.mxu0 0.0
        %2429 = vmatpush2.msra.mxu0 0.0
        %2430 = vmatprep.subr.mxu0 0.0
        %2431 = vmatpush2.msra.mxu0 0.0
        %2432 = vmatprep.subr.mxu0 0.0
        %2433 = vmatpush2.msra.mxu0 0.0
        %2434 = vmatprep.subr.mxu0 0.0
        %2435 = vmatpush2.msra.mxu0 0.0
        %2436 = vmatprep.subr.mxu0 0.0
        %2437 = vmatpush2.msra.mxu0 0.0
        %2438 = vmatprep.subr.mxu0 0.0
        %2439 = vmatpush2.msra.mxu0 0.0
        %2440 = vmatprep.subr.mxu0 0.0
        %2441 = vmatpush2.msra.mxu0 0.0
        %2442 = vmatprep.subr.mxu0 0.0
        %2443 = vmatpush2.msra.mxu0 0.0
        %2444 = vmatprep.subr.mxu0 0.0
        %2445 = vmatpush2.msra.mxu0 0.0
        %2446 = vmatprep.subr.mxu0 0.0
        %2447 = vmatpush2.msra.mxu0 0.0
        %2448 = vmatprep.subr.mxu0 0.0
        %2449 = vmatpush2.msra.mxu0 0.0
        %2450 = vmatprep.mubr.f32.mxu0 0.0
        %2451 = vmatmul.mubr.f32.gmra.mxu0 %v1003
        %v2452 = vpop.f32.mrf.mxu0
        %v2453 = vadd.f32 0.0, %v2452
        %v2454 = vpop.f32.mrf.mxu0
        %v2455 = vadd.f32 0.0, %v2454
        %2456 = vmatprep.mubr.f32.mxu0 0.0
        %2457 = vmatmul.mubr.f32.gmra.mxu0 %v1006
        %v2458 = vpop.f32.mrf.mxu0
        %v2459 = vadd.f32 0.0, %v2458
        %v2460 = vpop.f32.mrf.mxu0
        %v2461 = vadd.f32 0.0, %v2460
        %2462 = vmatprep.mubr.f32.mxu0 0.0
        %2463 = vmatmul.mubr.f32.gmra.mxu0 %v1009
        %v2464 = vpop.f32.mrf.mxu0
        %v2465 = vadd.f32 0.0, %v2464
        %v2466 = vpop.f32.mrf.mxu0
        %v2467 = vadd.f32 0.0, %v2466
        %2468 = vmatprep.mubr.f32.mxu0 0.0
        %2469 = vmatmul.mubr.f32.gmra.mxu0 %v1012
        %v2470 = vpop.f32.mrf.mxu0
        %v2471 = vadd.f32 0.0, %v2470
        %v2472 = vpop.f32.mrf.mxu0
        %v2473 = vadd.f32 0.0, %v2472
        %2474 = vdwg.mxu0
        %s2475 = scalar_lea.vmem [#allocation3], 960
        %v2476 = vld [vmem:[%s2475] sm:$0xff]
        %v2477 = vld [vmem:[%s2475 + $0x8] sm:$0xff]
        %v2478 = vld [vmem:[%s2475 + $0x10] sm:$0xff]
        %v2479 = vld [vmem:[%s2475 + $0x18] sm:$0xff]
        %v2480 = vld [vmem:[%s2475 + $0x20] sm:$0xff]
        %v2481 = vld [vmem:[%s2475 + $0x28] sm:$0xff]
        %v2482 = vld [vmem:[%s2475 + $0x30] sm:$0xff]
        %v2483 = vld [vmem:[%s2475 + $0x38] sm:$0xff]
        %2484 = vmatprep.subr.mxu0 0.0
        %2485 = vmatpush1.msra.mxu0 0.0
        %2486 = vmatprep.subr.mxu0 0.0
        %2487 = vmatpush1.msra.mxu0 0.0
        %2488 = vmatprep.subr.mxu0 0.0
        %2489 = vmatpush1.msra.mxu0 0.0
        %2490 = vmatprep.subr.mxu0 0.0
        %2491 = vmatpush1.msra.mxu0 0.0
        %2492 = vmatprep.subr.mxu0 0.0
        %2493 = vmatpush1.msra.mxu0 0.0
        %2494 = vmatprep.subr.mxu0 0.0
        %2495 = vmatpush1.msra.mxu0 0.0
        %2496 = vmatprep.subr.mxu0 0.0
        %2497 = vmatpush1.msra.mxu0 0.0
        %2498 = vmatprep.subr.mxu0 0.0
        %2499 = vmatpush1.msra.mxu0 0.0
        %2500 = vmatprep.subr.mxu0 0.0
        %2501 = vmatpush1.msra.mxu0 0.0
        %2502 = vmatprep.subr.mxu0 0.0
        %2503 = vmatpush1.msra.mxu0 0.0
        %2504 = vmatprep.subr.mxu0 0.0
        %2505 = vmatpush1.msra.mxu0 0.0
        %2506 = vmatprep.subr.mxu0 0.0
        %2507 = vmatpush1.msra.mxu0 0.0
        %2508 = vmatprep.subr.mxu0 %v2483
        %2509 = vmatpush1.msra.mxu0 %v2482
        %2510 = vmatprep.subr.mxu0 %v2481
        %2511 = vmatpush1.msra.mxu0 %v2480
        %2512 = vmatprep.subr.mxu0 %v2479
        %2513 = vmatpush1.msra.mxu0 %v2478
        %2514 = vmatprep.subr.mxu0 %v2477
        %2515 = vmatpush1.msra.mxu0 %v2476
        %2516 = vmatprep.subr.mxu0 0.0
        %2517 = vmatpush2.msra.mxu0 0.0
        %2518 = vmatprep.subr.mxu0 0.0
        %2519 = vmatpush2.msra.mxu0 0.0
        %2520 = vmatprep.subr.mxu0 0.0
        %2521 = vmatpush2.msra.mxu0 0.0
        %2522 = vmatprep.subr.mxu0 0.0
        %2523 = vmatpush2.msra.mxu0 0.0
        %2524 = vmatprep.subr.mxu0 0.0
        %2525 = vmatpush2.msra.mxu0 0.0
        %2526 = vmatprep.subr.mxu0 0.0
        %2527 = vmatpush2.msra.mxu0 0.0
        %2528 = vmatprep.subr.mxu0 0.0
        %2529 = vmatpush2.msra.mxu0 0.0
        %2530 = vmatprep.subr.mxu0 0.0
        %2531 = vmatpush2.msra.mxu0 0.0
        %2532 = vmatprep.subr.mxu0 0.0
        %2533 = vmatpush2.msra.mxu0 0.0
        %2534 = vmatprep.subr.mxu0 0.0
        %2535 = vmatpush2.msra.mxu0 0.0
        %2536 = vmatprep.subr.mxu0 0.0
        %2537 = vmatpush2.msra.mxu0 0.0
        %2538 = vmatprep.subr.mxu0 0.0
        %2539 = vmatpush2.msra.mxu0 0.0
        %2540 = vmatprep.subr.mxu0 0.0
        %2541 = vmatpush2.msra.mxu0 0.0
        %2542 = vmatprep.subr.mxu0 0.0
        %2543 = vmatpush2.msra.mxu0 0.0
        %2544 = vmatprep.subr.mxu0 0.0
        %2545 = vmatpush2.msra.mxu0 0.0
        %2546 = vmatprep.subr.mxu0 0.0
        %2547 = vmatpush2.msra.mxu0 0.0
        %2548 = vmatprep.mubr.f32.mxu0 0.0
        %2549 = vmatmul.mubr.f32.gmra.mxu0 %v1003
        %v2550 = vpop.f32.mrf.mxu0
        %v2551 = vadd.f32 0.0, %v2550
        %v2552 = vpop.f32.mrf.mxu0
        %v2553 = vadd.f32 0.0, %v2552
        %2554 = vmatprep.mubr.f32.mxu0 0.0
        %2555 = vmatmul.mubr.f32.gmra.mxu0 %v1006
        %v2556 = vpop.f32.mrf.mxu0
        %v2557 = vadd.f32 0.0, %v2556
        %v2558 = vpop.f32.mrf.mxu0
        %v2559 = vadd.f32 0.0, %v2558
        %2560 = vmatprep.mubr.f32.mxu0 0.0
        %2561 = vmatmul.mubr.f32.gmra.mxu0 %v1009
        %v2562 = vpop.f32.mrf.mxu0
        %v2563 = vadd.f32 0.0, %v2562
        %v2564 = vpop.f32.mrf.mxu0
        %v2565 = vadd.f32 0.0, %v2564
        %2566 = vmatprep.mubr.f32.mxu0 0.0
        %2567 = vmatmul.mubr.f32.gmra.mxu0 %v1012
        %v2568 = vpop.f32.mrf.mxu0
        %v2569 = vadd.f32 0.0, %v2568
        %v2570 = vpop.f32.mrf.mxu0
        %v2571 = vadd.f32 0.0, %v2570
        %2572 = vdwg.mxu0
        %v2573 = vmax.f32 %v1081, %v1179
        %v2574 = vmax.f32 %v1083, %v1181
        %v2575 = vmax.f32 %v1087, %v1185
        %v2576 = vmax.f32 %v1089, %v1187
        %v2577 = vmax.f32 %v1093, %v1191
        %v2578 = vmax.f32 %v1095, %v1193
        %v2579 = vmax.f32 %v1099, %v1197
        %v2580 = vmax.f32 %v1101, %v1199
        %v2581 = vmax.f32 %v2573, %v1277
        %v2582 = vmax.f32 %v2574, %v1279
        %v2583 = vmax.f32 %v2575, %v1283
        %v2584 = vmax.f32 %v2576, %v1285
        %v2585 = vmax.f32 %v2577, %v1289
        %v2586 = vmax.f32 %v2578, %v1291
        %v2587 = vmax.f32 %v2579, %v1295
        %v2588 = vmax.f32 %v2580, %v1297
        %v2589 = vmax.f32 %v2581, %v1375
        %v2590 = vmax.f32 %v2582, %v1377
        %v2591 = vmax.f32 %v2583, %v1381
        %v2592 = vmax.f32 %v2584, %v1383
        %v2593 = vmax.f32 %v2585, %v1387
        %v2594 = vmax.f32 %v2586, %v1389
        %v2595 = vmax.f32 %v2587, %v1393
        %v2596 = vmax.f32 %v2588, %v1395
        %v2597 = vmax.f32 %v2589, %v1473
        %v2598 = vmax.f32 %v2590, %v1475
        %v2599 = vmax.f32 %v2591, %v1479
        %v2600 = vmax.f32 %v2592, %v1481
        %v2601 = vmax.f32 %v2593, %v1485
        %v2602 = vmax.f32 %v2594, %v1487
        %v2603 = vmax.f32 %v2595, %v1491
        %v2604 = vmax.f32 %v2596, %v1493
        %v2605 = vmax.f32 %v2597, %v1571
        %v2606 = vmax.f32 %v2598, %v1573
        %v2607 = vmax.f32 %v2599, %v1577
        %v2608 = vmax.f32 %v2600, %v1579
        %v2609 = vmax.f32 %v2601, %v1583
        %v2610 = vmax.f32 %v2602, %v1585
        %v2611 = vmax.f32 %v2603, %v1589
        %v2612 = vmax.f32 %v2604, %v1591
        %v2613 = vmax.f32 %v2605, %v1669
        %v2614 = vmax.f32 %v2606, %v1671
        %v2615 = vmax.f32 %v2607, %v1675
        %v2616 = vmax.f32 %v2608, %v1677
        %v2617 = vmax.f32 %v2609, %v1681
        %v2618 = vmax.f32 %v2610, %v1683
        %v2619 = vmax.f32 %v2611, %v1687
        %v2620 = vmax.f32 %v2612, %v1689
        %v2621 = vmax.f32 %v2613, %v1767
        %v2622 = vmax.f32 %v2614, %v1769
        %v2623 = vmax.f32 %v2615, %v1773
        %v2624 = vmax.f32 %v2616, %v1775
        %v2625 = vmax.f32 %v2617, %v1779
        %v2626 = vmax.f32 %v2618, %v1781
        %v2627 = vmax.f32 %v2619, %v1785
        %v2628 = vmax.f32 %v2620, %v1787
        %v2629 = vmax.f32 %v2621, %v1865
        %v2630 = vmax.f32 %v2622, %v1867
        %v2631 = vmax.f32 %v2623, %v1871
        %v2632 = vmax.f32 %v2624, %v1873
        %v2633 = vmax.f32 %v2625, %v1877
        %v2634 = vmax.f32 %v2626, %v1879
        %v2635 = vmax.f32 %v2627, %v1883
        %v2636 = vmax.f32 %v2628, %v1885
        %v2637 = vmax.f32 %v2629, %v1963
        %v2638 = vmax.f32 %v2630, %v1965
        %v2639 = vmax.f32 %v2631, %v1969
        %v2640 = vmax.f32 %v2632, %v1971
        %v2641 = vmax.f32 %v2633, %v1975
        %v2642 = vmax.f32 %v2634, %v1977
        %v2643 = vmax.f32 %v2635, %v1981
        %v2644 = vmax.f32 %v2636, %v1983
        %v2645 = vmax.f32 %v2637, %v2061
        %v2646 = vmax.f32 %v2638, %v2063
        %v2647 = vmax.f32 %v2639, %v2067
        %v2648 = vmax.f32 %v2640, %v2069
        %v2649 = vmax.f32 %v2641, %v2073
        %v2650 = vmax.f32 %v2642, %v2075
        %v2651 = vmax.f32 %v2643, %v2079
        %v2652 = vmax.f32 %v2644, %v2081
        %v2653 = vmax.f32 %v2645, %v2159
        %v2654 = vmax.f32 %v2646, %v2161
        %v2655 = vmax.f32 %v2647, %v2165
        %v2656 = vmax.f32 %v2648, %v2167
        %v2657 = vmax.f32 %v2649, %v2171
        %v2658 = vmax.f32 %v2650, %v2173
        %v2659 = vmax.f32 %v2651, %v2177
        %v2660 = vmax.f32 %v2652, %v2179
        %v2661 = vmax.f32 %v2653, %v2257
        %v2662 = vmax.f32 %v2654, %v2259
        %v2663 = vmax.f32 %v2655, %v2263
        %v2664 = vmax.f32 %v2656, %v2265
        %v2665 = vmax.f32 %v2657, %v2269
        %v2666 = vmax.f32 %v2658, %v2271
        %v2667 = vmax.f32 %v2659, %v2275
        %v2668 = vmax.f32 %v2660, %v2277
        %v2669 = vmax.f32 %v2661, %v2355
        %v2670 = vmax.f32 %v2662, %v2357
        %v2671 = vmax.f32 %v2663, %v2361
        %v2672 = vmax.f32 %v2664, %v2363
        %v2673 = vmax.f32 %v2665, %v2367
        %v2674 = vmax.f32 %v2666, %v2369
        %v2675 = vmax.f32 %v2667, %v2373
        %v2676 = vmax.f32 %v2668, %v2375
        %v2677 = vmax.f32 %v2669, %v2453
        %v2678 = vmax.f32 %v2670, %v2455
        %v2679 = vmax.f32 %v2671, %v2459
        %v2680 = vmax.f32 %v2672, %v2461
        %v2681 = vmax.f32 %v2673, %v2465
        %v2682 = vmax.f32 %v2674, %v2467
        %v2683 = vmax.f32 %v2675, %v2471
        %v2684 = vmax.f32 %v2676, %v2473
        %v2685 = vmax.f32 %v2677, %v2551
        %v2686 = vmax.f32 %v2678, %v2553
        %v2687 = vmax.f32 %v2679, %v2557
        %v2688 = vmax.f32 %v2680, %v2559
        %v2689 = vmax.f32 %v2681, %v2563
        %v2690 = vmax.f32 %v2682, %v2565
        %v2691 = vmax.f32 %v2683, %v2569
        %v2692 = vmax.f32 %v2684, %v2571
        %v2693 = vsub.f32 %v1081, %v2685
        %v2694 = vsub.f32 %v1083, %v2686
        %v2695 = vsub.f32 %v1087, %v2687
        %v2696 = vsub.f32 %v1089, %v2688
        %v2697 = vsub.f32 %v1093, %v2689
        %v2698 = vsub.f32 %v1095, %v2690
        %v2699 = vsub.f32 %v1099, %v2691
        %v2700 = vsub.f32 %v1101, %v2692
        %v2701 = vmul.f32 %v2693, 1.442695
        %v2702 = vpow.pop %v2701
        %v2703 = vmul.f32 %v2694, 1.442695
        %v2704 = vpow.pop %v2703
        %v2705 = vmul.f32 %v2695, 1.442695
        %v2706 = vpow.pop %v2705
        %v2707 = vmul.f32 %v2696, 1.442695
        %v2708 = vpow.pop %v2707
        %v2709 = vmul.f32 %v2697, 1.442695
        %v2710 = vpow.pop %v2709
        %v2711 = vmul.f32 %v2698, 1.442695
        %v2712 = vpow.pop %v2711
        %v2713 = vmul.f32 %v2699, 1.442695
        %v2714 = vpow.pop %v2713
        %v2715 = vmul.f32 %v2700, 1.442695
        %v2716 = vpow.pop %v2715
        %v2717 = vmul.f32 %v993, %v2702
        %v2718 = vmul.f32 %v994, %v2704
        %v2719 = vmul.f32 %v995, %v2706
        %v2720 = vmul.f32 %v996, %v2708
        %v2721 = vmul.f32 %v997, %v2710
        %v2722 = vmul.f32 %v998, %v2712
        %v2723 = vmul.f32 %v999, %v2714
        %v2724 = vmul.f32 %v1000, %v2716
        %v2725 = vsub.f32 %v1179, %v2685
        %v2726 = vsub.f32 %v1181, %v2686
        %v2727 = vsub.f32 %v1185, %v2687
        %v2728 = vsub.f32 %v1187, %v2688
        %v2729 = vsub.f32 %v1191, %v2689
        %v2730 = vsub.f32 %v1193, %v2690
        %v2731 = vsub.f32 %v1197, %v2691
        %v2732 = vsub.f32 %v1199, %v2692
        %v2733 = vmul.f32 %v2725, 1.442695
        %v2734 = vpow.pop %v2733
        %v2735 = vmul.f32 %v2726, 1.442695
        %v2736 = vpow.pop %v2735
        %v2737 = vmul.f32 %v2727, 1.442695
        %v2738 = vpow.pop %v2737
        %v2739 = vmul.f32 %v2728, 1.442695
        %v2740 = vpow.pop %v2739
        %v2741 = vmul.f32 %v2729, 1.442695
        %v2742 = vpow.pop %v2741
        %v2743 = vmul.f32 %v2730, 1.442695
        %v2744 = vpow.pop %v2743
        %v2745 = vmul.f32 %v2731, 1.442695
        %v2746 = vpow.pop %v2745
        %v2747 = vmul.f32 %v2732, 1.442695
        %v2748 = vpow.pop %v2747
        %v2749 = vadd.f32 %v2702, %v2734
        %v2750 = vadd.f32 %v2704, %v2736
        %v2751 = vadd.f32 %v2706, %v2738
        %v2752 = vadd.f32 %v2708, %v2740
        %v2753 = vadd.f32 %v2710, %v2742
        %v2754 = vadd.f32 %v2712, %v2744
        %v2755 = vadd.f32 %v2714, %v2746
        %v2756 = vadd.f32 %v2716, %v2748
        %v2757 = vmul.f32 %v1104, %v2734
        %v2758 = vmul.f32 %v1105, %v2736
        %v2759 = vmul.f32 %v1106, %v2738
        %v2760 = vmul.f32 %v1107, %v2740
        %v2761 = vmul.f32 %v1108, %v2742
        %v2762 = vmul.f32 %v1109, %v2744
        %v2763 = vmul.f32 %v1110, %v2746
        %v2764 = vmul.f32 %v1111, %v2748
        %v2765 = vadd.f32 %v2717, %v2757
        %v2766 = vadd.f32 %v2718, %v2758
        %v2767 = vadd.f32 %v2719, %v2759
        %v2768 = vadd.f32 %v2720, %v2760
        %v2769 = vadd.f32 %v2721, %v2761
        %v2770 = vadd.f32 %v2722, %v2762
        %v2771 = vadd.f32 %v2723, %v2763
        %v2772 = vadd.f32 %v2724, %v2764
        %v2773 = vsub.f32 %v1277, %v2685
        %v2774 = vsub.f32 %v1279, %v2686
        %v2775 = vsub.f32 %v1283, %v2687
        %v2776 = vsub.f32 %v1285, %v2688
        %v2777 = vsub.f32 %v1289, %v2689
        %v2778 = vsub.f32 %v1291, %v2690
        %v2779 = vsub.f32 %v1295, %v2691
        %v2780 = vsub.f32 %v1297, %v2692
        %v2781 = vmul.f32 %v2773, 1.442695
        %v2782 = vpow.pop %v2781
        %v2783 = vmul.f32 %v2774, 1.442695
        %v2784 = vpow.pop %v2783
        %v2785 = vmul.f32 %v2775, 1.442695
        %v2786 = vpow.pop %v2785
        %v2787 = vmul.f32 %v2776, 1.442695
        %v2788 = vpow.pop %v2787
        %v2789 = vmul.f32 %v2777, 1.442695
        %v2790 = vpow.pop %v2789
        %v2791 = vmul.f32 %v2778, 1.442695
        %v2792 = vpow.pop %v2791
        %v2793 = vmul.f32 %v2779, 1.442695
        %v2794 = vpow.pop %v2793
        %v2795 = vmul.f32 %v2780, 1.442695
        %v2796 = vpow.pop %v2795
        %v2797 = vadd.f32 %v2749, %v2782
        %v2798 = vadd.f32 %v2750, %v2784
        %v2799 = vadd.f32 %v2751, %v2786
        %v2800 = vadd.f32 %v2752, %v2788
        %v2801 = vadd.f32 %v2753, %v2790
        %v2802 = vadd.f32 %v2754, %v2792
        %v2803 = vadd.f32 %v2755, %v2794
        %v2804 = vadd.f32 %v2756, %v2796
        %v2805 = vmul.f32 %v1202, %v2782
        %v2806 = vmul.f32 %v1203, %v2784
        %v2807 = vmul.f32 %v1204, %v2786
        %v2808 = vmul.f32 %v1205, %v2788
        %v2809 = vmul.f32 %v1206, %v2790
        %v2810 = vmul.f32 %v1207, %v2792
        %v2811 = vmul.f32 %v1208, %v2794
        %v2812 = vmul.f32 %v1209, %v2796
        %v2813 = vadd.f32 %v2765, %v2805
        %v2814 = vadd.f32 %v2766, %v2806
        %v2815 = vadd.f32 %v2767, %v2807
        %v2816 = vadd.f32 %v2768, %v2808
        %v2817 = vadd.f32 %v2769, %v2809
        %v2818 = vadd.f32 %v2770, %v2810
        %v2819 = vadd.f32 %v2771, %v2811
        %v2820 = vadd.f32 %v2772, %v2812
        %v2821 = vsub.f32 %v1375, %v2685
        %v2822 = vsub.f32 %v1377, %v2686
        %v2823 = vsub.f32 %v1381, %v2687
        %v2824 = vsub.f32 %v1383, %v2688
        %v2825 = vsub.f32 %v1387, %v2689
        %v2826 = vsub.f32 %v1389, %v2690
        %v2827 = vsub.f32 %v1393, %v2691
        %v2828 = vsub.f32 %v1395, %v2692
        %v2829 = vmul.f32 %v2821, 1.442695
        %v2830 = vpow.pop %v2829
        %v2831 = vmul.f32 %v2822, 1.442695
        %v2832 = vpow.pop %v2831
        %v2833 = vmul.f32 %v2823, 1.442695
        %v2834 = vpow.pop %v2833
        %v2835 = vmul.f32 %v2824, 1.442695
        %v2836 = vpow.pop %v2835
        %v2837 = vmul.f32 %v2825, 1.442695
        %v2838 = vpow.pop %v2837
        %v2839 = vmul.f32 %v2826, 1.442695
        %v2840 = vpow.pop %v2839
        %v2841 = vmul.f32 %v2827, 1.442695
        %v2842 = vpow.pop %v2841
        %v2843 = vmul.f32 %v2828, 1.442695
        %v2844 = vpow.pop %v2843
        %v2845 = vadd.f32 %v2797, %v2830
        %v2846 = vadd.f32 %v2798, %v2832
        %v2847 = vadd.f32 %v2799, %v2834
        %v2848 = vadd.f32 %v2800, %v2836
        %v2849 = vadd.f32 %v2801, %v2838
        %v2850 = vadd.f32 %v2802, %v2840
        %v2851 = vadd.f32 %v2803, %v2842
        %v2852 = vadd.f32 %v2804, %v2844
        %v2853 = vmul.f32 %v1300, %v2830
        %v2854 = vmul.f32 %v1301, %v2832
        %v2855 = vmul.f32 %v1302, %v2834
        %v2856 = vmul.f32 %v1303, %v2836
        %v2857 = vmul.f32 %v1304, %v2838
        %v2858 = vmul.f32 %v1305, %v2840
        %v2859 = vmul.f32 %v1306, %v2842
        %v2860 = vmul.f32 %v1307, %v2844
        %v2861 = vadd.f32 %v2813, %v2853
        %v2862 = vadd.f32 %v2814, %v2854
        %v2863 = vadd.f32 %v2815, %v2855
        %v2864 = vadd.f32 %v2816, %v2856
        %v2865 = vadd.f32 %v2817, %v2857
        %v2866 = vadd.f32 %v2818, %v2858
        %v2867 = vadd.f32 %v2819, %v2859
        %v2868 = vadd.f32 %v2820, %v2860
        %v2869 = vsub.f32 %v1473, %v2685
        %v2870 = vsub.f32 %v1475, %v2686
        %v2871 = vsub.f32 %v1479, %v2687
        %v2872 = vsub.f32 %v1481, %v2688
        %v2873 = vsub.f32 %v1485, %v2689
        %v2874 = vsub.f32 %v1487, %v2690
        %v2875 = vsub.f32 %v1491, %v2691
        %v2876 = vsub.f32 %v1493, %v2692
        %v2877 = vmul.f32 %v2869, 1.442695
        %v2878 = vpow.pop %v2877
        %v2879 = vmul.f32 %v2870, 1.442695
        %v2880 = vpow.pop %v2879
        %v2881 = vmul.f32 %v2871, 1.442695
        %v2882 = vpow.pop %v2881
        %v2883 = vmul.f32 %v2872, 1.442695
        %v2884 = vpow.pop %v2883
        %v2885 = vmul.f32 %v2873, 1.442695
        %v2886 = vpow.pop %v2885
        %v2887 = vmul.f32 %v2874, 1.442695
        %v2888 = vpow.pop %v2887
        %v2889 = vmul.f32 %v2875, 1.442695
        %v2890 = vpow.pop %v2889
        %v2891 = vmul.f32 %v2876, 1.442695
        %v2892 = vpow.pop %v2891
        %v2893 = vadd.f32 %v2845, %v2878
        %v2894 = vadd.f32 %v2846, %v2880
        %v2895 = vadd.f32 %v2847, %v2882
        %v2896 = vadd.f32 %v2848, %v2884
        %v2897 = vadd.f32 %v2849, %v2886
        %v2898 = vadd.f32 %v2850, %v2888
        %v2899 = vadd.f32 %v2851, %v2890
        %v2900 = vadd.f32 %v2852, %v2892
        %v2901 = vmul.f32 %v1398, %v2878
        %v2902 = vmul.f32 %v1399, %v2880
        %v2903 = vmul.f32 %v1400, %v2882
        %v2904 = vmul.f32 %v1401, %v2884
        %v2905 = vmul.f32 %v1402, %v2886
        %v2906 = vmul.f32 %v1403, %v2888
        %v2907 = vmul.f32 %v1404, %v2890
        %v2908 = vmul.f32 %v1405, %v2892
        %v2909 = vadd.f32 %v2861, %v2901
        %v2910 = vadd.f32 %v2862, %v2902
        %v2911 = vadd.f32 %v2863, %v2903
        %v2912 = vadd.f32 %v2864, %v2904
        %v2913 = vadd.f32 %v2865, %v2905
        %v2914 = vadd.f32 %v2866, %v2906
        %v2915 = vadd.f32 %v2867, %v2907
        %v2916 = vadd.f32 %v2868, %v2908
        %v2917 = vsub.f32 %v1571, %v2685
        %v2918 = vsub.f32 %v1573, %v2686
        %v2919 = vsub.f32 %v1577, %v2687
        %v2920 = vsub.f32 %v1579, %v2688
        %v2921 = vsub.f32 %v1583, %v2689
        %v2922 = vsub.f32 %v1585, %v2690
        %v2923 = vsub.f32 %v1589, %v2691
        %v2924 = vsub.f32 %v1591, %v2692
        %v2925 = vmul.f32 %v2917, 1.442695
        %v2926 = vpow.pop %v2925
        %v2927 = vmul.f32 %v2918, 1.442695
        %v2928 = vpow.pop %v2927
        %v2929 = vmul.f32 %v2919, 1.442695
        %v2930 = vpow.pop %v2929
        %v2931 = vmul.f32 %v2920, 1.442695
        %v2932 = vpow.pop %v2931
        %v2933 = vmul.f32 %v2921, 1.442695
        %v2934 = vpow.pop %v2933
        %v2935 = vmul.f32 %v2922, 1.442695
        %v2936 = vpow.pop %v2935
        %v2937 = vmul.f32 %v2923, 1.442695
        %v2938 = vpow.pop %v2937
        %v2939 = vmul.f32 %v2924, 1.442695
        %v2940 = vpow.pop %v2939
        %v2941 = vadd.f32 %v2893, %v2926
        %v2942 = vadd.f32 %v2894, %v2928
        %v2943 = vadd.f32 %v2895, %v2930
        %v2944 = vadd.f32 %v2896, %v2932
        %v2945 = vadd.f32 %v2897, %v2934
        %v2946 = vadd.f32 %v2898, %v2936
        %v2947 = vadd.f32 %v2899, %v2938
        %v2948 = vadd.f32 %v2900, %v2940
        %v2949 = vmul.f32 %v1496, %v2926
        %v2950 = vmul.f32 %v1497, %v2928
        %v2951 = vmul.f32 %v1498, %v2930
        %v2952 = vmul.f32 %v1499, %v2932
        %v2953 = vmul.f32 %v1500, %v2934
        %v2954 = vmul.f32 %v1501, %v2936
        %v2955 = vmul.f32 %v1502, %v2938
        %v2956 = vmul.f32 %v1503, %v2940
        %v2957 = vadd.f32 %v2909, %v2949
        %v2958 = vadd.f32 %v2910, %v2950
        %v2959 = vadd.f32 %v2911, %v2951
        %v2960 = vadd.f32 %v2912, %v2952
        %v2961 = vadd.f32 %v2913, %v2953
        %v2962 = vadd.f32 %v2914, %v2954
        %v2963 = vadd.f32 %v2915, %v2955
        %v2964 = vadd.f32 %v2916, %v2956
        %v2965 = vsub.f32 %v1669, %v2685
        %v2966 = vsub.f32 %v1671, %v2686
        %v2967 = vsub.f32 %v1675, %v2687
        %v2968 = vsub.f32 %v1677, %v2688
        %v2969 = vsub.f32 %v1681, %v2689
        %v2970 = vsub.f32 %v1683, %v2690
        %v2971 = vsub.f32 %v1687, %v2691
        %v2972 = vsub.f32 %v1689, %v2692
        %v2973 = vmul.f32 %v2965, 1.442695
        %v2974 = vpow.pop %v2973
        %v2975 = vmul.f32 %v2966, 1.442695
        %v2976 = vpow.pop %v2975
        %v2977 = vmul.f32 %v2967, 1.442695
        %v2978 = vpow.pop %v2977
        %v2979 = vmul.f32 %v2968, 1.442695
        %v2980 = vpow.pop %v2979
        %v2981 = vmul.f32 %v2969, 1.442695
        %v2982 = vpow.pop %v2981
        %v2983 = vmul.f32 %v2970, 1.442695
        %v2984 = vpow.pop %v2983
        %v2985 = vmul.f32 %v2971, 1.442695
        %v2986 = vpow.pop %v2985
        %v2987 = vmul.f32 %v2972, 1.442695
        %v2988 = vpow.pop %v2987
        %v2989 = vadd.f32 %v2941, %v2974
        %v2990 = vadd.f32 %v2942, %v2976
        %v2991 = vadd.f32 %v2943, %v2978
        %v2992 = vadd.f32 %v2944, %v2980
        %v2993 = vadd.f32 %v2945, %v2982
        %v2994 = vadd.f32 %v2946, %v2984
        %v2995 = vadd.f32 %v2947, %v2986
        %v2996 = vadd.f32 %v2948, %v2988
        %v2997 = vmul.f32 %v1594, %v2974
        %v2998 = vmul.f32 %v1595, %v2976
        %v2999 = vmul.f32 %v1596, %v2978
        %v3000 = vmul.f32 %v1597, %v2980
        %v3001 = vmul.f32 %v1598, %v2982
        %v3002 = vmul.f32 %v1599, %v2984
        %v3003 = vmul.f32 %v1600, %v2986
        %v3004 = vmul.f32 %v1601, %v2988
        %v3005 = vadd.f32 %v2957, %v2997
        %v3006 = vadd.f32 %v2958, %v2998
        %v3007 = vadd.f32 %v2959, %v2999
        %v3008 = vadd.f32 %v2960, %v3000
        %v3009 = vadd.f32 %v2961, %v3001
        %v3010 = vadd.f32 %v2962, %v3002
        %v3011 = vadd.f32 %v2963, %v3003
        %v3012 = vadd.f32 %v2964, %v3004
        %v3013 = vsub.f32 %v1767, %v2685
        %v3014 = vsub.f32 %v1769, %v2686
        %v3015 = vsub.f32 %v1773, %v2687
        %v3016 = vsub.f32 %v1775, %v2688
        %v3017 = vsub.f32 %v1779, %v2689
        %v3018 = vsub.f32 %v1781, %v2690
        %v3019 = vsub.f32 %v1785, %v2691
        %v3020 = vsub.f32 %v1787, %v2692
        %v3021 = vmul.f32 %v3013, 1.442695
        %v3022 = vpow.pop %v3021
        %v3023 = vmul.f32 %v3014, 1.442695
        %v3024 = vpow.pop %v3023
        %v3025 = vmul.f32 %v3015, 1.442695
        %v3026 = vpow.pop %v3025
        %v3027 = vmul.f32 %v3016, 1.442695
        %v3028 = vpow.pop %v3027
        %v3029 = vmul.f32 %v3017, 1.442695
        %v3030 = vpow.pop %v3029
        %v3031 = vmul.f32 %v3018, 1.442695
        %v3032 = vpow.pop %v3031
        %v3033 = vmul.f32 %v3019, 1.442695
        %v3034 = vpow.pop %v3033
        %v3035 = vmul.f32 %v3020, 1.442695
        %v3036 = vpow.pop %v3035
        %v3037 = vadd.f32 %v2989, %v3022
        %v3038 = vadd.f32 %v2990, %v3024
        %v3039 = vadd.f32 %v2991, %v3026
        %v3040 = vadd.f32 %v2992, %v3028
        %v3041 = vadd.f32 %v2993, %v3030
        %v3042 = vadd.f32 %v2994, %v3032
        %v3043 = vadd.f32 %v2995, %v3034
        %v3044 = vadd.f32 %v2996, %v3036
        %v3045 = vmul.f32 %v1692, %v3022
        %v3046 = vmul.f32 %v1693, %v3024
        %v3047 = vmul.f32 %v1694, %v3026
        %v3048 = vmul.f32 %v1695, %v3028
        %v3049 = vmul.f32 %v1696, %v3030
        %v3050 = vmul.f32 %v1697, %v3032
        %v3051 = vmul.f32 %v1698, %v3034
        %v3052 = vmul.f32 %v1699, %v3036
        %v3053 = vadd.f32 %v3005, %v3045
        %v3054 = vadd.f32 %v3006, %v3046
        %v3055 = vadd.f32 %v3007, %v3047
        %v3056 = vadd.f32 %v3008, %v3048
        %v3057 = vadd.f32 %v3009, %v3049
        %v3058 = vadd.f32 %v3010, %v3050
        %v3059 = vadd.f32 %v3011, %v3051
        %v3060 = vadd.f32 %v3012, %v3052
        %v3061 = vsub.f32 %v1865, %v2685
        %v3062 = vsub.f32 %v1867, %v2686
        %v3063 = vsub.f32 %v1871, %v2687
        %v3064 = vsub.f32 %v1873, %v2688
        %v3065 = vsub.f32 %v1877, %v2689
        %v3066 = vsub.f32 %v1879, %v2690
        %v3067 = vsub.f32 %v1883, %v2691
        %v3068 = vsub.f32 %v1885, %v2692
        %v3069 = vmul.f32 %v3061, 1.442695
        %v3070 = vpow.pop %v3069
        %v3071 = vmul.f32 %v3062, 1.442695
        %v3072 = vpow.pop %v3071
        %v3073 = vmul.f32 %v3063, 1.442695
        %v3074 = vpow.pop %v3073
        %v3075 = vmul.f32 %v3064, 1.442695
        %v3076 = vpow.pop %v3075
        %v3077 = vmul.f32 %v3065, 1.442695
        %v3078 = vpow.pop %v3077
        %v3079 = vmul.f32 %v3066, 1.442695
        %v3080 = vpow.pop %v3079
        %v3081 = vmul.f32 %v3067, 1.442695
        %v3082 = vpow.pop %v3081
        %v3083 = vmul.f32 %v3068, 1.442695
        %v3084 = vpow.pop %v3083
        %v3085 = vadd.f32 %v3037, %v3070
        %v3086 = vadd.f32 %v3038, %v3072
        %v3087 = vadd.f32 %v3039, %v3074
        %v3088 = vadd.f32 %v3040, %v3076
        %v3089 = vadd.f32 %v3041, %v3078
        %v3090 = vadd.f32 %v3042, %v3080
        %v3091 = vadd.f32 %v3043, %v3082
        %v3092 = vadd.f32 %v3044, %v3084
        %v3093 = vmul.f32 %v1790, %v3070
        %v3094 = vmul.f32 %v1791, %v3072
        %v3095 = vmul.f32 %v1792, %v3074
        %v3096 = vmul.f32 %v1793, %v3076
        %v3097 = vmul.f32 %v1794, %v3078
        %v3098 = vmul.f32 %v1795, %v3080
        %v3099 = vmul.f32 %v1796, %v3082
        %v3100 = vmul.f32 %v1797, %v3084
        %v3101 = vadd.f32 %v3053, %v3093
        %v3102 = vadd.f32 %v3054, %v3094
        %v3103 = vadd.f32 %v3055, %v3095
        %v3104 = vadd.f32 %v3056, %v3096
        %v3105 = vadd.f32 %v3057, %v3097
        %v3106 = vadd.f32 %v3058, %v3098
        %v3107 = vadd.f32 %v3059, %v3099
        %v3108 = vadd.f32 %v3060, %v3100
        %v3109 = vsub.f32 %v1963, %v2685
        %v3110 = vsub.f32 %v1965, %v2686
        %v3111 = vsub.f32 %v1969, %v2687
        %v3112 = vsub.f32 %v1971, %v2688
        %v3113 = vsub.f32 %v1975, %v2689
        %v3114 = vsub.f32 %v1977, %v2690
        %v3115 = vsub.f32 %v1981, %v2691
        %v3116 = vsub.f32 %v1983, %v2692
        %v3117 = vmul.f32 %v3109, 1.442695
        %v3118 = vpow.pop %v3117
        %v3119 = vmul.f32 %v3110, 1.442695
        %v3120 = vpow.pop %v3119
        %v3121 = vmul.f32 %v3111, 1.442695
        %v3122 = vpow.pop %v3121
        %v3123 = vmul.f32 %v3112, 1.442695
        %v3124 = vpow.pop %v3123
        %v3125 = vmul.f32 %v3113, 1.442695
        %v3126 = vpow.pop %v3125
        %v3127 = vmul.f32 %v3114, 1.442695
        %v3128 = vpow.pop %v3127
        %v3129 = vmul.f32 %v3115, 1.442695
        %v3130 = vpow.pop %v3129
        %v3131 = vmul.f32 %v3116, 1.442695
        %v3132 = vpow.pop %v3131
        %v3133 = vadd.f32 %v3085, %v3118
        %v3134 = vadd.f32 %v3086, %v3120
        %v3135 = vadd.f32 %v3087, %v3122
        %v3136 = vadd.f32 %v3088, %v3124
        %v3137 = vadd.f32 %v3089, %v3126
        %v3138 = vadd.f32 %v3090, %v3128
        %v3139 = vadd.f32 %v3091, %v3130
        %v3140 = vadd.f32 %v3092, %v3132
        %v3141 = vmul.f32 %v1888, %v3118
        %v3142 = vmul.f32 %v1889, %v3120
        %v3143 = vmul.f32 %v1890, %v3122
        %v3144 = vmul.f32 %v1891, %v3124
        %v3145 = vmul.f32 %v1892, %v3126
        %v3146 = vmul.f32 %v1893, %v3128
        %v3147 = vmul.f32 %v1894, %v3130
        %v3148 = vmul.f32 %v1895, %v3132
        %v3149 = vadd.f32 %v3101, %v3141
        %v3150 = vadd.f32 %v3102, %v3142
        %v3151 = vadd.f32 %v3103, %v3143
        %v3152 = vadd.f32 %v3104, %v3144
        %v3153 = vadd.f32 %v3105, %v3145
        %v3154 = vadd.f32 %v3106, %v3146
        %v3155 = vadd.f32 %v3107, %v3147
        %v3156 = vadd.f32 %v3108, %v3148
        %v3157 = vsub.f32 %v2061, %v2685
        %v3158 = vsub.f32 %v2063, %v2686
        %v3159 = vsub.f32 %v2067, %v2687
        %v3160 = vsub.f32 %v2069, %v2688
        %v3161 = vsub.f32 %v2073, %v2689
        %v3162 = vsub.f32 %v2075, %v2690
        %v3163 = vsub.f32 %v2079, %v2691
        %v3164 = vsub.f32 %v2081, %v2692
        %v3165 = vmul.f32 %v3157, 1.442695
        %v3166 = vpow.pop %v3165
        %v3167 = vmul.f32 %v3158, 1.442695
        %v3168 = vpow.pop %v3167
        %v3169 = vmul.f32 %v3159, 1.442695
        %v3170 = vpow.pop %v3169
        %v3171 = vmul.f32 %v3160, 1.442695
        %v3172 = vpow.pop %v3171
        %v3173 = vmul.f32 %v3161, 1.442695
        %v3174 = vpow.pop %v3173
        %v3175 = vmul.f32 %v3162, 1.442695
        %v3176 = vpow.pop %v3175
        %v3177 = vmul.f32 %v3163, 1.442695
        %v3178 = vpow.pop %v3177
        %v3179 = vmul.f32 %v3164, 1.442695
        %v3180 = vpow.pop %v3179
        %v3181 = vadd.f32 %v3133, %v3166
        %v3182 = vadd.f32 %v3134, %v3168
        %v3183 = vadd.f32 %v3135, %v3170
        %v3184 = vadd.f32 %v3136, %v3172
        %v3185 = vadd.f32 %v3137, %v3174
        %v3186 = vadd.f32 %v3138, %v3176
        %v3187 = vadd.f32 %v3139, %v3178
        %v3188 = vadd.f32 %v3140, %v3180
        %v3189 = vmul.f32 %v1986, %v3166
        %v3190 = vmul.f32 %v1987, %v3168
        %v3191 = vmul.f32 %v1988, %v3170
        %v3192 = vmul.f32 %v1989, %v3172
        %v3193 = vmul.f32 %v1990, %v3174
        %v3194 = vmul.f32 %v1991, %v3176
        %v3195 = vmul.f32 %v1992, %v3178
        %v3196 = vmul.f32 %v1993, %v3180
        %v3197 = vadd.f32 %v3149, %v3189
        %v3198 = vadd.f32 %v3150, %v3190
        %v3199 = vadd.f32 %v3151, %v3191
        %v3200 = vadd.f32 %v3152, %v3192
        %v3201 = vadd.f32 %v3153, %v3193
        %v3202 = vadd.f32 %v3154, %v3194
        %v3203 = vadd.f32 %v3155, %v3195
        %v3204 = vadd.f32 %v3156, %v3196
        %v3205 = vsub.f32 %v2159, %v2685
        %v3206 = vsub.f32 %v2161, %v2686
        %v3207 = vsub.f32 %v2165, %v2687
        %v3208 = vsub.f32 %v2167, %v2688
        %v3209 = vsub.f32 %v2171, %v2689
        %v3210 = vsub.f32 %v2173, %v2690
        %v3211 = vsub.f32 %v2177, %v2691
        %v3212 = vsub.f32 %v2179, %v2692
        %v3213 = vmul.f32 %v3205, 1.442695
        %v3214 = vpow.pop %v3213
        %v3215 = vmul.f32 %v3206, 1.442695
        %v3216 = vpow.pop %v3215
        %v3217 = vmul.f32 %v3207, 1.442695
        %v3218 = vpow.pop %v3217
        %v3219 = vmul.f32 %v3208, 1.442695
        %v3220 = vpow.pop %v3219
        %v3221 = vmul.f32 %v3209, 1.442695
        %v3222 = vpow.pop %v3221
        %v3223 = vmul.f32 %v3210, 1.442695
        %v3224 = vpow.pop %v3223
        %v3225 = vmul.f32 %v3211, 1.442695
        %v3226 = vpow.pop %v3225
        %v3227 = vmul.f32 %v3212, 1.442695
        %v3228 = vpow.pop %v3227
        %v3229 = vadd.f32 %v3181, %v3214
        %v3230 = vadd.f32 %v3182, %v3216
        %v3231 = vadd.f32 %v3183, %v3218
        %v3232 = vadd.f32 %v3184, %v3220
        %v3233 = vadd.f32 %v3185, %v3222
        %v3234 = vadd.f32 %v3186, %v3224
        %v3235 = vadd.f32 %v3187, %v3226
        %v3236 = vadd.f32 %v3188, %v3228
        %v3237 = vmul.f32 %v2084, %v3214
        %v3238 = vmul.f32 %v2085, %v3216
        %v3239 = vmul.f32 %v2086, %v3218
        %v3240 = vmul.f32 %v2087, %v3220
        %v3241 = vmul.f32 %v2088, %v3222
        %v3242 = vmul.f32 %v2089, %v3224
        %v3243 = vmul.f32 %v2090, %v3226
        %v3244 = vmul.f32 %v2091, %v3228
        %v3245 = vadd.f32 %v3197, %v3237
        %v3246 = vadd.f32 %v3198, %v3238
        %v3247 = vadd.f32 %v3199, %v3239
        %v3248 = vadd.f32 %v3200, %v3240
        %v3249 = vadd.f32 %v3201, %v3241
        %v3250 = vadd.f32 %v3202, %v3242
        %v3251 = vadd.f32 %v3203, %v3243
        %v3252 = vadd.f32 %v3204, %v3244
        %v3253 = vsub.f32 %v2257, %v2685
        %v3254 = vsub.f32 %v2259, %v2686
        %v3255 = vsub.f32 %v2263, %v2687
        %v3256 = vsub.f32 %v2265, %v2688
        %v3257 = vsub.f32 %v2269, %v2689
        %v3258 = vsub.f32 %v2271, %v2690
        %v3259 = vsub.f32 %v2275, %v2691
        %v3260 = vsub.f32 %v2277, %v2692
        %v3261 = vmul.f32 %v3253, 1.442695
        %v3262 = vpow.pop %v3261
        %v3263 = vmul.f32 %v3254, 1.442695
        %v3264 = vpow.pop %v3263
        %v3265 = vmul.f32 %v3255, 1.442695
        %v3266 = vpow.pop %v3265
        %v3267 = vmul.f32 %v3256, 1.442695
        %v3268 = vpow.pop %v3267
        %v3269 = vmul.f32 %v3257, 1.442695
        %v3270 = vpow.pop %v3269
        %v3271 = vmul.f32 %v3258, 1.442695
        %v3272 = vpow.pop %v3271
        %v3273 = vmul.f32 %v3259, 1.442695
        %v3274 = vpow.pop %v3273
        %v3275 = vmul.f32 %v3260, 1.442695
        %v3276 = vpow.pop %v3275
        %v3277 = vadd.f32 %v3229, %v3262
        %v3278 = vadd.f32 %v3230, %v3264
        %v3279 = vadd.f32 %v3231, %v3266
        %v3280 = vadd.f32 %v3232, %v3268
        %v3281 = vadd.f32 %v3233, %v3270
        %v3282 = vadd.f32 %v3234, %v3272
        %v3283 = vadd.f32 %v3235, %v3274
        %v3284 = vadd.f32 %v3236, %v3276
        %v3285 = vmul.f32 %v2182, %v3262
        %v3286 = vmul.f32 %v2183, %v3264
        %v3287 = vmul.f32 %v2184, %v3266
        %v3288 = vmul.f32 %v2185, %v3268
        %v3289 = vmul.f32 %v2186, %v3270
        %v3290 = vmul.f32 %v2187, %v3272
        %v3291 = vmul.f32 %v2188, %v3274
        %v3292 = vmul.f32 %v2189, %v3276
        %v3293 = vadd.f32 %v3245, %v3285
        %v3294 = vadd.f32 %v3246, %v3286
        %v3295 = vadd.f32 %v3247, %v3287
        %v3296 = vadd.f32 %v3248, %v3288
        %v3297 = vadd.f32 %v3249, %v3289
        %v3298 = vadd.f32 %v3250, %v3290
        %v3299 = vadd.f32 %v3251, %v3291
        %v3300 = vadd.f32 %v3252, %v3292
        %v3301 = vsub.f32 %v2355, %v2685
        %v3302 = vsub.f32 %v2357, %v2686
        %v3303 = vsub.f32 %v2361, %v2687
        %v3304 = vsub.f32 %v2363, %v2688
        %v3305 = vsub.f32 %v2367, %v2689
        %v3306 = vsub.f32 %v2369, %v2690
        %v3307 = vsub.f32 %v2373, %v2691
        %v3308 = vsub.f32 %v2375, %v2692
        %v3309 = vmul.f32 %v3301, 1.442695
        %v3310 = vpow.pop %v3309
        %v3311 = vmul.f32 %v3302, 1.442695
        %v3312 = vpow.pop %v3311
        %v3313 = vmul.f32 %v3303, 1.442695
        %v3314 = vpow.pop %v3313
        %v3315 = vmul.f32 %v3304, 1.442695
        %v3316 = vpow.pop %v3315
        %v3317 = vmul.f32 %v3305, 1.442695
        %v3318 = vpow.pop %v3317
        %v3319 = vmul.f32 %v3306, 1.442695
        %v3320 = vpow.pop %v3319
        %v3321 = vmul.f32 %v3307, 1.442695
        %v3322 = vpow.pop %v3321
        %v3323 = vmul.f32 %v3308, 1.442695
        %v3324 = vpow.pop %v3323
        %v3325 = vadd.f32 %v3277, %v3310
        %v3326 = vadd.f32 %v3278, %v3312
        %v3327 = vadd.f32 %v3279, %v3314
        %v3328 = vadd.f32 %v3280, %v3316
        %v3329 = vadd.f32 %v3281, %v3318
        %v3330 = vadd.f32 %v3282, %v3320
        %v3331 = vadd.f32 %v3283, %v3322
        %v3332 = vadd.f32 %v3284, %v3324
        %v3333 = vmul.f32 %v2280, %v3310
        %v3334 = vmul.f32 %v2281, %v3312
        %v3335 = vmul.f32 %v2282, %v3314
        %v3336 = vmul.f32 %v2283, %v3316
        %v3337 = vmul.f32 %v2284, %v3318
        %v3338 = vmul.f32 %v2285, %v3320
        %v3339 = vmul.f32 %v2286, %v3322
        %v3340 = vmul.f32 %v2287, %v3324
        %v3341 = vadd.f32 %v3293, %v3333
        %v3342 = vadd.f32 %v3294, %v3334
        %v3343 = vadd.f32 %v3295, %v3335
        %v3344 = vadd.f32 %v3296, %v3336
        %v3345 = vadd.f32 %v3297, %v3337
        %v3346 = vadd.f32 %v3298, %v3338
        %v3347 = vadd.f32 %v3299, %v3339
        %v3348 = vadd.f32 %v3300, %v3340
        %v3349 = vsub.f32 %v2453, %v2685
        %v3350 = vsub.f32 %v2455, %v2686
        %v3351 = vsub.f32 %v2459, %v2687
        %v3352 = vsub.f32 %v2461, %v2688
        %v3353 = vsub.f32 %v2465, %v2689
        %v3354 = vsub.f32 %v2467, %v2690
        %v3355 = vsub.f32 %v2471, %v2691
        %v3356 = vsub.f32 %v2473, %v2692
        %v3357 = vmul.f32 %v3349, 1.442695
        %v3358 = vpow.pop %v3357
        %v3359 = vmul.f32 %v3350, 1.442695
        %v3360 = vpow.pop %v3359
        %v3361 = vmul.f32 %v3351, 1.442695
        %v3362 = vpow.pop %v3361
        %v3363 = vmul.f32 %v3352, 1.442695
        %v3364 = vpow.pop %v3363
        %v3365 = vmul.f32 %v3353, 1.442695
        %v3366 = vpow.pop %v3365
        %v3367 = vmul.f32 %v3354, 1.442695
        %v3368 = vpow.pop %v3367
        %v3369 = vmul.f32 %v3355, 1.442695
        %v3370 = vpow.pop %v3369
        %v3371 = vmul.f32 %v3356, 1.442695
        %v3372 = vpow.pop %v3371
        %v3373 = vadd.f32 %v3325, %v3358
        %v3374 = vadd.f32 %v3326, %v3360
        %v3375 = vadd.f32 %v3327, %v3362
        %v3376 = vadd.f32 %v3328, %v3364
        %v3377 = vadd.f32 %v3329, %v3366
        %v3378 = vadd.f32 %v3330, %v3368
        %v3379 = vadd.f32 %v3331, %v3370
        %v3380 = vadd.f32 %v3332, %v3372
        %v3381 = vmul.f32 %v2378, %v3358
        %v3382 = vmul.f32 %v2379, %v3360
        %v3383 = vmul.f32 %v2380, %v3362
        %v3384 = vmul.f32 %v2381, %v3364
        %v3385 = vmul.f32 %v2382, %v3366
        %v3386 = vmul.f32 %v2383, %v3368
        %v3387 = vmul.f32 %v2384, %v3370
        %v3388 = vmul.f32 %v2385, %v3372
        %v3389 = vadd.f32 %v3341, %v3381
        %v3390 = vadd.f32 %v3342, %v3382
        %v3391 = vadd.f32 %v3343, %v3383
        %v3392 = vadd.f32 %v3344, %v3384
        %v3393 = vadd.f32 %v3345, %v3385
        %v3394 = vadd.f32 %v3346, %v3386
        %v3395 = vadd.f32 %v3347, %v3387
        %v3396 = vadd.f32 %v3348, %v3388
        %v3397 = vsub.f32 %v2551, %v2685
        %v3398 = vsub.f32 %v2553, %v2686
        %v3399 = vsub.f32 %v2557, %v2687
        %v3400 = vsub.f32 %v2559, %v2688
        %v3401 = vsub.f32 %v2563, %v2689
        %v3402 = vsub.f32 %v2565, %v2690
        %v3403 = vsub.f32 %v2569, %v2691
        %v3404 = vsub.f32 %v2571, %v2692
        %v3405 = vmul.f32 %v3397, 1.442695
        %v3406 = vpow.pop %v3405
        %v3407 = vmul.f32 %v3398, 1.442695
        %v3408 = vpow.pop %v3407
        %v3409 = vmul.f32 %v3399, 1.442695
        %v3410 = vpow.pop %v3409
        %v3411 = vmul.f32 %v3400, 1.442695
        %v3412 = vpow.pop %v3411
        %v3413 = vmul.f32 %v3401, 1.442695
        %v3414 = vpow.pop %v3413
        %v3415 = vmul.f32 %v3402, 1.442695
        %v3416 = vpow.pop %v3415
        %v3417 = vmul.f32 %v3403, 1.442695
        %v3418 = vpow.pop %v3417
        %v3419 = vmul.f32 %v3404, 1.442695
        %v3420 = vpow.pop %v3419
        %v3421 = vadd.f32 %v3373, %v3406
        %v3422 = vadd.f32 %v3374, %v3408
        %v3423 = vadd.f32 %v3375, %v3410
        %v3424 = vadd.f32 %v3376, %v3412
        %v3425 = vadd.f32 %v3377, %v3414
        %v3426 = vadd.f32 %v3378, %v3416
        %v3427 = vadd.f32 %v3379, %v3418
        %v3428 = vadd.f32 %v3380, %v3420
        %v3429 = vmul.f32 %v2476, %v3406
        %v3430 = vmul.f32 %v2477, %v3408
        %v3431 = vmul.f32 %v2478, %v3410
        %v3432 = vmul.f32 %v2479, %v3412
        %v3433 = vmul.f32 %v2480, %v3414
        %v3434 = vmul.f32 %v2481, %v3416
        %v3435 = vmul.f32 %v2482, %v3418
        %v3436 = vmul.f32 %v2483, %v3420
        %v3437 = vadd.f32 %v3389, %v3429
        %v3438 = vadd.f32 %v3390, %v3430
        %v3439 = vadd.f32 %v3391, %v3431
        %v3440 = vadd.f32 %v3392, %v3432
        %v3441 = vadd.f32 %v3393, %v3433
        %v3442 = vadd.f32 %v3394, %v3434
        %v3443 = vadd.f32 %v3395, %v3435
        %v3444 = vadd.f32 %v3396, %v3436
        %v3445 = vrcp.pop %v3421
        %v3446 = vrcp.pop %v3422
        %v3447 = vrcp.pop %v3423
        %v3448 = vrcp.pop %v3424
        %v3449 = vrcp.pop %v3425
        %v3450 = vrcp.pop %v3426
        %v3451 = vrcp.pop %v3427
        %v3452 = vrcp.pop %v3428
        %v3453 = vmul.f32 %v3437, %v3445
        %v3454 = vmul.f32 %v3438, %v3446
        %v3455 = vmul.f32 %v3439, %v3447
        %v3456 = vmul.f32 %v3440, %v3448
        %v3457 = vmul.f32 %v3441, %v3449
        %v3458 = vmul.f32 %v3442, %v3450
        %v3459 = vmul.f32 %v3443, %v3451
        %v3460 = vmul.f32 %v3444, %v3452
        %v3461 = vld [vmem:[%s1] sm:$0xff]
        %v3462 = vld [vmem:[%s1 + $0x8] sm:$0xff]
        %v3463 = vld [vmem:[%s1 + $0x10] sm:$0xff]
        %v3464 = vld [vmem:[%s1 + $0x18] sm:$0xff]
        %v3465 = vld [vmem:[%s1 + $0x20] sm:$0xff]
        %v3466 = vld [vmem:[%s1 + $0x28] sm:$0xff]
        %v3467 = vld [vmem:[%s1 + $0x30] sm:$0xff]
        %v3468 = vld [vmem:[%s1 + $0x38] sm:$0xff]
        %v3469 = vld [vmem:[%s2] sm:$0xff]
        %v3470 = vld [vmem:[%s2 + $0x8] sm:$0xff]
        %v3471 = vld [vmem:[%s2 + $0x10] sm:$0xff]
        %v3472 = vld [vmem:[%s2 + $0x18] sm:$0xff]
        %v3473 = vld [vmem:[%s2 + $0x20] sm:$0xff]
        %v3474 = vld [vmem:[%s2 + $0x28] sm:$0xff]
        %v3475 = vld [vmem:[%s2 + $0x30] sm:$0xff]
        %v3476 = vld [vmem:[%s2 + $0x38] sm:$0xff]
        %3478 = vset.pattern.permute.xlu0 0
        %3479 = vperm.xlu0 %3478, %v3469
        %v3480 = vpop.permute.xlu0 %3479
        %3483 = vset.pattern.permute.xlu0 0
        %3484 = vperm.xlu0 %3483, %v3470
        %v3485 = vpop.permute.xlu0 %3484
        %3488 = vset.pattern.permute.xlu0 0
        %3489 = vperm.xlu0 %3488, %v3471
        %v3490 = vpop.permute.xlu0 %3489
        %3493 = vset.pattern.permute.xlu0 0
        %3494 = vperm.xlu0 %3493, %v3472
        %v3495 = vpop.permute.xlu0 %3494
        %3498 = vset.pattern.permute.xlu0 0
        %3499 = vperm.xlu0 %3498, %v3473
        %v3500 = vpop.permute.xlu0 %3499
        %3503 = vset.pattern.permute.xlu0 0
        %3504 = vperm.xlu0 %3503, %v3474
        %v3505 = vpop.permute.xlu0 %3504
        %3508 = vset.pattern.permute.xlu0 0
        %3509 = vperm.xlu0 %3508, %v3475
        %v3510 = vpop.permute.xlu0 %3509
        %3513 = vset.pattern.permute.xlu0 0
        %3514 = vperm.xlu0 %3513, %v3476
        %v3515 = vpop.permute.xlu0 %3514
        %v3518 = vsel %vm1001, %v3461, 0
        %v3521 = vsel %vm1001, %v3462, 0
        %v3524 = vsel %vm1001, %v3463, 0
        %v3527 = vsel %vm1001, %v3464, 0
        %v3530 = vsel %vm1001, %v3465, 0
        %v3533 = vsel %vm1001, %v3466, 0
        %v3536 = vsel %vm1001, %v3467, 0
        %v3539 = vsel %vm1001, %v3468, 0
        %3541 = vmatprep.subr.mxu0 0.0
        %3542 = vmatpush1.msra.mxu0 0.0
        %3543 = vmatprep.subr.mxu0 0.0
        %3544 = vmatpush1.msra.mxu0 0.0
        %3545 = vmatprep.subr.mxu0 0.0
        %3546 = vmatpush1.msra.mxu0 0.0
        %3547 = vmatprep.subr.mxu0 0.0
        %3548 = vmatpush1.msra.mxu0 0.0
        %3549 = vmatprep.subr.mxu0 0.0
        %3550 = vmatpush1.msra.mxu0 0.0
        %3551 = vmatprep.subr.mxu0 0.0
        %3552 = vmatpush1.msra.mxu0 0.0
        %3553 = vmatprep.subr.mxu0 0.0
        %3554 = vmatpush1.msra.mxu0 0.0
        %3555 = vmatprep.subr.mxu0 0.0
        %3556 = vmatpush1.msra.mxu0 0.0
        %3557 = vmatprep.subr.mxu0 0.0
        %3558 = vmatpush1.msra.mxu0 0.0
        %3559 = vmatprep.subr.mxu0 0.0
        %3560 = vmatpush1.msra.mxu0 0.0
        %3561 = vmatprep.subr.mxu0 0.0
        %3562 = vmatpush1.msra.mxu0 0.0
        %3563 = vmatprep.subr.mxu0 0.0
        %3564 = vmatpush1.msra.mxu0 0.0
        %3565 = vmatprep.subr.mxu0 %v3460
        %3566 = vmatpush1.msra.mxu0 %v3459
        %3567 = vmatprep.subr.mxu0 %v3458
        %3568 = vmatpush1.msra.mxu0 %v3457
        %3569 = vmatprep.subr.mxu0 %v3456
        %3570 = vmatpush1.msra.mxu0 %v3455
        %3571 = vmatprep.subr.mxu0 %v3454
        %3572 = vmatpush1.msra.mxu0 %v3453
        %3573 = vmatprep.subr.mxu0 0.0
        %3574 = vmatpush2.msra.mxu0 0.0
        %3575 = vmatprep.subr.mxu0 0.0
        %3576 = vmatpush2.msra.mxu0 0.0
        %3577 = vmatprep.subr.mxu0 0.0
        %3578 = vmatpush2.msra.mxu0 0.0
        %3579 = vmatprep.subr.mxu0 0.0
        %3580 = vmatpush2.msra.mxu0 0.0
        %3581 = vmatprep.subr.mxu0 0.0
        %3582 = vmatpush2.msra.mxu0 0.0
        %3583 = vmatprep.subr.mxu0 0.0
        %3584 = vmatpush2.msra.mxu0 0.0
        %3585 = vmatprep.subr.mxu0 0.0
        %3586 = vmatpush2.msra.mxu0 0.0
        %3587 = vmatprep.subr.mxu0 0.0
        %3588 = vmatpush2.msra.mxu0 0.0
        %3589 = vmatprep.subr.mxu0 0.0
        %3590 = vmatpush2.msra.mxu0 0.0
        %3591 = vmatprep.subr.mxu0 0.0
        %3592 = vmatpush2.msra.mxu0 0.0
        %3593 = vmatprep.subr.mxu0 0.0
        %3594 = vmatpush2.msra.mxu0 0.0
        %3595 = vmatprep.subr.mxu0 0.0
        %3596 = vmatpush2.msra.mxu0 0.0
        %3597 = vmatprep.subr.mxu0 0.0
        %3598 = vmatpush2.msra.mxu0 0.0
        %3599 = vmatprep.subr.mxu0 0.0
        %3600 = vmatpush2.msra.mxu0 0.0
        %3601 = vmatprep.subr.mxu0 0.0
        %3602 = vmatpush2.msra.mxu0 0.0
        %3603 = vmatprep.subr.mxu0 0.0
        %3604 = vmatpush2.msra.mxu0 0.0
        %3605 = vmatprep.mubr.f32.mxu0 0.0
        %3606 = vmatmul.mubr.f32.gmra.mxu0 %v3518
        %v3607 = vpop.f32.mrf.mxu0
        %v3608 = vadd.f32 %v3480, %v3607
        %v3609 = vpop.f32.mrf.mxu0
        %v3610 = vadd.f32 %v3480, %v3609
        %3611 = vmatprep.mubr.f32.mxu0 0.0
        %3612 = vmatmul.mubr.f32.gmra.mxu0 %v3521
        %v3613 = vpop.f32.mrf.mxu0
        %v3614 = vadd.f32 %v3485, %v3613
        %v3615 = vpop.f32.mrf.mxu0
        %v3616 = vadd.f32 %v3485, %v3615
        %3617 = vmatprep.mubr.f32.mxu0 0.0
        %3618 = vmatmul.mubr.f32.gmra.mxu0 %v3524
        %v3619 = vpop.f32.mrf.mxu0
        %v3620 = vadd.f32 %v3490, %v3619
        %v3621 = vpop.f32.mrf.mxu0
        %v3622 = vadd.f32 %v3490, %v3621
        %3623 = vmatprep.mubr.f32.mxu0 0.0
        %3624 = vmatmul.mubr.f32.gmra.mxu0 %v3527
        %v3625 = vpop.f32.mrf.mxu0
        %v3626 = vadd.f32 %v3495, %v3625
        %v3627 = vpop.f32.mrf.mxu0
        %v3628 = vadd.f32 %v3495, %v3627
        %3629 = vmatprep.mubr.f32.mxu0 0.0
        %3630 = vmatmul.mubr.f32.gmra.mxu0 %v3530
        %v3631 = vpop.f32.mrf.mxu0
        %v3632 = vadd.f32 %v3500, %v3631
        %v3633 = vpop.f32.mrf.mxu0
        %v3634 = vadd.f32 %v3500, %v3633
        %3635 = vmatprep.mubr.f32.mxu0 0.0
        %3636 = vmatmul.mubr.f32.gmra.mxu0 %v3533
        %v3637 = vpop.f32.mrf.mxu0
        %v3638 = vadd.f32 %v3505, %v3637
        %v3639 = vpop.f32.mrf.mxu0
        %v3640 = vadd.f32 %v3505, %v3639
        %3641 = vmatprep.mubr.f32.mxu0 0.0
        %3642 = vmatmul.mubr.f32.gmra.mxu0 %v3536
        %v3643 = vpop.f32.mrf.mxu0
        %v3644 = vadd.f32 %v3510, %v3643
        %v3645 = vpop.f32.mrf.mxu0
        %v3646 = vadd.f32 %v3510, %v3645
        %3647 = vmatprep.mubr.f32.mxu0 0.0
        %3648 = vmatmul.mubr.f32.gmra.mxu0 %v3539
        %v3649 = vpop.f32.mrf.mxu0
        %v3650 = vadd.f32 %v3515, %v3649
        %v3651 = vpop.f32.mrf.mxu0
        %v3652 = vadd.f32 %v3515, %v3651
        %3653 = vdwg.mxu0
        %v3654 = vmax.f32 %v3608, 0.0
        %v3655 = vmax.f32 %v3610, 0.0
        %v3656 = vmax.f32 %v3614, 0.0
        %v3657 = vmax.f32 %v3616, 0.0
        %v3658 = vmax.f32 %v3620, 0.0
        %v3659 = vmax.f32 %v3622, 0.0
        %v3660 = vmax.f32 %v3626, 0.0
        %v3661 = vmax.f32 %v3628, 0.0
        %v3662 = vmax.f32 %v3632, 0.0
        %v3663 = vmax.f32 %v3634, 0.0
        %v3664 = vmax.f32 %v3638, 0.0
        %v3665 = vmax.f32 %v3640, 0.0
        %v3666 = vmax.f32 %v3644, 0.0
        %v3667 = vmax.f32 %v3646, 0.0
        %v3668 = vmax.f32 %v3650, 0.0
        %v3669 = vmax.f32 %v3652, 0.0
        %3670 = vst [vmem:[%s211] sm:$0xff] %v3654
        %3671 = vst [vmem:[%s211 + $0x8] sm:$0xff] %v3655
        %3672 = vst [vmem:[%s211 + $0x10] sm:$0xff] %v3656
        %3673 = vst [vmem:[%s211 + $0x18] sm:$0xff] %v3657
        %3674 = vst [vmem:[%s211 + $0x20] sm:$0xff] %v3658
        %3675 = vst [vmem:[%s211 + $0x28] sm:$0xff] %v3659
        %3676 = vst [vmem:[%s211 + $0x30] sm:$0xff] %v3660
        %3677 = vst [vmem:[%s211 + $0x38] sm:$0xff] %v3661
        %3678 = vst [vmem:[%s211 + $0x40] sm:$0xff] %v3662
        %3679 = vst [vmem:[%s211 + $0x48] sm:$0xff] %v3663
        %3680 = vst [vmem:[%s211 + $0x50] sm:$0xff] %v3664
        %3681 = vst [vmem:[%s211 + $0x58] sm:$0xff] %v3665
        %3682 = vst [vmem:[%s211 + $0x60] sm:$0xff] %v3666
        %3683 = vst [vmem:[%s211 + $0x68] sm:$0xff] %v3667
        %3684 = vst [vmem:[%s211 + $0x70] sm:$0xff] %v3668
        %3685 = vst [vmem:[%s211 + $0x78] sm:$0xff] %v3669
        %s3686 = sand.u32 %s128, 1
        %s3687 = sand.u32 %s128, 1
        %s3688 = smul.addr %s3687, 128
        %s3689 = scalar_lea.vmem [#allocation2], %s3688
        // Predicated region
        $region37: #{att_pooling.2} parent=35 // pred_check
          %p3690 = pneg %p138
        $region38: #{att_pooling.2} parent=35 // pred_check_branch
          %3692 = sbr.rel (%p3690) target = $region40
        $region39: #{att_pooling.2} parent=35 // pred_region
          %s3693 = smul.u32 2, %s20
          %s3694 = smul.addr %s19, 32
          %s3695 = sadd.s32 %s3693, %s3694
          %s3696 = smul.addr %s3695, 8
          %s3697 = scalar_lea.vmem %s4, %s3696
          // Predicated region
          $region41: #{att_pooling.2} parent=39 // pred_check
            _
          $region42: #{att_pooling.2} parent=39 // pred_check_branch
            %3699 = sbr.rel (0) target = $region44
          $region43: #{att_pooling.2} parent=39 // pred_region
            // Predicated region
            $region45: #{att_pooling.2} parent=43 // pred_check
              _
            $region46: #{att_pooling.2} parent=43 // pred_check_branch
              %3701 = sbr.rel (0) target = $region48
            $region47: #{att_pooling.2} parent=43 // pred_region
              loop: start=0, step=1, limit=1
              $region49: #{att_pooling.2} parent=47 // loop_pre_header
                _
              $region50: #{att_pooling.2} parent=47 // loop_header
                %s3703 = sphi 0, %s3707
                %p3704 = scmp.ge.s32.totalorder %s3703, 1
                %s3708 = sphi %s3689, %s3689
                %s3709 = sphi %s3697, %s3697
              $region51: #{att_pooling.2} parent=47 // loop_header_branch
                %3706 = sbr.rel (%p3704) target = $region55
              $region52: #{att_pooling.2} parent=47 // loop_body
                %v3710 = vld [vmem:[%s3708] sm:$0xff]
                %3711 = vst [vmem:[%s3709] sm:$0xff] %v3710
                %v3712 = vld [vmem:[%s3708 + $0x8] sm:$0xff]
                %3713 = vst [vmem:[%s3709 + $0x8] sm:$0xff] %v3712
                %v3714 = vld [vmem:[%s3708 + $0x10] sm:$0xff]
                %3715 = vst [vmem:[%s3709 + $0x20] sm:$0xff] %v3714
                %v3716 = vld [vmem:[%s3708 + $0x18] sm:$0xff]
                %3717 = vst [vmem:[%s3709 + $0x28] sm:$0xff] %v3716
                %v3718 = vld [vmem:[%s3708 + $0x20] sm:$0xff]
                %3719 = vst [vmem:[%s3709 + $0x40] sm:$0xff] %v3718
                %v3720 = vld [vmem:[%s3708 + $0x28] sm:$0xff]
                %3721 = vst [vmem:[%s3709 + $0x48] sm:$0xff] %v3720
                %v3722 = vld [vmem:[%s3708 + $0x30] sm:$0xff]
                %3723 = vst [vmem:[%s3709 + $0x60] sm:$0xff] %v3722
                %v3724 = vld [vmem:[%s3708 + $0x38] sm:$0xff]
                %3725 = vst [vmem:[%s3709 + $0x68] sm:$0xff] %v3724
                %v3726 = vld [vmem:[%s3708 + $0x40] sm:$0xff]
                %3727 = vst [vmem:[%s3709 + $0x80] sm:$0xff] %v3726
                %v3728 = vld [vmem:[%s3708 + $0x48] sm:$0xff]
                %3729 = vst [vmem:[%s3709 + $0x88] sm:$0xff] %v3728
                %v3730 = vld [vmem:[%s3708 + $0x50] sm:$0xff]
                %3731 = vst [vmem:[%s3709 + $0xa0] sm:$0xff] %v3730
                %v3732 = vld [vmem:[%s3708 + $0x58] sm:$0xff]
                %3733 = vst [vmem:[%s3709 + $0xa8] sm:$0xff] %v3732
                %v3734 = vld [vmem:[%s3708 + $0x60] sm:$0xff]
                %3735 = vst [vmem:[%s3709 + $0xc0] sm:$0xff] %v3734
                %v3736 = vld [vmem:[%s3708 + $0x68] sm:$0xff]
                %3737 = vst [vmem:[%s3709 + $0xc8] sm:$0xff] %v3736
                %v3738 = vld [vmem:[%s3708 + $0x70] sm:$0xff]
                %3739 = vst [vmem:[%s3709 + $0xe0] sm:$0xff] %v3738
                %v3740 = vld [vmem:[%s3708 + $0x78] sm:$0xff]
                %3741 = vst [vmem:[%s3709 + $0xe8] sm:$0xff] %v3740
              $region53: #{att_pooling.2} parent=47 // loop_footer
                %s3707 = sadd.s32 1, %s3703
              $region54: #{att_pooling.2} parent=47 // loop_footer_branch
                %3702 = sbr.rel target = $region50
              $region55: #{att_pooling.2} parent=47 // loop_exit
                _
            $region48: #{att_pooling.2} parent=43 // pred_fallthru
              _
            // Predicated region
            $region56: #{att_pooling.2} parent=43 // pred_check
              _
            $region57: #{att_pooling.2} parent=43 // pred_check_branch
              %3743 = sbr.rel target = $region59
            $region58: #{att_pooling.2} parent=43 // pred_region
              _
            $region59: #{att_pooling.2} parent=43 // pred_fallthru
              _
          $region44: #{att_pooling.2} parent=39 // pred_fallthru
            _
          %3744 = vnop
        $region40: #{att_pooling.2} parent=35 // pred_fallthru
          _
      $region36: #{att_pooling.2} parent=5 // pred_fallthru
        _
      %p3745 = scmp.le.s32.totalorder 2, %s10
      // Predicated region
      $region60: #{att_pooling.2} parent=5 // pred_check
        %p3746 = pneg %p3745
      $region61: #{att_pooling.2} parent=5 // pred_check_branch
        %3748 = sbr.rel (%p3746) target = $region63
      $region62: #{att_pooling.2} parent=5 // pred_region
        %s3749 = ssub.s32 %s10, 2
        // Predicated region
        $region64: #{att_pooling.2} parent=62 // pred_check
          %p3750 = pneg %p144
        $region65: #{att_pooling.2} parent=62 // pred_check_branch
          %3752 = sbr.rel (%p3750) target = $region67
        $region66: #{att_pooling.2} parent=62 // pred_region
          %s3753 = sand.u32 %s129, 1
          %s3754 = sand.u32 %s129, 1
          %s3755 = smul.addr %s3754, 128
          %s3756 = scalar_lea.vmem [#allocation2], %s3755
        $region67: #{att_pooling.2} parent=62 // pred_fallthru
          _
      $region63: #{att_pooling.2} parent=5 // pred_fallthru
        _
    $region6: #{att_pooling.2} parent=1 // loop_footer
      %s14 = sadd.s32 1, %s10
    $region7: #{att_pooling.2} parent=1 // loop_footer_branch
      %9 = sbr.rel target = $region3
    $region8: #{att_pooling.2} parent=1 // loop_exit
      _

</llo_original>
